<compile_context>
chip_gen: v5e
topology: v5e:2x2
jax: 0.10.0
libtpu: 0.0.40
codegen_flags: <defaults>
</compile_context>

<pallas_src>
import functools

import jax
import jax.numpy as jnp
from jax.experimental import pallas as pl
from jax.experimental.pallas import tpu as pltpu

D_IN = 784                 # 28*28, kept unpadded (full-dim block; MXU pads K internally)
D_H, D_H_P = 300, 384      # hidden padded to 3*128 lanes
D_OUT, D_OUT_P = 10, 128   # logits padded to one full lane group -> unmasked stores


def _round_up(n, m):
    return ((n + m - 1) // m) * m


def net5_kernel(seed_ref,                        # SMEM (1,) int32
                x_ref,                           # (TB, 784) bf16
                w1_ref, b1_ref,                  # (784, 384) bf16, (1, 384) f32
                w2_ref, b2_ref,                  # (384, 384) bf16, (1, 384) f32
                w3_ref, b3_ref,                  # (384, 384) bf16, (1, 384) f32
                w4_ref, b4_ref,                  # (384, 384) bf16, (1, 384) f32
                w5_ref, b5_ref,                  # (384, 128) bf16, (1, 128) f32
                o_ref,                           # (TB, 128) f32
                *, training, use_hw_prng):
    bits = None
    if training:
        # One (TB, 384) draw of random bits per tile; bit (k-1) of each word is
        # the layer-k dropout mask (4x less mask-generation work than hashing
        # once per dropout layer).
        mask_shape = (x_ref.shape[0], D_H_P)
        if use_hw_prng:
            pltpu.prng_seed(seed_ref[0], pl.program_id(0))
            bits = pltpu.prng_random_bits(mask_shape)
        else:
            # Portable counter-hash fallback (interpret mode / non-TPU backend).
            salt = (seed_ref[0].astype(jnp.uint32) * jnp.uint32(0x9E3779B1)) ^ (
                pl.program_id(0).astype(jnp.uint32) * jnp.uint32(0x27D4EB2F))
            r = jax.lax.broadcasted_iota(jnp.uint32, mask_shape, 0)
            c = jax.lax.broadcasted_iota(jnp.uint32, mask_shape, 1)
            h = (r * jnp.uint32(0x9E3779B1)) ^ (c * jnp.uint32(0x85EBCA77)) ^ salt
            h = h ^ (h >> 16)
            h = h * jnp.uint32(0x7FEB352D)
            h = h ^ (h >> 15)
            h = h * jnp.uint32(0x846CA68B)
            h = h ^ (h >> 16)
            bits = h

    def maybe_drop(h, layer):
        # p=0.5 dropout: zero where the chosen bit is set, scale survivors by 2.
        if not training:
            return h
        keep = (bits & (1 << (layer - 1))) == 0
        return jnp.where(keep, h * jnp.float32(2.0), jnp.float32(0.0))

    # fc1 -> tanh -> dropout   (x already bf16; f32 accumulation on the MXU)
    h = jnp.dot(x_ref[...], w1_ref[...],
                preferred_element_type=jnp.float32) + b1_ref[...]
    h = maybe_drop(jnp.tanh(h), 1)

    # fc2 -> tanh -> dropout
    h = jnp.dot(h.astype(jnp.bfloat16), w2_ref[...],
                preferred_element_type=jnp.float32) + b2_ref[...]
    h = maybe_drop(jnp.tanh(h), 2)

    # fc3 -> relu -> dropout
    h = jnp.dot(h.astype(jnp.bfloat16), w3_ref[...],
                preferred_element_type=jnp.float32) + b3_ref[...]
    h = maybe_drop(jnp.maximum(h, jnp.float32(0.0)), 3)

    # fc4 -> relu -> dropout
    h = jnp.dot(h.astype(jnp.bfloat16), w4_ref[...],
                preferred_element_type=jnp.float32) + b4_ref[...]
    h = maybe_drop(jnp.maximum(h, jnp.float32(0.0)), 4)

    # fc5 (logits; padded lanes 10..127 are exactly zero)
    o_ref[...] = jnp.dot(h.astype(jnp.bfloat16), w5_ref[...],
                         preferred_element_type=jnp.float32) + b5_ref[...]


def net5_forward(x_nchw, params, seed=0, training=True, batch_tile=1024,
                 use_hw_prng=None):
    """x_nchw: (B, 1, 28, 28) float32. Returns (B, 10) float32 logits."""
    B = x_nchw.shape[0]
    if use_hw_prng is None:
        # HW PRNG lowers through Mosaic on TPU; fall back to the jnp hash
        # elsewhere (e.g. CPU interpret mode).
        use_hw_prng = jax.default_backend() == "tpu"

    # Single fused reshape + bf16 cast; no 784->896 pad pass (saves an extra
    # HBM round trip over the input before the kernel runs).
    x = x_nchw.reshape(B, D_IN).astype(jnp.bfloat16)

    # Batch tiling: round B up to a sublane multiple, split into n equal tiles.
    # n is made even when >1 so both v7x TensorCores get work (no-op on
    # v5e/v6e); tb is clamped to the (rounded) batch for small B, so awkward
    # batch sizes (e.g. B = batch_tile + 1) don't double the grid work.
    b8 = _round_up(B, 8)
    n_tiles = pl.cdiv(b8, batch_tile)
    if n_tiles > 1 and n_tiles % 2 == 1:
        n_tiles += 1
    tb = _round_up(pl.cdiv(b8, n_tiles), 8)
    b_pad = n_tiles * tb
    if b_pad != B:
        x = jnp.pad(x, ((0, b_pad - B), (0, 0)))

    seed_arr = jnp.array([seed], dtype=jnp.int32)
    (w1, b1), (w2, b2), (w3, b3), (w4, b4), (w5, b5) = params

    def const_spec(arr):
        # Full-array block with a constant index map: DMA'd once, then
        # VMEM-resident across every batch tile (no re-DMA per grid step).
        return pl.BlockSpec(arr.shape, lambda i: (0, 0))

    in_specs = [
        pl.BlockSpec(memory_space=pltpu.MemorySpace.SMEM),    # seed scalar
        pl.BlockSpec((tb, D_IN), lambda i: (i, 0)),           # x batch tile (bf16)
        const_spec(w1), const_spec(b1),
        const_spec(w2), const_spec(b2),
        const_spec(w3), const_spec(b3),
        const_spec(w4), const_spec(b4),
        const_spec(w5), const_spec(b5),
    ]
    out_spec = pl.BlockSpec((tb, D_OUT_P), lambda i: (i, 0))  # lane-dense 128-wide

    kernel = functools.partial(net5_kernel, training=training,
                               use_hw_prng=use_hw_prng)
    out = pl.pallas_call(
        kernel,
        out_shape=jax.ShapeDtypeStruct((b_pad, D_OUT_P), jnp.float32),
        grid=(n_tiles,),
        in_specs=in_specs,
        out_specs=out_spec,
        compiler_params=pltpu.CompilerParams(
            dimension_semantics=("parallel",)),
    )(seed_arr, x, w1, b1, w2, b2, w3, b3, w4, b4, w5, b5)

    return out[:B, :D_OUT]


def init_params(key):
    """PyTorch nn.Linear-style init: U(-1/sqrt(in), 1/sqrt(in)).

    Weights are stored (in, out) (transposed vs PyTorch), output dims are
    zero-padded to lane multiples (300->384, 10->128) and cast to bf16 for
    native MXU rate; biases stay f32 (added to the f32 accumulator).  Padded
    weight columns / bias entries are exactly zero, so padded hidden lanes
    stay 0 through tanh/relu/dropout and padded logits are sliced away.
    fc1's K stays 784 (no input padding needed).
    """
    dims = [(D_IN, D_H), (D_H, D_H), (D_H, D_H), (D_H, D_H), (D_H, D_OUT)]
    pads = [(D_IN, D_H_P), (D_H_P, D_H_P), (D_H_P, D_H_P),
            (D_H_P, D_H_P), (D_H_P, D_OUT_P)]
    params = []
    for (din, dout), (dinp, doutp) in zip(dims, pads):
        key, kw, kb = jax.random.split(key, 3)
        bound = 1.0 / (din ** 0.5)
        w = jax.random.uniform(kw, (din, dout), jnp.float32, -bound, bound)
        b = jax.random.uniform(kb, (1, dout), jnp.float32, -bound, bound)
        w = jnp.pad(w, ((0, dinp - din), (0, doutp - dout))).astype(jnp.bfloat16)
        b = jnp.pad(b, ((0, 0), (0, doutp - dout)))
        params.append((w, b))
    return params


if __name__ == "__main__":
    key = jax.random.PRNGKey(0)
    kx, kp = jax.random.split(key)

    B = 8
    x = jax.random.normal(kx, (B, 1, 28, 28), dtype=jnp.float32)
    params = init_params(kp)

    # The spec calls F.dropout(x, 0.5) without training=, so dropout is active
    # regardless of module mode -> training=True matches the reference forward.
    logits = net5_forward(x, params, seed=0, training=True)
    jax.block_until_ready(logits)
    assert logits.shape == (B, 10)
    assert logits.dtype == jnp.float32
    assert bool(jnp.all(jnp.isfinite(logits)))

    # Also exercise the no-dropout path once.
    logits_eval = net5_forward(x, params, seed=0, training=False)
    jax.block_until_ready(logits_eval)
    assert logits_eval.shape == (B, 10)
    assert bool(jnp.all(jnp.isfinite(logits_eval)))

    print("KERNEL_OK")
</pallas_src>

<mosaic_0001>
module attributes {stable_mosaic.version = 11 : i64} {
  func.func @net5_kernel(%arg0: i32, %arg1: memref<1xi32, #tpu.memory_space<smem>>, %arg2: memref<8x784xbf16, #tpu.memory_space<vmem>>, %arg3: memref<784x384xbf16, #tpu.memory_space<vmem>>, %arg4: memref<1x384xf32, #tpu.memory_space<vmem>>, %arg5: memref<384x384xbf16, #tpu.memory_space<vmem>>, %arg6: memref<1x384xf32, #tpu.memory_space<vmem>>, %arg7: memref<384x384xbf16, #tpu.memory_space<vmem>>, %arg8: memref<1x384xf32, #tpu.memory_space<vmem>>, %arg9: memref<384x384xbf16, #tpu.memory_space<vmem>>, %arg10: memref<1x384xf32, #tpu.memory_space<vmem>>, %arg11: memref<384x128xbf16, #tpu.memory_space<vmem>>, %arg12: memref<1x128xf32, #tpu.memory_space<vmem>>, %arg13: memref<8x128xf32, #tpu.memory_space<vmem>>) attributes {dimension_semantics = [#tpu.dimension_semantics<parallel>], iteration_bounds = array<i64: 1>, scalar_prefetch = 0 : i64, scratch_operands = 0 : i64, tpu.core_type = #tpu.core_type<tc>, window_params = [{transform_indices = @transform_0, window_bounds = array<i64: 1>}, {transform_indices = @transform_1, window_bounds = array<i64: 8, 784>}, {pipeline_mode = #tpu.pipeline_mode<synchronous>, transform_indices = @transform_2, window_bounds = array<i64: 784, 384>}, {pipeline_mode = #tpu.pipeline_mode<synchronous>, transform_indices = @transform_3, window_bounds = array<i64: 1, 384>}, {pipeline_mode = #tpu.pipeline_mode<synchronous>, transform_indices = @transform_4, window_bounds = array<i64: 384, 384>}, {pipeline_mode = #tpu.pipeline_mode<synchronous>, transform_indices = @transform_5, window_bounds = array<i64: 1, 384>}, {pipeline_mode = #tpu.pipeline_mode<synchronous>, transform_indices = @transform_6, window_bounds = array<i64: 384, 384>}, {pipeline_mode = #tpu.pipeline_mode<synchronous>, transform_indices = @transform_7, window_bounds = array<i64: 1, 384>}, {pipeline_mode = #tpu.pipeline_mode<synchronous>, transform_indices = @transform_8, window_bounds = array<i64: 384, 384>}, {pipeline_mode = #tpu.pipeline_mode<synchronous>, transform_indices = @transform_9, window_bounds = array<i64: 1, 384>}, {pipeline_mode = #tpu.pipeline_mode<synchronous>, transform_indices = @transform_10, window_bounds = array<i64: 384, 128>}, {pipeline_mode = #tpu.pipeline_mode<synchronous>, transform_indices = @transform_11, window_bounds = array<i64: 1, 128>}, {transform_indices = @transform_12, window_bounds = array<i64: 8, 128>}]} {
    %c0 = arith.constant 0 : index
    %0 = memref.load %arg1[%c0] : memref<1xi32, #tpu.memory_space<smem>>
    %c-1640531535_i32 = arith.constant -1640531535 : i32
    %1 = arith.muli %0, %c-1640531535_i32 : i32
    %c668265263_i32 = arith.constant 668265263 : i32
    %2 = arith.muli %arg0, %c668265263_i32 : i32
    %3 = arith.xori %1, %2 : i32
    %4 = tpu.iota {dimensions = array<i32: 0>} : vector<8x384xi32>
    %5 = tpu.iota {dimensions = array<i32: 1>} : vector<8x384xi32>
    %c-1640531535_i32_0 = arith.constant -1640531535 : i32
    %6 = vector.broadcast %c-1640531535_i32_0 : i32 to vector<8x384xi32>
    %7 = arith.muli %4, %6 : vector<8x384xi32>
    %c-2048144777_i32 = arith.constant -2048144777 : i32
    %8 = vector.broadcast %c-2048144777_i32 : i32 to vector<8x384xi32>
    %9 = arith.muli %5, %8 : vector<8x384xi32>
    %10 = arith.xori %7, %9 : vector<8x384xi32>
    %11 = vector.broadcast %3 : i32 to vector<8x384xi32>
    %12 = arith.xori %10, %11 : vector<8x384xi32>
    %c16_i32 = arith.constant 16 : i32
    %13 = vector.broadcast %c16_i32 : i32 to vector<8x384xi32>
    %14 = arith.shrui %12, %13 : vector<8x384xi32>
    %15 = arith.xori %12, %14 : vector<8x384xi32>
    %c2146121005_i32 = arith.constant 2146121005 : i32
    %16 = vector.broadcast %c2146121005_i32 : i32 to vector<8x384xi32>
    %17 = arith.muli %15, %16 : vector<8x384xi32>
    %c15_i32 = arith.constant 15 : i32
    %18 = vector.broadcast %c15_i32 : i32 to vector<8x384xi32>
    %19 = arith.shrui %17, %18 : vector<8x384xi32>
    %20 = arith.xori %17, %19 : vector<8x384xi32>
    %c-2073254261_i32 = arith.constant -2073254261 : i32
    %21 = vector.broadcast %c-2073254261_i32 : i32 to vector<8x384xi32>
    %22 = arith.muli %20, %21 : vector<8x384xi32>
    %c16_i32_1 = arith.constant 16 : i32
    %23 = vector.broadcast %c16_i32_1 : i32 to vector<8x384xi32>
    %24 = arith.shrui %22, %23 : vector<8x384xi32>
    %25 = arith.xori %22, %24 : vector<8x384xi32>
    %c0_2 = arith.constant 0 : index
    %c0_3 = arith.constant 0 : index
    %26 = vector.load %arg2[%c0_2, %c0_3] : memref<8x784xbf16, #tpu.memory_space<vmem>>, vector<8x784xbf16>
    %c0_4 = arith.constant 0 : index
    %c0_5 = arith.constant 0 : index
    %27 = vector.load %arg3[%c0_4, %c0_5] : memref<784x384xbf16, #tpu.memory_space<vmem>>, vector<784x384xbf16>
    %cst = arith.constant dense<0.000000e+00> : vector<8x384xf32>
    %28 = tpu.matmul %26, %27, %cst {dimension_numbers = #tpu.dot_dimension_numbers<[1], [0], [0], [1], [0, 0, 1, 1], [], []>} : vector<8x784xbf16>, vector<784x384xbf16>, vector<8x384xf32> -> vector<8x384xf32>
    %c0_6 = arith.constant 0 : index
    %c0_7 = arith.constant 0 : index
    %29 = vector.load %arg4[%c0_6, %c0_7] : memref<1x384xf32, #tpu.memory_space<vmem>>, vector<1x384xf32>
    %30 = vector.broadcast %29 : vector<1x384xf32> to vector<8x384xf32>
    %31 = arith.addf %28, %30 : vector<8x384xf32>
    %32 = math.tanh %31 : vector<8x384xf32>
    %c1_i32 = arith.constant 1 : i32
    %33 = vector.broadcast %c1_i32 : i32 to vector<8x384xi32>
    %34 = arith.andi %25, %33 : vector<8x384xi32>
    %c0_i32 = arith.constant 0 : i32
    %35 = vector.broadcast %c0_i32 : i32 to vector<8x384xi32>
    %36 = arith.cmpi eq, %34, %35 : vector<8x384xi32>
    %cst_8 = arith.constant 2.000000e+00 : f32
    %37 = vector.broadcast %cst_8 : f32 to vector<8x384xf32>
    %38 = arith.mulf %32, %37 : vector<8x384xf32>
    %cst_9 = arith.constant 0.000000e+00 : f32
    %39 = vector.broadcast %cst_9 : f32 to vector<8x384xf32>
    %40 = arith.select %36, %38, %39 : vector<8x384xi1>, vector<8x384xf32>
    %41 = arith.truncf %40 : vector<8x384xf32> to vector<8x384xbf16>
    %c0_10 = arith.constant 0 : index
    %c0_11 = arith.constant 0 : index
    %42 = vector.load %arg5[%c0_10, %c0_11] : memref<384x384xbf16, #tpu.memory_space<vmem>>, vector<384x384xbf16>
    %cst_12 = arith.constant dense<0.000000e+00> : vector<8x384xf32>
    %43 = tpu.matmul %41, %42, %cst_12 {dimension_numbers = #tpu.dot_dimension_numbers<[1], [0], [0], [1], [0, 0, 1, 1], [], []>} : vector<8x384xbf16>, vector<384x384xbf16>, vector<8x384xf32> -> vector<8x384xf32>
    %c0_13 = arith.constant 0 : index
    %c0_14 = arith.constant 0 : index
    %44 = vector.load %arg6[%c0_13, %c0_14] : memref<1x384xf32, #tpu.memory_space<vmem>>, vector<1x384xf32>
    %45 = vector.broadcast %44 : vector<1x384xf32> to vector<8x384xf32>
    %46 = arith.addf %43, %45 : vector<8x384xf32>
    %47 = math.tanh %46 : vector<8x384xf32>
    %c2_i32 = arith.constant 2 : i32
    %48 = vector.broadcast %c2_i32 : i32 to vector<8x384xi32>
    %49 = arith.andi %25, %48 : vector<8x384xi32>
    %c0_i32_15 = arith.constant 0 : i32
    %50 = vector.broadcast %c0_i32_15 : i32 to vector<8x384xi32>
    %51 = arith.cmpi eq, %49, %50 : vector<8x384xi32>
    %cst_16 = arith.constant 2.000000e+00 : f32
    %52 = vector.broadcast %cst_16 : f32 to vector<8x384xf32>
    %53 = arith.mulf %47, %52 : vector<8x384xf32>
    %cst_17 = arith.constant 0.000000e+00 : f32
    %54 = vector.broadcast %cst_17 : f32 to vector<8x384xf32>
    %55 = arith.select %51, %53, %54 : vector<8x384xi1>, vector<8x384xf32>
    %56 = arith.truncf %55 : vector<8x384xf32> to vector<8x384xbf16>
    %c0_18 = arith.constant 0 : index
    %c0_19 = arith.constant 0 : index
    %57 = vector.load %arg7[%c0_18, %c0_19] : memref<384x384xbf16, #tpu.memory_space<vmem>>, vector<384x384xbf16>
    %cst_20 = arith.constant dense<0.000000e+00> : vector<8x384xf32>
    %58 = tpu.matmul %56, %57, %cst_20 {dimension_numbers = #tpu.dot_dimension_numbers<[1], [0], [0], [1], [0, 0, 1, 1], [], []>} : vector<8x384xbf16>, vector<384x384xbf16>, vector<8x384xf32> -> vector<8x384xf32>
    %c0_21 = arith.constant 0 : index
    %c0_22 = arith.constant 0 : index
    %59 = vector.load %arg8[%c0_21, %c0_22] : memref<1x384xf32, #tpu.memory_space<vmem>>, vector<1x384xf32>
    %60 = vector.broadcast %59 : vector<1x384xf32> to vector<8x384xf32>
    %61 = arith.addf %58, %60 : vector<8x384xf32>
    %cst_23 = arith.constant 0.000000e+00 : f32
    %62 = vector.broadcast %cst_23 : f32 to vector<8x384xf32>
    %63 = arith.maximumf %61, %62 : vector<8x384xf32>
    %c4_i32 = arith.constant 4 : i32
    %64 = vector.broadcast %c4_i32 : i32 to vector<8x384xi32>
    %65 = arith.andi %25, %64 : vector<8x384xi32>
    %c0_i32_24 = arith.constant 0 : i32
    %66 = vector.broadcast %c0_i32_24 : i32 to vector<8x384xi32>
    %67 = arith.cmpi eq, %65, %66 : vector<8x384xi32>
    %cst_25 = arith.constant 2.000000e+00 : f32
    %68 = vector.broadcast %cst_25 : f32 to vector<8x384xf32>
    %69 = arith.mulf %63, %68 : vector<8x384xf32>
    %cst_26 = arith.constant 0.000000e+00 : f32
    %70 = vector.broadcast %cst_26 : f32 to vector<8x384xf32>
    %71 = arith.select %67, %69, %70 : vector<8x384xi1>, vector<8x384xf32>
    %72 = arith.truncf %71 : vector<8x384xf32> to vector<8x384xbf16>
    %c0_27 = arith.constant 0 : index
    %c0_28 = arith.constant 0 : index
    %73 = vector.load %arg9[%c0_27, %c0_28] : memref<384x384xbf16, #tpu.memory_space<vmem>>, vector<384x384xbf16>
    %cst_29 = arith.constant dense<0.000000e+00> : vector<8x384xf32>
    %74 = tpu.matmul %72, %73, %cst_29 {dimension_numbers = #tpu.dot_dimension_numbers<[1], [0], [0], [1], [0, 0, 1, 1], [], []>} : vector<8x384xbf16>, vector<384x384xbf16>, vector<8x384xf32> -> vector<8x384xf32>
    %c0_30 = arith.constant 0 : index
    %c0_31 = arith.constant 0 : index
    %75 = vector.load %arg10[%c0_30, %c0_31] : memref<1x384xf32, #tpu.memory_space<vmem>>, vector<1x384xf32>
    %76 = vector.broadcast %75 : vector<1x384xf32> to vector<8x384xf32>
    %77 = arith.addf %74, %76 : vector<8x384xf32>
    %cst_32 = arith.constant 0.000000e+00 : f32
    %78 = vector.broadcast %cst_32 : f32 to vector<8x384xf32>
    %79 = arith.maximumf %77, %78 : vector<8x384xf32>
    %c8_i32 = arith.constant 8 : i32
    %80 = vector.broadcast %c8_i32 : i32 to vector<8x384xi32>
    %81 = arith.andi %25, %80 : vector<8x384xi32>
    %c0_i32_33 = arith.constant 0 : i32
    %82 = vector.broadcast %c0_i32_33 : i32 to vector<8x384xi32>
    %83 = arith.cmpi eq, %81, %82 : vector<8x384xi32>
    %cst_34 = arith.constant 2.000000e+00 : f32
    %84 = vector.broadcast %cst_34 : f32 to vector<8x384xf32>
    %85 = arith.mulf %79, %84 : vector<8x384xf32>
    %cst_35 = arith.constant 0.000000e+00 : f32
    %86 = vector.broadcast %cst_35 : f32 to vector<8x384xf32>
    %87 = arith.select %83, %85, %86 : vector<8x384xi1>, vector<8x384xf32>
    %88 = arith.truncf %87 : vector<8x384xf32> to vector<8x384xbf16>
    %c0_36 = arith.constant 0 : index
    %c0_37 = arith.constant 0 : index
    %89 = vector.load %arg11[%c0_36, %c0_37] : memref<384x128xbf16, #tpu.memory_space<vmem>>, vector<384x128xbf16>
    %cst_38 = arith.constant dense<0.000000e+00> : vector<8x128xf32>
    %90 = tpu.matmul %88, %89, %cst_38 {dimension_numbers = #tpu.dot_dimension_numbers<[1], [0], [0], [1], [0, 0, 1, 1], [], []>} : vector<8x384xbf16>, vector<384x128xbf16>, vector<8x128xf32> -> vector<8x128xf32>
    %c0_39 = arith.constant 0 : index
    %c0_40 = arith.constant 0 : index
    %91 = vector.load %arg12[%c0_39, %c0_40] : memref<1x128xf32, #tpu.memory_space<vmem>>, vector<1x128xf32>
    %92 = vector.broadcast %91 : vector<1x128xf32> to vector<8x128xf32>
    %93 = arith.addf %90, %92 : vector<8x128xf32>
    %c0_41 = arith.constant 0 : index
    %c0_42 = arith.constant 0 : index
    %94 = vector.load %arg13[%c0_41, %c0_42] : memref<8x128xf32, #tpu.memory_space<vmem>>, vector<8x128xf32>
    tpu.vector_store %arg13[%c0_41, %c0_42], %93 {strides = array<i32>} : memref<8x128xf32, #tpu.memory_space<vmem>>, vector<8x128xf32>,
    return
  }
  func.func @transform_0(%arg0: i32) -> i32 {
    %c0_i32 = arith.constant 0 : i32
    %c0_i32_0 = arith.constant 0 : i32
    return %c0_i32 : i32
  }
  func.func @transform_1(%arg0: i32) -> (i32, i32) {
    %c0_i32 = arith.constant 0 : i32
    %c0_i32_0 = arith.constant 0 : i32
    return %arg0, %c0_i32 : i32, i32
  }
  func.func @transform_2(%arg0: i32) -> (i32, i32) {
    %c0_i32 = arith.constant 0 : i32
    %c0_i32_0 = arith.constant 0 : i32
    %c0_i32_1 = arith.constant 0 : i32
    return %c0_i32, %c0_i32_0 : i32, i32
  }
  func.func @transform_3(%arg0: i32) -> (i32, i32) {
    %c0_i32 = arith.constant 0 : i32
    %c0_i32_0 = arith.constant 0 : i32
    %c0_i32_1 = arith.constant 0 : i32
    return %c0_i32, %c0_i32_0 : i32, i32
  }
  func.func @transform_4(%arg0: i32) -> (i32, i32) {
    %c0_i32 = arith.constant 0 : i32
    %c0_i32_0 = arith.constant 0 : i32
    %c0_i32_1 = arith.constant 0 : i32
    return %c0_i32, %c0_i32_0 : i32, i32
  }
  func.func @transform_5(%arg0: i32) -> (i32, i32) {
    %c0_i32 = arith.constant 0 : i32
    %c0_i32_0 = arith.constant 0 : i32
    %c0_i32_1 = arith.constant 0 : i32
    return %c0_i32, %c0_i32_0 : i32, i32
  }
  func.func @transform_6(%arg0: i32) -> (i32, i32) {
    %c0_i32 = arith.constant 0 : i32
    %c0_i32_0 = arith.constant 0 : i32
    %c0_i32_1 = arith.constant 0 : i32
    return %c0_i32, %c0_i32_0 : i32, i32
  }
  func.func @transform_7(%arg0: i32) -> (i32, i32) {
    %c0_i32 = arith.constant 0 : i32
    %c0_i32_0 = arith.constant 0 : i32
    %c0_i32_1 = arith.constant 0 : i32
    return %c0_i32, %c0_i32_0 : i32, i32
  }
  func.func @transform_8(%arg0: i32) -> (i32, i32) {
    %c0_i32 = arith.constant 0 : i32
    %c0_i32_0 = arith.constant 0 : i32
    %c0_i32_1 = arith.constant 0 : i32
    return %c0_i32, %c0_i32_0 : i32, i32
  }
  func.func @transform_9(%arg0: i32) -> (i32, i32) {
    %c0_i32 = arith.constant 0 : i32
    %c0_i32_0 = arith.constant 0 : i32
    %c0_i32_1 = arith.constant 0 : i32
    return %c0_i32, %c0_i32_0 : i32, i32
  }
  func.func @transform_10(%arg0: i32) -> (i32, i32) {
    %c0_i32 = arith.constant 0 : i32
    %c0_i32_0 = arith.constant 0 : i32
    %c0_i32_1 = arith.constant 0 : i32
    return %c0_i32, %c0_i32_0 : i32, i32
  }
  func.func @transform_11(%arg0: i32) -> (i32, i32) {
    %c0_i32 = arith.constant 0 : i32
    %c0_i32_0 = arith.constant 0 : i32
    %c0_i32_1 = arith.constant 0 : i32
    return %c0_i32, %c0_i32_0 : i32, i32
  }
  func.func @transform_12(%arg0: i32) -> (i32, i32) {
    %c0_i32 = arith.constant 0 : i32
    %c0_i32_0 = arith.constant 0 : i32
    return %arg0, %c0_i32 : i32, i32
  }
}

</mosaic_0001>

<llo_original>
// kernel: tpu_custom_call.1
$region0: #{tpu_custom_call.1}
  #allocation0 [shape = 'u32[]', space=smem, size = 0x4, offset = 0x4, fixed_abs, tag = 'smem constant byte address 0x4 - core index']
  #allocation1 [shape = 'u32[72,128]{1,0:T(1,128)}', space=vmem, size = 0x9000, scoped, tag = 'internal scratch']
  #allocation2 [shape = 's32[1]{0:T(128)S(6)}', space=smem, size = 0x200, scoped, tag = 'scoped memory for tpu_custom_call.1']
  %s0 = inlined_call_operand.<no memory space> [shape: s32[1], index: 0, kind: input, shape index: {}]
  %s1 = inlined_call_operand.hbm [shape: bf16[8,784], index: 1, kind: input, shape index: {}]
  %s2 = inlined_call_operand.hbm [shape: bf16[784,384], index: 2, kind: input, shape index: {}]
  %s3 = inlined_call_operand.vmem [shape: f32[1,384], index: 3, kind: input, shape index: {}]
  %s4 = inlined_call_operand.hbm [shape: bf16[384,384], index: 4, kind: input, shape index: {}]
  %s5 = inlined_call_operand.hbm [shape: f32[1,384], index: 5, kind: input, shape index: {}]
  %s6 = inlined_call_operand.hbm [shape: bf16[384,384], index: 6, kind: input, shape index: {}]
  %s7 = inlined_call_operand.vmem [shape: f32[1,384], index: 7, kind: input, shape index: {}]
  %s8 = inlined_call_operand.hbm [shape: bf16[384,384], index: 8, kind: input, shape index: {}]
  %s9 = inlined_call_operand.vmem [shape: f32[1,384], index: 9, kind: input, shape index: {}]
  %s10 = inlined_call_operand.hbm [shape: bf16[384,128], index: 10, kind: input, shape index: {}]
  %s11 = inlined_call_operand.vmem [shape: f32[1,128], index: 11, kind: input, shape index: {}]
  %s12 = inlined_call_operand.hbm [shape: f32[8,128], index: 12, kind: output, shape index: {}]
  %s13 = sld [smem:[#allocation0]]
  $region86: #{tpu_custom_call.1} parent=0
    _
  %s15 = ssub.s32 1, %s13
  %s16 = scalar_select 0, %s15, %s13
  %17 = sst [smem:[#allocation2]] %s0
  $region1: #{tpu_custom_call.1} parent=0
    #allocation3 [shape = 'u8[14336]{0}', space=vmem, size = 0x3800, scoped, tag = 'input window, operand 1, single buffered']
    #allocation4 [shape = 's32[1]{0}', space=sflag, size = 0x4, scoped, tag = 'scoped memory for tpu_custom_call.1']
    #allocation5 [shape = 's32[1]{0}', space=sflag, size = 0x4, scoped, tag = 'scoped memory for tpu_custom_call.1']
    #allocation6 [shape = 'u8[602112]{0}', space=vmem, size = 0x93000, scoped, tag = 'input window, operand 2, single buffered']
    #allocation7 [shape = 's32[1]{0}', space=sflag, size = 0x4, scoped, tag = 'scoped memory for tpu_custom_call.1']
    #allocation8 [shape = 'u8[294912]{0}', space=vmem, size = 0x48000, scoped, tag = 'input window, operand 4, single buffered']
    #allocation9 [shape = 'u8[1536]{0}', space=vmem, size = 0x800, scoped, tag = 'input window, operand 5, single buffered']
    #allocation10 [shape = 's32[1]{0}', space=sflag, size = 0x4, scoped, tag = 'scoped memory for tpu_custom_call.1']
    #allocation11 [shape = 'u8[294912]{0}', space=vmem, size = 0x48000, scoped, tag = 'input window, operand 6, single buffered']
    #allocation12 [shape = 'u8[294912]{0}', space=vmem, size = 0x48000, scoped, tag = 'input window, operand 8, single buffered']
    #allocation13 [shape = 's32[1]{0}', space=sflag, size = 0x4, scoped, tag = 'scoped memory for tpu_custom_call.1']
    #allocation14 [shape = 'u8[98304]{0}', space=vmem, size = 0x18000, scoped, tag = 'input window, operand 10, single buffered']
    #allocation15 [shape = 'u8[4096]{0}', space=vmem, size = 0x1000, scoped, tag = 'output window, operand 0, single buffered']
    %18 = vsyncpa [#allocation4], 0
    %19 = vsyncpa [#allocation7], 0
    %20 = vsyncpa [#allocation10], 0
    %21 = vsyncpa [#allocation13], 0
    %22 = vsyncpa [#allocation5], 0
    // Predicated region
    $region2: #{tpu_custom_call.1} parent=1 // pred_check
      _
    $region3: #{tpu_custom_call.1} parent=1 // pred_check_branch
      %24 = sbr.rel (0) target = $region5
    $region4: #{tpu_custom_call.1} parent=1 // pred_region
      _
    $region5: #{tpu_custom_call.1} parent=1 // pred_fallthru
      _
    // Predicated region
    $region6: #{tpu_custom_call.1} parent=1 // pred_check
      _
    $region7: #{tpu_custom_call.1} parent=1 // pred_check_branch
      %26 = sbr.rel (0) target = $region9
    $region8: #{tpu_custom_call.1} parent=1 // pred_region
      %28 = vsyncadd [#allocation4], 0
      %s30 = sshll.u32 %s1, 4
      %s31 = int_to_ptr.hbm [resolvable:$true] %s30
      %s32 = sshll.u32 [#allocation3], 4
      %s33 = int_to_ptr.vmem [resolvable:$true] %s32
      %35 = dma.hbm_to_vmem [thread:$0]  %s31, 448, %s33, [#allocation4]
    $region9: #{tpu_custom_call.1} parent=1 // pred_fallthru
      _
    // Predicated region
    $region10: #{tpu_custom_call.1} parent=1 // pred_check
      _
    $region11: #{tpu_custom_call.1} parent=1 // pred_check_branch
      %37 = sbr.rel (0) target = $region13
    $region12: #{tpu_custom_call.1} parent=1 // pred_region
      %39 = vsyncadd [#allocation7], 0
      %s40 = sshll.u32 %s2, 4
      %s41 = int_to_ptr.hbm [resolvable:$true] %s40
      %s42 = sshll.u32 [#allocation6], 4
      %s43 = int_to_ptr.vmem [resolvable:$true] %s42
      %48 = dma.hbm_to_vmem [thread:$0]  %s41, 18816, %s43, [#allocation7], 192, 192, 12
    $region13: #{tpu_custom_call.1} parent=1 // pred_fallthru
      _
    // Predicated region
    $region14: #{tpu_custom_call.1} parent=1 // pred_check
      _
    $region15: #{tpu_custom_call.1} parent=1 // pred_check_branch
      %50 = sbr.rel (0) target = $region17
    $region16: #{tpu_custom_call.1} parent=1 // pred_region
      _
    $region17: #{tpu_custom_call.1} parent=1 // pred_fallthru
      _
    // Predicated region
    $region18: #{tpu_custom_call.1} parent=1 // pred_check
      _
    $region19: #{tpu_custom_call.1} parent=1 // pred_check_branch
      %52 = sbr.rel (0) target = $region21
    $region20: #{tpu_custom_call.1} parent=1 // pred_region
      %54 = vsyncadd [#allocation7], 0
      %s55 = sshll.u32 %s4, 4
      %s56 = int_to_ptr.hbm [resolvable:$true] %s55
      %s57 = sshll.u32 [#allocation8], 4
      %s58 = int_to_ptr.vmem [resolvable:$true] %s57
      %63 = dma.hbm_to_vmem [thread:$0]  %s56, 9216, %s58, [#allocation7], 192, 192, 12
    $region21: #{tpu_custom_call.1} parent=1 // pred_fallthru
      _
    // Predicated region
    $region22: #{tpu_custom_call.1} parent=1 // pred_check
      _
    $region23: #{tpu_custom_call.1} parent=1 // pred_check_branch
      %65 = sbr.rel (0) target = $region25
    $region24: #{tpu_custom_call.1} parent=1 // pred_region
      %67 = vsyncadd [#allocation10], 0
      %s69 = sshll.u32 %s5, 4
      %s70 = int_to_ptr.hbm [resolvable:$true] %s69
      %s71 = sshll.u32 [#allocation9], 4
      %s72 = int_to_ptr.vmem [resolvable:$true] %s71
      %74 = dma.hbm_to_vmem [thread:$0]  %s70, 48, %s72, [#allocation10]
    $region25: #{tpu_custom_call.1} parent=1 // pred_fallthru
      _
    // Predicated region
    $region26: #{tpu_custom_call.1} parent=1 // pred_check
      _
    $region27: #{tpu_custom_call.1} parent=1 // pred_check_branch
      %76 = sbr.rel (0) target = $region29
    $region28: #{tpu_custom_call.1} parent=1 // pred_region
      %78 = vsyncadd [#allocation10], 0
      %s79 = sshll.u32 %s6, 4
      %s80 = int_to_ptr.hbm [resolvable:$true] %s79
      %s81 = sshll.u32 [#allocation11], 4
      %s82 = int_to_ptr.vmem [resolvable:$true] %s81
      %87 = dma.hbm_to_vmem [thread:$0]  %s80, 9216, %s82, [#allocation10], 192, 192, 12
    $region29: #{tpu_custom_call.1} parent=1 // pred_fallthru
      _
    // Predicated region
    $region30: #{tpu_custom_call.1} parent=1 // pred_check
      _
    $region31: #{tpu_custom_call.1} parent=1 // pred_check_branch
      %89 = sbr.rel (0) target = $region33
    $region32: #{tpu_custom_call.1} parent=1 // pred_region
      _
    $region33: #{tpu_custom_call.1} parent=1 // pred_fallthru
      _
    // Predicated region
    $region34: #{tpu_custom_call.1} parent=1 // pred_check
      _
    $region35: #{tpu_custom_call.1} parent=1 // pred_check_branch
      %91 = sbr.rel (0) target = $region37
    $region36: #{tpu_custom_call.1} parent=1 // pred_region
      %93 = vsyncadd [#allocation13], 0
      %s94 = sshll.u32 %s8, 4
      %s95 = int_to_ptr.hbm [resolvable:$true] %s94
      %s96 = sshll.u32 [#allocation12], 4
      %s97 = int_to_ptr.vmem [resolvable:$true] %s96
      %102 = dma.hbm_to_vmem [thread:$0]  %s95, 9216, %s97, [#allocation13], 192, 192, 12
    $region37: #{tpu_custom_call.1} parent=1 // pred_fallthru
      _
    // Predicated region
    $region38: #{tpu_custom_call.1} parent=1 // pred_check
      _
    $region39: #{tpu_custom_call.1} parent=1 // pred_check_branch
      %104 = sbr.rel (0) target = $region41
    $region40: #{tpu_custom_call.1} parent=1 // pred_region
      _
    $region41: #{tpu_custom_call.1} parent=1 // pred_fallthru
      _
    // Predicated region
    $region42: #{tpu_custom_call.1} parent=1 // pred_check
      _
    $region43: #{tpu_custom_call.1} parent=1 // pred_check_branch
      %106 = sbr.rel (0) target = $region45
    $region44: #{tpu_custom_call.1} parent=1 // pred_region
      %108 = vsyncadd [#allocation13], 0
      %s109 = sshll.u32 %s10, 4
      %s110 = int_to_ptr.hbm [resolvable:$true] %s109
      %s111 = sshll.u32 [#allocation14], 4
      %s112 = int_to_ptr.vmem [resolvable:$true] %s111
      %117 = dma.hbm_to_vmem [thread:$0]  %s110, 3072, %s112, [#allocation13], 64, 64, 4
    $region45: #{tpu_custom_call.1} parent=1 // pred_fallthru
      _
    // Predicated region
    $region46: #{tpu_custom_call.1} parent=1 // pred_check
      _
    $region47: #{tpu_custom_call.1} parent=1 // pred_check_branch
      %119 = sbr.rel (0) target = $region49
    $region48: #{tpu_custom_call.1} parent=1 // pred_region
      _
    $region49: #{tpu_custom_call.1} parent=1 // pred_fallthru
      _
    // Predicated region
    $region50: #{tpu_custom_call.1} parent=1 // pred_check
      _
    $region51: #{tpu_custom_call.1} parent=1 // pred_check_branch
      %121 = sbr.rel (0) target = $region53
    $region52: #{tpu_custom_call.1} parent=1 // pred_region
      %123 = dma.done [#allocation4], 448
    $region53: #{tpu_custom_call.1} parent=1 // pred_fallthru
      _
    // Predicated region
    $region54: #{tpu_custom_call.1} parent=1 // pred_check
      _
    $region55: #{tpu_custom_call.1} parent=1 // pred_check_branch
      %125 = sbr.rel (0) target = $region57
    $region56: #{tpu_custom_call.1} parent=1 // pred_region
      %127 = dma.done [#allocation7], 18816
    $region57: #{tpu_custom_call.1} parent=1 // pred_fallthru
      _
    // Predicated region
    $region58: #{tpu_custom_call.1} parent=1 // pred_check
      _
    $region59: #{tpu_custom_call.1} parent=1 // pred_check_branch
      %129 = sbr.rel (0) target = $region61
    $region60: #{tpu_custom_call.1} parent=1 // pred_region
      %131 = dma.done [#allocation7], 9216
    $region61: #{tpu_custom_call.1} parent=1 // pred_fallthru
      _
    // Predicated region
    $region62: #{tpu_custom_call.1} parent=1 // pred_check
      _
    $region63: #{tpu_custom_call.1} parent=1 // pred_check_branch
      %133 = sbr.rel (0) target = $region65
    $region64: #{tpu_custom_call.1} parent=1 // pred_region
      %135 = dma.done [#allocation10], 48
    $region65: #{tpu_custom_call.1} parent=1 // pred_fallthru
      _
    // Predicated region
    $region66: #{tpu_custom_call.1} parent=1 // pred_check
      _
    $region67: #{tpu_custom_call.1} parent=1 // pred_check_branch
      %137 = sbr.rel (0) target = $region69
    $region68: #{tpu_custom_call.1} parent=1 // pred_region
      %139 = dma.done [#allocation10], 9216
    $region69: #{tpu_custom_call.1} parent=1 // pred_fallthru
      _
    // Predicated region
    $region70: #{tpu_custom_call.1} parent=1 // pred_check
      _
    $region71: #{tpu_custom_call.1} parent=1 // pred_check_branch
      %141 = sbr.rel (0) target = $region73
    $region72: #{tpu_custom_call.1} parent=1 // pred_region
      %143 = dma.done [#allocation13], 9216
    $region73: #{tpu_custom_call.1} parent=1 // pred_fallthru
      _
    // Predicated region
    $region74: #{tpu_custom_call.1} parent=1 // pred_check
      _
    $region75: #{tpu_custom_call.1} parent=1 // pred_check_branch
      %145 = sbr.rel (0) target = $region77
    $region76: #{tpu_custom_call.1} parent=1 // pred_region
      %147 = dma.done [#allocation13], 3072
    $region77: #{tpu_custom_call.1} parent=1 // pred_fallthru
      _
    %s149 = sld [smem:[#allocation2]]
    %s150 = smul.u32 %s149, 2654435761
    %s151 = smul.u32 0, 668265263
    %s152 = sxor.u32 %s150, %s151
    %v153 = vlaneseq
    %v154 = vshrl.u32 %v153, 7
    %v155 = vlaneseq
    %v156 = vand.u32 %v155, 127
    %v157 = vadd.s32 %v156, 128
    %v158 = vadd.s32 %v156, 256
    %v159 = vmul.u32 %v154, 2654435761
    %v160 = vmul.u32 %v156, 2246822519
    %v161 = vmul.u32 %v157, 2246822519
    %v162 = vmul.u32 %v158, 2246822519
    %v163 = vxor.u32 %v159, %v160
    %v164 = vxor.u32 %v159, %v161
    %v165 = vxor.u32 %v159, %v162
    %v166 = vstv %s152
    %v167 = vxor.u32 %v163, %v166
    %v168 = vxor.u32 %v164, %v166
    %v169 = vxor.u32 %v165, %v166
    %v170 = vshrl.u32 %v167, 16
    %v171 = vshrl.u32 %v168, 16
    %v172 = vshrl.u32 %v169, 16
    %v173 = vxor.u32 %v167, %v170
    %v174 = vxor.u32 %v168, %v171
    %v175 = vxor.u32 %v169, %v172
    %v176 = vmul.u32 %v173, 2146121005
    %v177 = vmul.u32 %v174, 2146121005
    %v178 = vmul.u32 %v175, 2146121005
    %v179 = vshrl.u32 %v176, 15
    %v180 = vshrl.u32 %v177, 15
    %v181 = vshrl.u32 %v178, 15
    %v182 = vxor.u32 %v176, %v179
    %v183 = vxor.u32 %v177, %v180
    %v184 = vxor.u32 %v178, %v181
    %v185 = vmul.u32 %v182, 2221713035
    %v186 = vmul.u32 %v183, 2221713035
    %v187 = vmul.u32 %v184, 2221713035
    %v188 = vshrl.u32 %v185, 16
    %v189 = vshrl.u32 %v186, 16
    %v190 = vshrl.u32 %v187, 16
    %v191 = vxor.u32 %v185, %v188
    %v192 = vxor.u32 %v186, %v189
    %v193 = vxor.u32 %v187, %v190
    %v194 = vld [vmem:[#allocation3] sm:$0xff]
    %v195 = vld [vmem:[#allocation3 + $0x8] sm:$0xff]
    %v196 = vld [vmem:[#allocation3 + $0x10] sm:$0xff]
    %v197 = vld [vmem:[#allocation3 + $0x18] sm:$0xf]
    %v198 = vld [vmem:[#allocation6] sm:$0xff]
    %v199 = vld [vmem:[#allocation6 + $0x8] sm:$0xf]
    %v200 = vld [vmem:[#allocation6 + $0xc] sm:$0xff]
    %v201 = vld [vmem:[#allocation6 + $0x14] sm:$0xf]
    %v202 = vld [vmem:[#allocation6 + $0x18] sm:$0xff]
    %v203 = vld [vmem:[#allocation6 + $0x20] sm:$0xf]
    %v204 = vld [vmem:[#allocation6 + $0x24] sm:$0xff]
    %v205 = vld [vmem:[#allocation6 + $0x2c] sm:$0xf]
    %v206 = vld [vmem:[#allocation6 + $0x30] sm:$0xff]
    %v207 = vld [vmem:[#allocation6 + $0x38] sm:$0xf]
    %v208 = vld [vmem:[#allocation6 + $0x3c] sm:$0xff]
    %v209 = vld [vmem:[#allocation6 + $0x44] sm:$0xf]
    %v210 = vld [vmem:[#allocation6 + $0x48] sm:$0xff]
    %v211 = vld [vmem:[#allocation6 + $0x50] sm:$0xf]
    %v212 = vld [vmem:[#allocation6 + $0x54] sm:$0xff]
    %v213 = vld [vmem:[#allocation6 + $0x5c] sm:$0xf]
    %v214 = vld [vmem:[#allocation6 + $0x60] sm:$0xff]
    %v215 = vld [vmem:[#allocation6 + $0x68] sm:$0xf]
    %v216 = vld [vmem:[#allocation6 + $0x6c] sm:$0xff]
    %v217 = vld [vmem:[#allocation6 + $0x74] sm:$0xf]
    %v218 = vld [vmem:[#allocation6 + $0x78] sm:$0xff]
    %v219 = vld [vmem:[#allocation6 + $0x80] sm:$0xf]
    %v220 = vld [vmem:[#allocation6 + $0x84] sm:$0xff]
    %v221 = vld [vmem:[#allocation6 + $0x8c] sm:$0xf]
    %v222 = vld [vmem:[#allocation6 + $0x90] sm:$0xff]
    %v223 = vld [vmem:[#allocation6 + $0x98] sm:$0xf]
    %v224 = vld [vmem:[#allocation6 + $0x9c] sm:$0xff]
    %v225 = vld [vmem:[#allocation6 + $0xa4] sm:$0xf]
    %v226 = vld [vmem:[#allocation6 + $0xa8] sm:$0xff]
    %v227 = vld [vmem:[#allocation6 + $0xb0] sm:$0xf]
    %v228 = vld [vmem:[#allocation6 + $0xb4] sm:$0xff]
    %v229 = vld [vmem:[#allocation6 + $0xbc] sm:$0xf]
    %v230 = vld [vmem:[#allocation6 + $0xc0] sm:$0xff]
    %v231 = vld [vmem:[#allocation6 + $0xc8] sm:$0xf]
    %v232 = vld [vmem:[#allocation6 + $0xcc] sm:$0xff]
    %v233 = vld [vmem:[#allocation6 + $0xd4] sm:$0xf]
    %v234 = vld [vmem:[#allocation6 + $0xd8] sm:$0xff]
    %v235 = vld [vmem:[#allocation6 + $0xe0] sm:$0xf]
    %v236 = vld [vmem:[#allocation6 + $0xe4] sm:$0xff]
    %v237 = vld [vmem:[#allocation6 + $0xec] sm:$0xf]
    %v238 = vld [vmem:[#allocation6 + $0xf0] sm:$0xff]
    %v239 = vld [vmem:[#allocation6 + $0xf8] sm:$0xf]
    %v240 = vld [vmem:[#allocation6 + $0xfc] sm:$0xff]
    %v241 = vld [vmem:[#allocation6 + $0x104] sm:$0xf]
    %v242 = vld [vmem:[#allocation6 + $0x108] sm:$0xff]
    %v243 = vld [vmem:[#allocation6 + $0x110] sm:$0xf]
    %v244 = vld [vmem:[#allocation6 + $0x114] sm:$0xff]
    %v245 = vld [vmem:[#allocation6 + $0x11c] sm:$0xf]
    %v246 = vld [vmem:[#allocation6 + $0x120] sm:$0xff]
    %v247 = vld [vmem:[#allocation6 + $0x128] sm:$0xf]
    %v248 = vld [vmem:[#allocation6 + $0x12c] sm:$0xff]
    %v249 = vld [vmem:[#allocation6 + $0x134] sm:$0xf]
    %v250 = vld [vmem:[#allocation6 + $0x138] sm:$0xff]
    %v251 = vld [vmem:[#allocation6 + $0x140] sm:$0xf]
    %v252 = vld [vmem:[#allocation6 + $0x144] sm:$0xff]
    %v253 = vld [vmem:[#allocation6 + $0x14c] sm:$0xf]
    %v254 = vld [vmem:[#allocation6 + $0x150] sm:$0xff]
    %v255 = vld [vmem:[#allocation6 + $0x158] sm:$0xf]
    %v256 = vld [vmem:[#allocation6 + $0x15c] sm:$0xff]
    %v257 = vld [vmem:[#allocation6 + $0x164] sm:$0xf]
    %v258 = vld [vmem:[#allocation6 + $0x168] sm:$0xff]
    %v259 = vld [vmem:[#allocation6 + $0x170] sm:$0xf]
    %v260 = vld [vmem:[#allocation6 + $0x174] sm:$0xff]
    %v261 = vld [vmem:[#allocation6 + $0x17c] sm:$0xf]
    %v262 = vld [vmem:[#allocation6 + $0x180] sm:$0xff]
    %v263 = vld [vmem:[#allocation6 + $0x188] sm:$0xf]
    %v264 = vld [vmem:[#allocation6 + $0x18c] sm:$0xff]
    %v265 = vld [vmem:[#allocation6 + $0x194] sm:$0xf]
    %v266 = vld [vmem:[#allocation6 + $0x198] sm:$0xff]
    %v267 = vld [vmem:[#allocation6 + $0x1a0] sm:$0xf]
    %v268 = vld [vmem:[#allocation6 + $0x1a4] sm:$0xff]
    %v269 = vld [vmem:[#allocation6 + $0x1ac] sm:$0xf]
    %v270 = vld [vmem:[#allocation6 + $0x1b0] sm:$0xff]
    %v271 = vld [vmem:[#allocation6 + $0x1b8] sm:$0xf]
    %v272 = vld [vmem:[#allocation6 + $0x1bc] sm:$0xff]
    %v273 = vld [vmem:[#allocation6 + $0x1c4] sm:$0xf]
    %v274 = vld [vmem:[#allocation6 + $0x1c8] sm:$0xff]
    %v275 = vld [vmem:[#allocation6 + $0x1d0] sm:$0xf]
    %v276 = vld [vmem:[#allocation6 + $0x1d4] sm:$0xff]
    %v277 = vld [vmem:[#allocation6 + $0x1dc] sm:$0xf]
    %v278 = vld [vmem:[#allocation6 + $0x1e0] sm:$0xff]
    %v279 = vld [vmem:[#allocation6 + $0x1e8] sm:$0xf]
    %v280 = vld [vmem:[#allocation6 + $0x1ec] sm:$0xff]
    %v281 = vld [vmem:[#allocation6 + $0x1f4] sm:$0xf]
    %v282 = vld [vmem:[#allocation6 + $0x1f8] sm:$0xff]
    %v283 = vld [vmem:[#allocation6 + $0x200] sm:$0xf]
    %v284 = vld [vmem:[#allocation6 + $0x204] sm:$0xff]
    %v285 = vld [vmem:[#allocation6 + $0x20c] sm:$0xf]
    %v286 = vld [vmem:[#allocation6 + $0x210] sm:$0xff]
    %v287 = vld [vmem:[#allocation6 + $0x218] sm:$0xf]
    %v288 = vld [vmem:[#allocation6 + $0x21c] sm:$0xff]
    %v289 = vld [vmem:[#allocation6 + $0x224] sm:$0xf]
    %v290 = vld [vmem:[#allocation6 + $0x228] sm:$0xff]
    %v291 = vld [vmem:[#allocation6 + $0x230] sm:$0xf]
    %v292 = vld [vmem:[#allocation6 + $0x234] sm:$0xff]
    %v293 = vld [vmem:[#allocation6 + $0x23c] sm:$0xf]
    %v294 = vld [vmem:[#allocation6 + $0x240] sm:$0xff]
    %v295 = vld [vmem:[#allocation6 + $0x248] sm:$0xf]
    %v296 = vld [vmem:[#allocation6 + $0x24c] sm:$0xff]
    %v297 = vld [vmem:[#allocation6 + $0x254] sm:$0xf]
    %v298 = vld [vmem:[#allocation6 + $0x258] sm:$0xff]
    %v299 = vld [vmem:[#allocation6 + $0x260] sm:$0xf]
    %v300 = vld [vmem:[#allocation6 + $0x264] sm:$0xff]
    %v301 = vld [vmem:[#allocation6 + $0x26c] sm:$0xf]
    %v302 = vld [vmem:[#allocation6 + $0x270] sm:$0xff]
    %v303 = vld [vmem:[#allocation6 + $0x278] sm:$0xf]
    %v304 = vld [vmem:[#allocation6 + $0x27c] sm:$0xff]
    %v305 = vld [vmem:[#allocation6 + $0x284] sm:$0xf]
    %v306 = vld [vmem:[#allocation6 + $0x288] sm:$0xff]
    %v307 = vld [vmem:[#allocation6 + $0x290] sm:$0xf]
    %v308 = vld [vmem:[#allocation6 + $0x294] sm:$0xff]
    %v309 = vld [vmem:[#allocation6 + $0x29c] sm:$0xf]
    %v310 = vld [vmem:[#allocation6 + $0x2a0] sm:$0xff]
    %v311 = vld [vmem:[#allocation6 + $0x2a8] sm:$0xf]
    %v312 = vld [vmem:[#allocation6 + $0x2ac] sm:$0xff]
    %v313 = vld [vmem:[#allocation6 + $0x2b4] sm:$0xf]
    %v314 = vld [vmem:[#allocation6 + $0x2b8] sm:$0xff]
    %v315 = vld [vmem:[#allocation6 + $0x2c0] sm:$0xf]
    %v316 = vld [vmem:[#allocation6 + $0x2c4] sm:$0xff]
    %v317 = vld [vmem:[#allocation6 + $0x2cc] sm:$0xf]
    %v318 = vld [vmem:[#allocation6 + $0x2d0] sm:$0xff]
    %v319 = vld [vmem:[#allocation6 + $0x2d8] sm:$0xf]
    %v320 = vld [vmem:[#allocation6 + $0x2dc] sm:$0xff]
    %v321 = vld [vmem:[#allocation6 + $0x2e4] sm:$0xf]
    %v322 = vld [vmem:[#allocation6 + $0x2e8] sm:$0xff]
    %v323 = vld [vmem:[#allocation6 + $0x2f0] sm:$0xf]
    %v324 = vld [vmem:[#allocation6 + $0x2f4] sm:$0xff]
    %v325 = vld [vmem:[#allocation6 + $0x2fc] sm:$0xf]
    %v326 = vld [vmem:[#allocation6 + $0x300] sm:$0xff]
    %v327 = vld [vmem:[#allocation6 + $0x308] sm:$0xf]
    %v328 = vld [vmem:[#allocation6 + $0x30c] sm:$0xff]
    %v329 = vld [vmem:[#allocation6 + $0x314] sm:$0xf]
    %v330 = vld [vmem:[#allocation6 + $0x318] sm:$0xff]
    %v331 = vld [vmem:[#allocation6 + $0x320] sm:$0xf]
    %v332 = vld [vmem:[#allocation6 + $0x324] sm:$0xff]
    %v333 = vld [vmem:[#allocation6 + $0x32c] sm:$0xf]
    %v334 = vld [vmem:[#allocation6 + $0x330] sm:$0xff]
    %v335 = vld [vmem:[#allocation6 + $0x338] sm:$0xf]
    %v336 = vld [vmem:[#allocation6 + $0x33c] sm:$0xff]
    %v337 = vld [vmem:[#allocation6 + $0x344] sm:$0xf]
    %v338 = vld [vmem:[#allocation6 + $0x348] sm:$0xff]
    %v339 = vld [vmem:[#allocation6 + $0x350] sm:$0xf]
    %v340 = vld [vmem:[#allocation6 + $0x354] sm:$0xff]
    %v341 = vld [vmem:[#allocation6 + $0x35c] sm:$0xf]
    %v342 = vld [vmem:[#allocation6 + $0x360] sm:$0xff]
    %v343 = vld [vmem:[#allocation6 + $0x368] sm:$0xf]
    %v344 = vld [vmem:[#allocation6 + $0x36c] sm:$0xff]
    %v345 = vld [vmem:[#allocation6 + $0x374] sm:$0xf]
    %v346 = vld [vmem:[#allocation6 + $0x378] sm:$0xff]
    %v347 = vld [vmem:[#allocation6 + $0x380] sm:$0xf]
    %v348 = vld [vmem:[#allocation6 + $0x384] sm:$0xff]
    %v349 = vld [vmem:[#allocation6 + $0x38c] sm:$0xf]
    %v350 = vld [vmem:[#allocation6 + $0x390] sm:$0xff]
    %v351 = vld [vmem:[#allocation6 + $0x398] sm:$0xf]
    %v352 = vld [vmem:[#allocation6 + $0x39c] sm:$0xff]
    %v353 = vld [vmem:[#allocation6 + $0x3a4] sm:$0xf]
    %v354 = vld [vmem:[#allocation6 + $0x3a8] sm:$0xff]
    %v355 = vld [vmem:[#allocation6 + $0x3b0] sm:$0xf]
    %v356 = vld [vmem:[#allocation6 + $0x3b4] sm:$0xff]
    %v357 = vld [vmem:[#allocation6 + $0x3bc] sm:$0xf]
    %v358 = vld [vmem:[#allocation6 + $0x3c0] sm:$0xff]
    %v359 = vld [vmem:[#allocation6 + $0x3c8] sm:$0xf]
    %v360 = vld [vmem:[#allocation6 + $0x3cc] sm:$0xff]
    %v361 = vld [vmem:[#allocation6 + $0x3d4] sm:$0xf]
    %v362 = vld [vmem:[#allocation6 + $0x3d8] sm:$0xff]
    %v363 = vld [vmem:[#allocation6 + $0x3e0] sm:$0xf]
    %v364 = vld [vmem:[#allocation6 + $0x3e4] sm:$0xff]
    %v365 = vld [vmem:[#allocation6 + $0x3ec] sm:$0xf]
    %v366 = vld [vmem:[#allocation6 + $0x3f0] sm:$0xff]
    %v367 = vld [vmem:[#allocation6 + $0x3f8] sm:$0xf]
    %v368 = vld [vmem:[#allocation6 + $0x3fc] sm:$0xff]
    %v369 = vld [vmem:[#allocation6 + $0x404] sm:$0xf]
    %v370 = vld [vmem:[#allocation6 + $0x408] sm:$0xff]
    %v371 = vld [vmem:[#allocation6 + $0x410] sm:$0xf]
    %v372 = vld [vmem:[#allocation6 + $0x414] sm:$0xff]
    %v373 = vld [vmem:[#allocation6 + $0x41c] sm:$0xf]
    %v374 = vld [vmem:[#allocation6 + $0x420] sm:$0xff]
    %v375 = vld [vmem:[#allocation6 + $0x428] sm:$0xf]
    %v376 = vld [vmem:[#allocation6 + $0x42c] sm:$0xff]
    %v377 = vld [vmem:[#allocation6 + $0x434] sm:$0xf]
    %v378 = vld [vmem:[#allocation6 + $0x438] sm:$0xff]
    %v379 = vld [vmem:[#allocation6 + $0x440] sm:$0xf]
    %v380 = vld [vmem:[#allocation6 + $0x444] sm:$0xff]
    %v381 = vld [vmem:[#allocation6 + $0x44c] sm:$0xf]
    %v382 = vld [vmem:[#allocation6 + $0x450] sm:$0xff]
    %v383 = vld [vmem:[#allocation6 + $0x458] sm:$0xf]
    %v384 = vld [vmem:[#allocation6 + $0x45c] sm:$0xff]
    %v385 = vld [vmem:[#allocation6 + $0x464] sm:$0xf]
    %v386 = vld [vmem:[#allocation6 + $0x468] sm:$0xff]
    %v387 = vld [vmem:[#allocation6 + $0x470] sm:$0xf]
    %v388 = vld [vmem:[#allocation6 + $0x474] sm:$0xff]
    %v389 = vld [vmem:[#allocation6 + $0x47c] sm:$0xf]
    %v390 = vld [vmem:[#allocation6 + $0x480] sm:$0xff]
    %v391 = vld [vmem:[#allocation6 + $0x488] sm:$0xf]
    %v392 = vld [vmem:[#allocation6 + $0x48c] sm:$0xff]
    %v393 = vld [vmem:[#allocation6 + $0x494] sm:$0xf]
    %v394 = vld [vmem:[%s3] sm:$0x7]
    %v396 = vperm.slane %v394, 0
    %v397 = vperm.slane %v394, 1
    %v398 = vperm.slane %v394, 2
    %v406 = vunpack.c.l.b16 %v194
    %v407 = vunpack.c.h.b16 %v194
    %v408 = vunpack.c.l.b16 %v195
    %v409 = vunpack.c.h.b16 %v195
    %v410 = vunpack.c.l.b16 %v196
    %v411 = vunpack.c.h.b16 %v196
    %v412 = vunpack.c.l.b16 %v197
    %v413 = vpack.c.b16 %v406, %v406
    %v414 = vpack.c.b16 %v407, %v407
    %v415 = vpack.c.b16 %v408, %v408
    %v416 = vpack.c.b16 %v409, %v409
    %v417 = vpack.c.b16 %v410, %v410
    %v418 = vpack.c.b16 %v411, %v411
    %v419 = vpack.c.b16 %v412, %v412
    %v622 = vunpack.c.l.b16 %v198
    %v623 = vunpack.c.h.b16 %v198
    %v624 = vunpack.c.l.b16 %v199
    %v625 = vunpack.c.l.b16 %v200
    %v626 = vunpack.c.h.b16 %v200
    %v627 = vunpack.c.l.b16 %v201
    %v628 = vunpack.c.l.b16 %v202
    %v629 = vunpack.c.h.b16 %v202
    %v630 = vunpack.c.l.b16 %v203
    %v631 = vunpack.c.l.b16 %v204
    %v632 = vunpack.c.h.b16 %v204
    %v633 = vunpack.c.l.b16 %v205
    %v634 = vunpack.c.l.b16 %v206
    %v635 = vunpack.c.h.b16 %v206
    %v636 = vunpack.c.l.b16 %v207
    %v637 = vunpack.c.l.b16 %v208
    %v638 = vunpack.c.h.b16 %v208
    %v639 = vunpack.c.l.b16 %v209
    %v640 = vunpack.c.l.b16 %v210
    %v641 = vunpack.c.h.b16 %v210
    %v642 = vunpack.c.l.b16 %v211
    %v643 = vunpack.c.l.b16 %v212
    %v644 = vunpack.c.h.b16 %v212
    %v645 = vunpack.c.l.b16 %v213
    %v646 = vunpack.c.l.b16 %v214
    %v647 = vunpack.c.h.b16 %v214
    %v648 = vunpack.c.l.b16 %v215
    %v649 = vunpack.c.l.b16 %v216
    %v650 = vunpack.c.h.b16 %v216
    %v651 = vunpack.c.l.b16 %v217
    %v652 = vunpack.c.l.b16 %v218
    %v653 = vunpack.c.h.b16 %v218
    %v654 = vunpack.c.l.b16 %v219
    %v655 = vunpack.c.l.b16 %v220
    %v656 = vunpack.c.h.b16 %v220
    %v657 = vunpack.c.l.b16 %v221
    %v658 = vunpack.c.l.b16 %v222
    %v659 = vunpack.c.h.b16 %v222
    %v660 = vunpack.c.l.b16 %v223
    %v661 = vunpack.c.l.b16 %v224
    %v662 = vunpack.c.h.b16 %v224
    %v663 = vunpack.c.l.b16 %v225
    %v664 = vunpack.c.l.b16 %v226
    %v665 = vunpack.c.h.b16 %v226
    %v666 = vunpack.c.l.b16 %v227
    %v667 = vunpack.c.l.b16 %v228
    %v668 = vunpack.c.h.b16 %v228
    %v669 = vunpack.c.l.b16 %v229
    %v670 = vunpack.c.l.b16 %v230
    %v671 = vunpack.c.h.b16 %v230
    %v672 = vunpack.c.l.b16 %v231
    %v673 = vunpack.c.l.b16 %v232
    %v674 = vunpack.c.h.b16 %v232
    %v675 = vunpack.c.l.b16 %v233
    %v676 = vunpack.c.l.b16 %v234
    %v677 = vunpack.c.h.b16 %v234
    %v678 = vunpack.c.l.b16 %v235
    %v679 = vunpack.c.l.b16 %v236
    %v680 = vunpack.c.h.b16 %v236
    %v681 = vunpack.c.l.b16 %v237
    %v682 = vunpack.c.l.b16 %v238
    %v683 = vunpack.c.h.b16 %v238
    %v684 = vunpack.c.l.b16 %v239
    %v685 = vunpack.c.l.b16 %v240
    %v686 = vunpack.c.h.b16 %v240
    %v687 = vunpack.c.l.b16 %v241
    %v688 = vunpack.c.l.b16 %v242
    %v689 = vunpack.c.h.b16 %v242
    %v690 = vunpack.c.l.b16 %v243
    %v691 = vunpack.c.l.b16 %v244
    %v692 = vunpack.c.h.b16 %v244
    %v693 = vunpack.c.l.b16 %v245
    %v694 = vunpack.c.l.b16 %v246
    %v695 = vunpack.c.h.b16 %v246
    %v696 = vunpack.c.l.b16 %v247
    %v697 = vunpack.c.l.b16 %v248
    %v698 = vunpack.c.h.b16 %v248
    %v699 = vunpack.c.l.b16 %v249
    %v700 = vunpack.c.l.b16 %v250
    %v701 = vunpack.c.h.b16 %v250
    %v702 = vunpack.c.l.b16 %v251
    %v703 = vunpack.c.l.b16 %v252
    %v704 = vunpack.c.h.b16 %v252
    %v705 = vunpack.c.l.b16 %v253
    %v706 = vunpack.c.l.b16 %v254
    %v707 = vunpack.c.h.b16 %v254
    %v708 = vunpack.c.l.b16 %v255
    %v709 = vunpack.c.l.b16 %v256
    %v710 = vunpack.c.h.b16 %v256
    %v711 = vunpack.c.l.b16 %v257
    %v712 = vunpack.c.l.b16 %v258
    %v713 = vunpack.c.h.b16 %v258
    %v714 = vunpack.c.l.b16 %v259
    %v715 = vunpack.c.l.b16 %v260
    %v716 = vunpack.c.h.b16 %v260
    %v717 = vunpack.c.l.b16 %v261
    %v718 = vunpack.c.l.b16 %v262
    %v719 = vunpack.c.h.b16 %v262
    %v720 = vunpack.c.l.b16 %v263
    %v721 = vunpack.c.l.b16 %v264
    %v722 = vunpack.c.h.b16 %v264
    %v723 = vunpack.c.l.b16 %v265
    %v724 = vunpack.c.l.b16 %v266
    %v725 = vunpack.c.h.b16 %v266
    %v726 = vunpack.c.l.b16 %v267
    %v727 = vunpack.c.l.b16 %v268
    %v728 = vunpack.c.h.b16 %v268
    %v729 = vunpack.c.l.b16 %v269
    %v730 = vunpack.c.l.b16 %v270
    %v731 = vunpack.c.h.b16 %v270
    %v732 = vunpack.c.l.b16 %v271
    %v733 = vunpack.c.l.b16 %v272
    %v734 = vunpack.c.h.b16 %v272
    %v735 = vunpack.c.l.b16 %v273
    %v736 = vunpack.c.l.b16 %v274
    %v737 = vunpack.c.h.b16 %v274
    %v738 = vunpack.c.l.b16 %v275
    %v739 = vunpack.c.l.b16 %v276
    %v740 = vunpack.c.h.b16 %v276
    %v741 = vunpack.c.l.b16 %v277
    %v742 = vunpack.c.l.b16 %v278
    %v743 = vunpack.c.h.b16 %v278
    %v744 = vunpack.c.l.b16 %v279
    %v745 = vunpack.c.l.b16 %v280
    %v746 = vunpack.c.h.b16 %v280
    %v747 = vunpack.c.l.b16 %v281
    %v748 = vunpack.c.l.b16 %v282
    %v749 = vunpack.c.h.b16 %v282
    %v750 = vunpack.c.l.b16 %v283
    %v751 = vunpack.c.l.b16 %v284
    %v752 = vunpack.c.h.b16 %v284
    %v753 = vunpack.c.l.b16 %v285
    %v754 = vunpack.c.l.b16 %v286
    %v755 = vunpack.c.h.b16 %v286
    %v756 = vunpack.c.l.b16 %v287
    %v757 = vunpack.c.l.b16 %v288
    %v758 = vunpack.c.h.b16 %v288
    %v759 = vunpack.c.l.b16 %v289
    %v760 = vunpack.c.l.b16 %v290
    %v761 = vunpack.c.h.b16 %v290
    %v762 = vunpack.c.l.b16 %v291
    %v763 = vunpack.c.l.b16 %v292
    %v764 = vunpack.c.h.b16 %v292
    %v765 = vunpack.c.l.b16 %v293
    %v766 = vunpack.c.l.b16 %v294
    %v767 = vunpack.c.h.b16 %v294
    %v768 = vunpack.c.l.b16 %v295
    %v769 = vunpack.c.l.b16 %v296
    %v770 = vunpack.c.h.b16 %v296
    %v771 = vunpack.c.l.b16 %v297
    %v772 = vunpack.c.l.b16 %v298
    %v773 = vunpack.c.h.b16 %v298
    %v774 = vunpack.c.l.b16 %v299
    %v775 = vunpack.c.l.b16 %v300
    %v776 = vunpack.c.h.b16 %v300
    %v777 = vunpack.c.l.b16 %v301
    %v778 = vunpack.c.l.b16 %v302
    %v779 = vunpack.c.h.b16 %v302
    %v780 = vunpack.c.l.b16 %v303
    %v781 = vunpack.c.l.b16 %v304
    %v782 = vunpack.c.h.b16 %v304
    %v783 = vunpack.c.l.b16 %v305
    %v784 = vunpack.c.l.b16 %v306
    %v785 = vunpack.c.h.b16 %v306
    %v786 = vunpack.c.l.b16 %v307
    %v787 = vunpack.c.l.b16 %v308
    %v788 = vunpack.c.h.b16 %v308
    %v789 = vunpack.c.l.b16 %v309
    %v790 = vunpack.c.l.b16 %v310
    %v791 = vunpack.c.h.b16 %v310
    %v792 = vunpack.c.l.b16 %v311
    %v793 = vunpack.c.l.b16 %v312
    %v794 = vunpack.c.h.b16 %v312
    %v795 = vunpack.c.l.b16 %v313
    %v796 = vunpack.c.l.b16 %v314
    %v797 = vunpack.c.h.b16 %v314
    %v798 = vunpack.c.l.b16 %v315
    %v799 = vunpack.c.l.b16 %v316
    %v800 = vunpack.c.h.b16 %v316
    %v801 = vunpack.c.l.b16 %v317
    %v802 = vunpack.c.l.b16 %v318
    %v803 = vunpack.c.h.b16 %v318
    %v804 = vunpack.c.l.b16 %v319
    %v805 = vunpack.c.l.b16 %v320
    %v806 = vunpack.c.h.b16 %v320
    %v807 = vunpack.c.l.b16 %v321
    %v808 = vunpack.c.l.b16 %v322
    %v809 = vunpack.c.h.b16 %v322
    %v810 = vunpack.c.l.b16 %v323
    %v811 = vunpack.c.l.b16 %v324
    %v812 = vunpack.c.h.b16 %v324
    %v813 = vunpack.c.l.b16 %v325
    %v814 = vunpack.c.l.b16 %v326
    %v815 = vunpack.c.h.b16 %v326
    %v816 = vunpack.c.l.b16 %v327
    %v817 = vunpack.c.l.b16 %v328
    %v818 = vunpack.c.h.b16 %v328
    %v819 = vunpack.c.l.b16 %v329
    %v820 = vunpack.c.l.b16 %v330
    %v821 = vunpack.c.h.b16 %v330
    %v822 = vunpack.c.l.b16 %v331
    %v823 = vunpack.c.l.b16 %v332
    %v824 = vunpack.c.h.b16 %v332
    %v825 = vunpack.c.l.b16 %v333
    %v826 = vunpack.c.l.b16 %v334
    %v827 = vunpack.c.h.b16 %v334
    %v828 = vunpack.c.l.b16 %v335
    %v829 = vunpack.c.l.b16 %v336
    %v830 = vunpack.c.h.b16 %v336
    %v831 = vunpack.c.l.b16 %v337
    %v832 = vunpack.c.l.b16 %v338
    %v833 = vunpack.c.h.b16 %v338
    %v834 = vunpack.c.l.b16 %v339
    %v835 = vunpack.c.l.b16 %v340
    %v836 = vunpack.c.h.b16 %v340
    %v837 = vunpack.c.l.b16 %v341
    %v838 = vunpack.c.l.b16 %v342
    %v839 = vunpack.c.h.b16 %v342
    %v840 = vunpack.c.l.b16 %v343
    %v841 = vunpack.c.l.b16 %v344
    %v842 = vunpack.c.h.b16 %v344
    %v843 = vunpack.c.l.b16 %v345
    %v844 = vunpack.c.l.b16 %v346
    %v845 = vunpack.c.h.b16 %v346
    %v846 = vunpack.c.l.b16 %v347
    %v847 = vunpack.c.l.b16 %v348
    %v848 = vunpack.c.h.b16 %v348
    %v849 = vunpack.c.l.b16 %v349
    %v850 = vunpack.c.l.b16 %v350
    %v851 = vunpack.c.h.b16 %v350
    %v852 = vunpack.c.l.b16 %v351
    %v853 = vunpack.c.l.b16 %v352
    %v854 = vunpack.c.h.b16 %v352
    %v855 = vunpack.c.l.b16 %v353
    %v856 = vunpack.c.l.b16 %v354
    %v857 = vunpack.c.h.b16 %v354
    %v858 = vunpack.c.l.b16 %v355
    %v859 = vunpack.c.l.b16 %v356
    %v860 = vunpack.c.h.b16 %v356
    %v861 = vunpack.c.l.b16 %v357
    %v862 = vunpack.c.l.b16 %v358
    %v863 = vunpack.c.h.b16 %v358
    %v864 = vunpack.c.l.b16 %v359
    %v865 = vunpack.c.l.b16 %v360
    %v866 = vunpack.c.h.b16 %v360
    %v867 = vunpack.c.l.b16 %v361
    %v868 = vunpack.c.l.b16 %v362
    %v869 = vunpack.c.h.b16 %v362
    %v870 = vunpack.c.l.b16 %v363
    %v871 = vunpack.c.l.b16 %v364
    %v872 = vunpack.c.h.b16 %v364
    %v873 = vunpack.c.l.b16 %v365
    %v874 = vunpack.c.l.b16 %v366
    %v875 = vunpack.c.h.b16 %v366
    %v876 = vunpack.c.l.b16 %v367
    %v877 = vunpack.c.l.b16 %v368
    %v878 = vunpack.c.h.b16 %v368
    %v879 = vunpack.c.l.b16 %v369
    %v880 = vunpack.c.l.b16 %v370
    %v881 = vunpack.c.h.b16 %v370
    %v882 = vunpack.c.l.b16 %v371
    %v883 = vunpack.c.l.b16 %v372
    %v884 = vunpack.c.h.b16 %v372
    %v885 = vunpack.c.l.b16 %v373
    %v886 = vunpack.c.l.b16 %v374
    %v887 = vunpack.c.h.b16 %v374
    %v888 = vunpack.c.l.b16 %v375
    %v889 = vunpack.c.l.b16 %v376
    %v890 = vunpack.c.h.b16 %v376
    %v891 = vunpack.c.l.b16 %v377
    %v892 = vunpack.c.l.b16 %v378
    %v893 = vunpack.c.h.b16 %v378
    %v894 = vunpack.c.l.b16 %v379
    %v895 = vunpack.c.l.b16 %v380
    %v896 = vunpack.c.h.b16 %v380
    %v897 = vunpack.c.l.b16 %v381
    %v898 = vunpack.c.l.b16 %v382
    %v899 = vunpack.c.h.b16 %v382
    %v900 = vunpack.c.l.b16 %v383
    %v901 = vunpack.c.l.b16 %v384
    %v902 = vunpack.c.h.b16 %v384
    %v903 = vunpack.c.l.b16 %v385
    %v904 = vunpack.c.l.b16 %v386
    %v905 = vunpack.c.h.b16 %v386
    %v906 = vunpack.c.l.b16 %v387
    %v907 = vunpack.c.l.b16 %v388
    %v908 = vunpack.c.h.b16 %v388
    %v909 = vunpack.c.l.b16 %v389
    %v910 = vunpack.c.l.b16 %v390
    %v911 = vunpack.c.h.b16 %v390
    %v912 = vunpack.c.l.b16 %v391
    %v913 = vunpack.c.l.b16 %v392
    %v914 = vunpack.c.h.b16 %v392
    %v915 = vunpack.c.l.b16 %v393
    %v916 = vpack.c.b16 %v625, %v622
    %v917 = vpack.c.b16 %v626, %v623
    %v918 = vpack.c.b16 %v627, %v624
    %v919 = vpack.c.b16 %v631, %v628
    %v920 = vpack.c.b16 %v632, %v629
    %v921 = vpack.c.b16 %v633, %v630
    %v922 = vpack.c.b16 %v637, %v634
    %v923 = vpack.c.b16 %v638, %v635
    %v924 = vpack.c.b16 %v639, %v636
    %v925 = vpack.c.b16 %v643, %v640
    %v926 = vpack.c.b16 %v644, %v641
    %v927 = vpack.c.b16 %v645, %v642
    %v928 = vpack.c.b16 %v649, %v646
    %v929 = vpack.c.b16 %v650, %v647
    %v930 = vpack.c.b16 %v651, %v648
    %v931 = vpack.c.b16 %v655, %v652
    %v932 = vpack.c.b16 %v656, %v653
    %v933 = vpack.c.b16 %v657, %v654
    %v934 = vpack.c.b16 %v661, %v658
    %v935 = vpack.c.b16 %v662, %v659
    %v936 = vpack.c.b16 %v663, %v660
    %v937 = vpack.c.b16 %v667, %v664
    %v938 = vpack.c.b16 %v668, %v665
    %v939 = vpack.c.b16 %v669, %v666
    %v940 = vpack.c.b16 %v673, %v670
    %v941 = vpack.c.b16 %v674, %v671
    %v942 = vpack.c.b16 %v675, %v672
    %v943 = vpack.c.b16 %v679, %v676
    %v944 = vpack.c.b16 %v680, %v677
    %v945 = vpack.c.b16 %v681, %v678
    %v946 = vpack.c.b16 %v685, %v682
    %v947 = vpack.c.b16 %v686, %v683
    %v948 = vpack.c.b16 %v687, %v684
    %v949 = vpack.c.b16 %v691, %v688
    %v950 = vpack.c.b16 %v692, %v689
    %v951 = vpack.c.b16 %v693, %v690
    %v952 = vpack.c.b16 %v697, %v694
    %v953 = vpack.c.b16 %v698, %v695
    %v954 = vpack.c.b16 %v699, %v696
    %v955 = vpack.c.b16 %v703, %v700
    %v956 = vpack.c.b16 %v704, %v701
    %v957 = vpack.c.b16 %v705, %v702
    %v958 = vpack.c.b16 %v709, %v706
    %v959 = vpack.c.b16 %v710, %v707
    %v960 = vpack.c.b16 %v711, %v708
    %v961 = vpack.c.b16 %v715, %v712
    %v962 = vpack.c.b16 %v716, %v713
    %v963 = vpack.c.b16 %v717, %v714
    %v964 = vpack.c.b16 %v721, %v718
    %v965 = vpack.c.b16 %v722, %v719
    %v966 = vpack.c.b16 %v723, %v720
    %v967 = vpack.c.b16 %v727, %v724
    %v968 = vpack.c.b16 %v728, %v725
    %v969 = vpack.c.b16 %v729, %v726
    %v970 = vpack.c.b16 %v733, %v730
    %v971 = vpack.c.b16 %v734, %v731
    %v972 = vpack.c.b16 %v735, %v732
    %v973 = vpack.c.b16 %v739, %v736
    %v974 = vpack.c.b16 %v740, %v737
    %v975 = vpack.c.b16 %v741, %v738
    %v976 = vpack.c.b16 %v745, %v742
    %v977 = vpack.c.b16 %v746, %v743
    %v978 = vpack.c.b16 %v747, %v744
    %v979 = vpack.c.b16 %v751, %v748
    %v980 = vpack.c.b16 %v752, %v749
    %v981 = vpack.c.b16 %v753, %v750
    %v982 = vpack.c.b16 %v757, %v754
    %v983 = vpack.c.b16 %v758, %v755
    %v984 = vpack.c.b16 %v759, %v756
    %v985 = vpack.c.b16 %v763, %v760
    %v986 = vpack.c.b16 %v764, %v761
    %v987 = vpack.c.b16 %v765, %v762
    %v988 = vpack.c.b16 %v769, %v766
    %v989 = vpack.c.b16 %v770, %v767
    %v990 = vpack.c.b16 %v771, %v768
    %v991 = vpack.c.b16 %v775, %v772
    %v992 = vpack.c.b16 %v776, %v773
    %v993 = vpack.c.b16 %v777, %v774
    %v994 = vpack.c.b16 %v781, %v778
    %v995 = vpack.c.b16 %v782, %v779
    %v996 = vpack.c.b16 %v783, %v780
    %v997 = vpack.c.b16 %v787, %v784
    %v998 = vpack.c.b16 %v788, %v785
    %v999 = vpack.c.b16 %v789, %v786
    %v1000 = vpack.c.b16 %v793, %v790
    %v1001 = vpack.c.b16 %v794, %v791
    %v1002 = vpack.c.b16 %v795, %v792
    %v1003 = vpack.c.b16 %v799, %v796
    %v1004 = vpack.c.b16 %v800, %v797
    %v1005 = vpack.c.b16 %v801, %v798
    %v1006 = vpack.c.b16 %v805, %v802
    %v1007 = vpack.c.b16 %v806, %v803
    %v1008 = vpack.c.b16 %v807, %v804
    %v1009 = vpack.c.b16 %v811, %v808
    %v1010 = vpack.c.b16 %v812, %v809
    %v1011 = vpack.c.b16 %v813, %v810
    %v1012 = vpack.c.b16 %v817, %v814
    %v1013 = vpack.c.b16 %v818, %v815
    %v1014 = vpack.c.b16 %v819, %v816
    %v1015 = vpack.c.b16 %v823, %v820
    %v1016 = vpack.c.b16 %v824, %v821
    %v1017 = vpack.c.b16 %v825, %v822
    %v1018 = vpack.c.b16 %v829, %v826
    %v1019 = vpack.c.b16 %v830, %v827
    %v1020 = vpack.c.b16 %v831, %v828
    %v1021 = vpack.c.b16 %v835, %v832
    %v1022 = vpack.c.b16 %v836, %v833
    %v1023 = vpack.c.b16 %v837, %v834
    %v1024 = vpack.c.b16 %v841, %v838
    %v1025 = vpack.c.b16 %v842, %v839
    %v1026 = vpack.c.b16 %v843, %v840
    %v1027 = vpack.c.b16 %v847, %v844
    %v1028 = vpack.c.b16 %v848, %v845
    %v1029 = vpack.c.b16 %v849, %v846
    %v1030 = vpack.c.b16 %v853, %v850
    %v1031 = vpack.c.b16 %v854, %v851
    %v1032 = vpack.c.b16 %v855, %v852
    %v1033 = vpack.c.b16 %v859, %v856
    %v1034 = vpack.c.b16 %v860, %v857
    %v1035 = vpack.c.b16 %v861, %v858
    %v1036 = vpack.c.b16 %v865, %v862
    %v1037 = vpack.c.b16 %v866, %v863
    %v1038 = vpack.c.b16 %v867, %v864
    %v1039 = vpack.c.b16 %v871, %v868
    %v1040 = vpack.c.b16 %v872, %v869
    %v1041 = vpack.c.b16 %v873, %v870
    %v1042 = vpack.c.b16 %v877, %v874
    %v1043 = vpack.c.b16 %v878, %v875
    %v1044 = vpack.c.b16 %v879, %v876
    %v1045 = vpack.c.b16 %v883, %v880
    %v1046 = vpack.c.b16 %v884, %v881
    %v1047 = vpack.c.b16 %v885, %v882
    %v1048 = vpack.c.b16 %v889, %v886
    %v1049 = vpack.c.b16 %v890, %v887
    %v1050 = vpack.c.b16 %v891, %v888
    %v1051 = vpack.c.b16 %v895, %v892
    %v1052 = vpack.c.b16 %v896, %v893
    %v1053 = vpack.c.b16 %v897, %v894
    %v1054 = vpack.c.b16 %v901, %v898
    %v1055 = vpack.c.b16 %v902, %v899
    %v1056 = vpack.c.b16 %v903, %v900
    %v1057 = vpack.c.b16 %v907, %v904
    %v1058 = vpack.c.b16 %v908, %v905
    %v1059 = vpack.c.b16 %v909, %v906
    %v1060 = vpack.c.b16 %v913, %v910
    %v1061 = vpack.c.b16 %v914, %v911
    %v1062 = vpack.c.b16 %v915, %v912
    %vm1210 = vcmask 130048
    %v1212 = vsel %vm1210, %v419, 0
    %1214 = vmatpush.bf16.msra.mxu0 %v937
    %1215 = vmatpush.bf16.msra.mxu0 %v934
    %1216 = vmatpush.bf16.msra.mxu0 %v931
    %1217 = vmatpush.bf16.msra.mxu0 %v928
    %1218 = vmatpush.bf16.msra.mxu0 %v925
    %1219 = vmatpush.bf16.msra.mxu0 %v922
    %1220 = vmatpush.bf16.msra.mxu0 %v919
    %1221 = vmatpush.bf16.msra.mxu0 %v916
    %1222 = vmatmul.bf16.gmra.mxu0 %v413
    %v1223 = vpop.f32.mrf.mxu0
    %v1224 = vadd.f32 %v396, %v1223
    %v1225 = vpop.f32.mrf.mxu0
    %1226 = vdwg.mxu0
    %1227 = vmatpush.bf16.msra.mxu0 %v961
    %1228 = vmatpush.bf16.msra.mxu0 %v958
    %1229 = vmatpush.bf16.msra.mxu0 %v955
    %1230 = vmatpush.bf16.msra.mxu0 %v952
    %1231 = vmatpush.bf16.msra.mxu0 %v949
    %1232 = vmatpush.bf16.msra.mxu0 %v946
    %1233 = vmatpush.bf16.msra.mxu0 %v943
    %1234 = vmatpush.bf16.msra.mxu0 %v940
    %1235 = vmatmul.bf16.gmra.mxu0 %v414
    %v1236 = vpop.f32.mrf.mxu0
    %v1237 = vadd.f32 %v1224, %v1236
    %v1238 = vpop.f32.mrf.mxu0
    %1239 = vdwg.mxu0
    %1240 = vmatpush.bf16.msra.mxu0 %v985
    %1241 = vmatpush.bf16.msra.mxu0 %v982
    %1242 = vmatpush.bf16.msra.mxu0 %v979
    %1243 = vmatpush.bf16.msra.mxu0 %v976
    %1244 = vmatpush.bf16.msra.mxu0 %v973
    %1245 = vmatpush.bf16.msra.mxu0 %v970
    %1246 = vmatpush.bf16.msra.mxu0 %v967
    %1247 = vmatpush.bf16.msra.mxu0 %v964
    %1248 = vmatmul.bf16.gmra.mxu0 %v415
    %v1249 = vpop.f32.mrf.mxu0
    %v1250 = vadd.f32 %v1237, %v1249
    %v1251 = vpop.f32.mrf.mxu0
    %1252 = vdwg.mxu0
    %1253 = vmatpush.bf16.msra.mxu0 %v1009
    %1254 = vmatpush.bf16.msra.mxu0 %v1006
    %1255 = vmatpush.bf16.msra.mxu0 %v1003
    %1256 = vmatpush.bf16.msra.mxu0 %v1000
    %1257 = vmatpush.bf16.msra.mxu0 %v997
    %1258 = vmatpush.bf16.msra.mxu0 %v994
    %1259 = vmatpush.bf16.msra.mxu0 %v991
    %1260 = vmatpush.bf16.msra.mxu0 %v988
    %1261 = vmatmul.bf16.gmra.mxu0 %v416
    %v1262 = vpop.f32.mrf.mxu0
    %v1263 = vadd.f32 %v1250, %v1262
    %v1264 = vpop.f32.mrf.mxu0
    %1265 = vdwg.mxu0
    %1266 = vmatpush.bf16.msra.mxu0 %v1033
    %1267 = vmatpush.bf16.msra.mxu0 %v1030
    %1268 = vmatpush.bf16.msra.mxu0 %v1027
    %1269 = vmatpush.bf16.msra.mxu0 %v1024
    %1270 = vmatpush.bf16.msra.mxu0 %v1021
    %1271 = vmatpush.bf16.msra.mxu0 %v1018
    %1272 = vmatpush.bf16.msra.mxu0 %v1015
    %1273 = vmatpush.bf16.msra.mxu0 %v1012
    %1274 = vmatmul.bf16.gmra.mxu0 %v417
    %v1275 = vpop.f32.mrf.mxu0
    %v1276 = vadd.f32 %v1263, %v1275
    %v1277 = vpop.f32.mrf.mxu0
    %1278 = vdwg.mxu0
    %1279 = vmatpush.bf16.msra.mxu0 %v1057
    %1280 = vmatpush.bf16.msra.mxu0 %v1054
    %1281 = vmatpush.bf16.msra.mxu0 %v1051
    %1282 = vmatpush.bf16.msra.mxu0 %v1048
    %1283 = vmatpush.bf16.msra.mxu0 %v1045
    %1284 = vmatpush.bf16.msra.mxu0 %v1042
    %1285 = vmatpush.bf16.msra.mxu0 %v1039
    %1286 = vmatpush.bf16.msra.mxu0 %v1036
    %1287 = vmatmul.bf16.gmra.mxu0 %v418
    %v1288 = vpop.f32.mrf.mxu0
    %v1289 = vadd.f32 %v1276, %v1288
    %v1290 = vpop.f32.mrf.mxu0
    %1291 = vdwg.mxu0
    %1292 = vmatpush.bf16.msra.mxu0 0
    %1293 = vmatpush.bf16.msra.mxu0 0
    %1294 = vmatpush.bf16.msra.mxu0 0
    %1295 = vmatpush.bf16.msra.mxu0 0
    %1296 = vmatpush.bf16.msra.mxu0 0
    %1297 = vmatpush.bf16.msra.mxu0 0
    %1298 = vmatpush.bf16.msra.mxu0 0
    %1299 = vmatpush.bf16.msra.mxu0 %v1060
    %1300 = vmatmul.bf16.gmra.mxu0 %v1212
    %v1301 = vpop.f32.mrf.mxu0
    %v1302 = vadd.f32 %v1289, %v1301
    %v1303 = vpop.f32.mrf.mxu0
    %1304 = vdwg.mxu0
    %1305 = vmatpush.bf16.msra.mxu0 %v938
    %1306 = vmatpush.bf16.msra.mxu0 %v935
    %1307 = vmatpush.bf16.msra.mxu0 %v932
    %1308 = vmatpush.bf16.msra.mxu0 %v929
    %1309 = vmatpush.bf16.msra.mxu0 %v926
    %1310 = vmatpush.bf16.msra.mxu0 %v923
    %1311 = vmatpush.bf16.msra.mxu0 %v920
    %1312 = vmatpush.bf16.msra.mxu0 %v917
    %1313 = vmatmul.bf16.gmra.mxu0 %v413
    %v1314 = vpop.f32.mrf.mxu0
    %v1315 = vadd.f32 %v397, %v1314
    %v1316 = vpop.f32.mrf.mxu0
    %1317 = vdwg.mxu0
    %1318 = vmatpush.bf16.msra.mxu0 %v962
    %1319 = vmatpush.bf16.msra.mxu0 %v959
    %1320 = vmatpush.bf16.msra.mxu0 %v956
    %1321 = vmatpush.bf16.msra.mxu0 %v953
    %1322 = vmatpush.bf16.msra.mxu0 %v950
    %1323 = vmatpush.bf16.msra.mxu0 %v947
    %1324 = vmatpush.bf16.msra.mxu0 %v944
    %1325 = vmatpush.bf16.msra.mxu0 %v941
    %1326 = vmatmul.bf16.gmra.mxu0 %v414
    %v1327 = vpop.f32.mrf.mxu0
    %v1328 = vadd.f32 %v1315, %v1327
    %v1329 = vpop.f32.mrf.mxu0
    %1330 = vdwg.mxu0
    %1331 = vmatpush.bf16.msra.mxu0 %v986
    %1332 = vmatpush.bf16.msra.mxu0 %v983
    %1333 = vmatpush.bf16.msra.mxu0 %v980
    %1334 = vmatpush.bf16.msra.mxu0 %v977
    %1335 = vmatpush.bf16.msra.mxu0 %v974
    %1336 = vmatpush.bf16.msra.mxu0 %v971
    %1337 = vmatpush.bf16.msra.mxu0 %v968
    %1338 = vmatpush.bf16.msra.mxu0 %v965
    %1339 = vmatmul.bf16.gmra.mxu0 %v415
    %v1340 = vpop.f32.mrf.mxu0
    %v1341 = vadd.f32 %v1328, %v1340
    %v1342 = vpop.f32.mrf.mxu0
    %1343 = vdwg.mxu0
    %1344 = vmatpush.bf16.msra.mxu0 %v1010
    %1345 = vmatpush.bf16.msra.mxu0 %v1007
    %1346 = vmatpush.bf16.msra.mxu0 %v1004
    %1347 = vmatpush.bf16.msra.mxu0 %v1001
    %1348 = vmatpush.bf16.msra.mxu0 %v998
    %1349 = vmatpush.bf16.msra.mxu0 %v995
    %1350 = vmatpush.bf16.msra.mxu0 %v992
    %1351 = vmatpush.bf16.msra.mxu0 %v989
    %1352 = vmatmul.bf16.gmra.mxu0 %v416
    %v1353 = vpop.f32.mrf.mxu0
    %v1354 = vadd.f32 %v1341, %v1353
    %v1355 = vpop.f32.mrf.mxu0
    %1356 = vdwg.mxu0
    %1357 = vmatpush.bf16.msra.mxu0 %v1034
    %1358 = vmatpush.bf16.msra.mxu0 %v1031
    %1359 = vmatpush.bf16.msra.mxu0 %v1028
    %1360 = vmatpush.bf16.msra.mxu0 %v1025
    %1361 = vmatpush.bf16.msra.mxu0 %v1022
    %1362 = vmatpush.bf16.msra.mxu0 %v1019
    %1363 = vmatpush.bf16.msra.mxu0 %v1016
    %1364 = vmatpush.bf16.msra.mxu0 %v1013
    %1365 = vmatmul.bf16.gmra.mxu0 %v417
    %v1366 = vpop.f32.mrf.mxu0
    %v1367 = vadd.f32 %v1354, %v1366
    %v1368 = vpop.f32.mrf.mxu0
    %1369 = vdwg.mxu0
    %1370 = vmatpush.bf16.msra.mxu0 %v1058
    %1371 = vmatpush.bf16.msra.mxu0 %v1055
    %1372 = vmatpush.bf16.msra.mxu0 %v1052
    %1373 = vmatpush.bf16.msra.mxu0 %v1049
    %1374 = vmatpush.bf16.msra.mxu0 %v1046
    %1375 = vmatpush.bf16.msra.mxu0 %v1043
    %1376 = vmatpush.bf16.msra.mxu0 %v1040
    %1377 = vmatpush.bf16.msra.mxu0 %v1037
    %1378 = vmatmul.bf16.gmra.mxu0 %v418
    %v1379 = vpop.f32.mrf.mxu0
    %v1380 = vadd.f32 %v1367, %v1379
    %v1381 = vpop.f32.mrf.mxu0
    %1382 = vdwg.mxu0
    %1383 = vmatpush.bf16.msra.mxu0 0
    %1384 = vmatpush.bf16.msra.mxu0 0
    %1385 = vmatpush.bf16.msra.mxu0 0
    %1386 = vmatpush.bf16.msra.mxu0 0
    %1387 = vmatpush.bf16.msra.mxu0 0
    %1388 = vmatpush.bf16.msra.mxu0 0
    %1389 = vmatpush.bf16.msra.mxu0 0
    %1390 = vmatpush.bf16.msra.mxu0 %v1061
    %1391 = vmatmul.bf16.gmra.mxu0 %v1212
    %v1392 = vpop.f32.mrf.mxu0
    %v1393 = vadd.f32 %v1380, %v1392
    %v1394 = vpop.f32.mrf.mxu0
    %1395 = vdwg.mxu0
    %1396 = vmatpush.bf16.msra.mxu0 %v939
    %1397 = vmatpush.bf16.msra.mxu0 %v936
    %1398 = vmatpush.bf16.msra.mxu0 %v933
    %1399 = vmatpush.bf16.msra.mxu0 %v930
    %1400 = vmatpush.bf16.msra.mxu0 %v927
    %1401 = vmatpush.bf16.msra.mxu0 %v924
    %1402 = vmatpush.bf16.msra.mxu0 %v921
    %1403 = vmatpush.bf16.msra.mxu0 %v918
    %1404 = vmatmul.bf16.gmra.mxu0 %v413
    %v1405 = vpop.f32.mrf.mxu0
    %v1406 = vadd.f32 %v398, %v1405
    %v1407 = vpop.f32.mrf.mxu0
    %1408 = vdwg.mxu0
    %1409 = vmatpush.bf16.msra.mxu0 %v963
    %1410 = vmatpush.bf16.msra.mxu0 %v960
    %1411 = vmatpush.bf16.msra.mxu0 %v957
    %1412 = vmatpush.bf16.msra.mxu0 %v954
    %1413 = vmatpush.bf16.msra.mxu0 %v951
    %1414 = vmatpush.bf16.msra.mxu0 %v948
    %1415 = vmatpush.bf16.msra.mxu0 %v945
    %1416 = vmatpush.bf16.msra.mxu0 %v942
    %1417 = vmatmul.bf16.gmra.mxu0 %v414
    %v1418 = vpop.f32.mrf.mxu0
    %v1419 = vadd.f32 %v1406, %v1418
    %v1420 = vpop.f32.mrf.mxu0
    %1421 = vdwg.mxu0
    %1422 = vmatpush.bf16.msra.mxu0 %v987
    %1423 = vmatpush.bf16.msra.mxu0 %v984
    %1424 = vmatpush.bf16.msra.mxu0 %v981
    %1425 = vmatpush.bf16.msra.mxu0 %v978
    %1426 = vmatpush.bf16.msra.mxu0 %v975
    %1427 = vmatpush.bf16.msra.mxu0 %v972
    %1428 = vmatpush.bf16.msra.mxu0 %v969
    %1429 = vmatpush.bf16.msra.mxu0 %v966
    %1430 = vmatmul.bf16.gmra.mxu0 %v415
    %v1431 = vpop.f32.mrf.mxu0
    %v1432 = vadd.f32 %v1419, %v1431
    %v1433 = vpop.f32.mrf.mxu0
    %1434 = vdwg.mxu0
    %1435 = vmatpush.bf16.msra.mxu0 %v1011
    %1436 = vmatpush.bf16.msra.mxu0 %v1008
    %1437 = vmatpush.bf16.msra.mxu0 %v1005
    %1438 = vmatpush.bf16.msra.mxu0 %v1002
    %1439 = vmatpush.bf16.msra.mxu0 %v999
    %1440 = vmatpush.bf16.msra.mxu0 %v996
    %1441 = vmatpush.bf16.msra.mxu0 %v993
    %1442 = vmatpush.bf16.msra.mxu0 %v990
    %1443 = vmatmul.bf16.gmra.mxu0 %v416
    %v1444 = vpop.f32.mrf.mxu0
    %v1445 = vadd.f32 %v1432, %v1444
    %v1446 = vpop.f32.mrf.mxu0
    %1447 = vdwg.mxu0
    %1448 = vmatpush.bf16.msra.mxu0 %v1035
    %1449 = vmatpush.bf16.msra.mxu0 %v1032
    %1450 = vmatpush.bf16.msra.mxu0 %v1029
    %1451 = vmatpush.bf16.msra.mxu0 %v1026
    %1452 = vmatpush.bf16.msra.mxu0 %v1023
    %1453 = vmatpush.bf16.msra.mxu0 %v1020
    %1454 = vmatpush.bf16.msra.mxu0 %v1017
    %1455 = vmatpush.bf16.msra.mxu0 %v1014
    %1456 = vmatmul.bf16.gmra.mxu0 %v417
    %v1457 = vpop.f32.mrf.mxu0
    %v1458 = vadd.f32 %v1445, %v1457
    %v1459 = vpop.f32.mrf.mxu0
    %1460 = vdwg.mxu0
    %1461 = vmatpush.bf16.msra.mxu0 %v1059
    %1462 = vmatpush.bf16.msra.mxu0 %v1056
    %1463 = vmatpush.bf16.msra.mxu0 %v1053
    %1464 = vmatpush.bf16.msra.mxu0 %v1050
    %1465 = vmatpush.bf16.msra.mxu0 %v1047
    %1466 = vmatpush.bf16.msra.mxu0 %v1044
    %1467 = vmatpush.bf16.msra.mxu0 %v1041
    %1468 = vmatpush.bf16.msra.mxu0 %v1038
    %1469 = vmatmul.bf16.gmra.mxu0 %v418
    %v1470 = vpop.f32.mrf.mxu0
    %v1471 = vadd.f32 %v1458, %v1470
    %v1472 = vpop.f32.mrf.mxu0
    %1473 = vdwg.mxu0
    %1474 = vmatpush.bf16.msra.mxu0 0
    %1475 = vmatpush.bf16.msra.mxu0 0
    %1476 = vmatpush.bf16.msra.mxu0 0
    %1477 = vmatpush.bf16.msra.mxu0 0
    %1478 = vmatpush.bf16.msra.mxu0 0
    %1479 = vmatpush.bf16.msra.mxu0 0
    %1480 = vmatpush.bf16.msra.mxu0 0
    %1481 = vmatpush.bf16.msra.mxu0 %v1062
    %1482 = vmatmul.bf16.gmra.mxu0 %v1212
    %v1483 = vpop.f32.mrf.mxu0
    %v1484 = vadd.f32 %v1471, %v1483
    %v1485 = vpop.f32.mrf.mxu0
    %1486 = vdwg.mxu0
    %v1487 = vtanh.pop %v1302
    %v1488 = vtanh.pop %v1393
    %v1489 = vtanh.pop %v1484
    %v1490 = vand.u32 %v191, 1
    %v1491 = vand.u32 %v192, 1
    %v1492 = vand.u32 %v193, 1
    %vm1493 = vcmp.eq.s32.totalorder %v1490, 0
    %vm1494 = vcmp.eq.s32.totalorder %v1491, 0
    %vm1495 = vcmp.eq.s32.totalorder %v1492, 0
    %v1496 = vmul.f32 %v1487, 2.0
    %v1497 = vmul.f32 %v1488, 2.0
    %v1498 = vmul.f32 %v1489, 2.0
    %v1499 = vsel %vm1493, %v1496, 0.0
    %v1500 = vsel %vm1494, %v1497, 0.0
    %v1501 = vsel %vm1495, %v1498, 0.0
    %v1502 = vpack.c.bf16 %v1499, %v1499
    %v1503 = vpack.c.bf16 %v1500, %v1500
    %v1504 = vpack.c.bf16 %v1501, %v1501
    %v1505 = vld [vmem:[#allocation8] sm:$0xff]
    %v1506 = vld [vmem:[#allocation8 + $0x8] sm:$0xf]
    %v1507 = vld [vmem:[#allocation8 + $0xc] sm:$0xff]
    %v1508 = vld [vmem:[#allocation8 + $0x14] sm:$0xf]
    %v1509 = vld [vmem:[#allocation8 + $0x18] sm:$0xff]
    %v1510 = vld [vmem:[#allocation8 + $0x20] sm:$0xf]
    %v1511 = vld [vmem:[#allocation8 + $0x24] sm:$0xff]
    %v1512 = vld [vmem:[#allocation8 + $0x2c] sm:$0xf]
    %v1513 = vld [vmem:[#allocation8 + $0x30] sm:$0xff]
    %v1514 = vld [vmem:[#allocation8 + $0x38] sm:$0xf]
    %v1515 = vld [vmem:[#allocation8 + $0x3c] sm:$0xff]
    %v1516 = vld [vmem:[#allocation8 + $0x44] sm:$0xf]
    %v1517 = vld [vmem:[#allocation8 + $0x48] sm:$0xff]
    %v1518 = vld [vmem:[#allocation8 + $0x50] sm:$0xf]
    %v1519 = vld [vmem:[#allocation8 + $0x54] sm:$0xff]
    %v1520 = vld [vmem:[#allocation8 + $0x5c] sm:$0xf]
    %v1521 = vld [vmem:[#allocation8 + $0x60] sm:$0xff]
    %v1522 = vld [vmem:[#allocation8 + $0x68] sm:$0xf]
    %v1523 = vld [vmem:[#allocation8 + $0x6c] sm:$0xff]
    %v1524 = vld [vmem:[#allocation8 + $0x74] sm:$0xf]
    %v1525 = vld [vmem:[#allocation8 + $0x78] sm:$0xff]
    %v1526 = vld [vmem:[#allocation8 + $0x80] sm:$0xf]
    %v1527 = vld [vmem:[#allocation8 + $0x84] sm:$0xff]
    %v1528 = vld [vmem:[#allocation8 + $0x8c] sm:$0xf]
    %v1529 = vld [vmem:[#allocation8 + $0x90] sm:$0xff]
    %v1530 = vld [vmem:[#allocation8 + $0x98] sm:$0xf]
    %v1531 = vld [vmem:[#allocation8 + $0x9c] sm:$0xff]
    %v1532 = vld [vmem:[#allocation8 + $0xa4] sm:$0xf]
    %v1533 = vld [vmem:[#allocation8 + $0xa8] sm:$0xff]
    %v1534 = vld [vmem:[#allocation8 + $0xb0] sm:$0xf]
    %v1535 = vld [vmem:[#allocation8 + $0xb4] sm:$0xff]
    %v1536 = vld [vmem:[#allocation8 + $0xbc] sm:$0xf]
    %v1537 = vld [vmem:[#allocation8 + $0xc0] sm:$0xff]
    %v1538 = vld [vmem:[#allocation8 + $0xc8] sm:$0xf]
    %v1539 = vld [vmem:[#allocation8 + $0xcc] sm:$0xff]
    %v1540 = vld [vmem:[#allocation8 + $0xd4] sm:$0xf]
    %v1541 = vld [vmem:[#allocation8 + $0xd8] sm:$0xff]
    %v1542 = vld [vmem:[#allocation8 + $0xe0] sm:$0xf]
    %v1543 = vld [vmem:[#allocation8 + $0xe4] sm:$0xff]
    %v1544 = vld [vmem:[#allocation8 + $0xec] sm:$0xf]
    %v1545 = vld [vmem:[#allocation8 + $0xf0] sm:$0xff]
    %v1546 = vld [vmem:[#allocation8 + $0xf8] sm:$0xf]
    %v1547 = vld [vmem:[#allocation8 + $0xfc] sm:$0xff]
    %v1548 = vld [vmem:[#allocation8 + $0x104] sm:$0xf]
    %v1549 = vld [vmem:[#allocation8 + $0x108] sm:$0xff]
    %v1550 = vld [vmem:[#allocation8 + $0x110] sm:$0xf]
    %v1551 = vld [vmem:[#allocation8 + $0x114] sm:$0xff]
    %v1552 = vld [vmem:[#allocation8 + $0x11c] sm:$0xf]
    %v1553 = vld [vmem:[#allocation8 + $0x120] sm:$0xff]
    %v1554 = vld [vmem:[#allocation8 + $0x128] sm:$0xf]
    %v1555 = vld [vmem:[#allocation8 + $0x12c] sm:$0xff]
    %v1556 = vld [vmem:[#allocation8 + $0x134] sm:$0xf]
    %v1557 = vld [vmem:[#allocation8 + $0x138] sm:$0xff]
    %v1558 = vld [vmem:[#allocation8 + $0x140] sm:$0xf]
    %v1559 = vld [vmem:[#allocation8 + $0x144] sm:$0xff]
    %v1560 = vld [vmem:[#allocation8 + $0x14c] sm:$0xf]
    %v1561 = vld [vmem:[#allocation8 + $0x150] sm:$0xff]
    %v1562 = vld [vmem:[#allocation8 + $0x158] sm:$0xf]
    %v1563 = vld [vmem:[#allocation8 + $0x15c] sm:$0xff]
    %v1564 = vld [vmem:[#allocation8 + $0x164] sm:$0xf]
    %v1565 = vld [vmem:[#allocation8 + $0x168] sm:$0xff]
    %v1566 = vld [vmem:[#allocation8 + $0x170] sm:$0xf]
    %v1567 = vld [vmem:[#allocation8 + $0x174] sm:$0xff]
    %v1568 = vld [vmem:[#allocation8 + $0x17c] sm:$0xf]
    %v1569 = vld [vmem:[#allocation8 + $0x180] sm:$0xff]
    %v1570 = vld [vmem:[#allocation8 + $0x188] sm:$0xf]
    %v1571 = vld [vmem:[#allocation8 + $0x18c] sm:$0xff]
    %v1572 = vld [vmem:[#allocation8 + $0x194] sm:$0xf]
    %v1573 = vld [vmem:[#allocation8 + $0x198] sm:$0xff]
    %v1574 = vld [vmem:[#allocation8 + $0x1a0] sm:$0xf]
    %v1575 = vld [vmem:[#allocation8 + $0x1a4] sm:$0xff]
    %v1576 = vld [vmem:[#allocation8 + $0x1ac] sm:$0xf]
    %v1577 = vld [vmem:[#allocation8 + $0x1b0] sm:$0xff]
    %v1578 = vld [vmem:[#allocation8 + $0x1b8] sm:$0xf]
    %v1579 = vld [vmem:[#allocation8 + $0x1bc] sm:$0xff]
    %v1580 = vld [vmem:[#allocation8 + $0x1c4] sm:$0xf]
    %v1581 = vld [vmem:[#allocation8 + $0x1c8] sm:$0xff]
    %v1582 = vld [vmem:[#allocation8 + $0x1d0] sm:$0xf]
    %v1583 = vld [vmem:[#allocation8 + $0x1d4] sm:$0xff]
    %v1584 = vld [vmem:[#allocation8 + $0x1dc] sm:$0xf]
    %v1585 = vld [vmem:[#allocation8 + $0x1e0] sm:$0xff]
    %v1586 = vld [vmem:[#allocation8 + $0x1e8] sm:$0xf]
    %v1587 = vld [vmem:[#allocation8 + $0x1ec] sm:$0xff]
    %v1588 = vld [vmem:[#allocation8 + $0x1f4] sm:$0xf]
    %v1589 = vld [vmem:[#allocation8 + $0x1f8] sm:$0xff]
    %v1590 = vld [vmem:[#allocation8 + $0x200] sm:$0xf]
    %v1591 = vld [vmem:[#allocation8 + $0x204] sm:$0xff]
    %v1592 = vld [vmem:[#allocation8 + $0x20c] sm:$0xf]
    %v1593 = vld [vmem:[#allocation8 + $0x210] sm:$0xff]
    %v1594 = vld [vmem:[#allocation8 + $0x218] sm:$0xf]
    %v1595 = vld [vmem:[#allocation8 + $0x21c] sm:$0xff]
    %v1596 = vld [vmem:[#allocation8 + $0x224] sm:$0xf]
    %v1597 = vld [vmem:[#allocation8 + $0x228] sm:$0xff]
    %v1598 = vld [vmem:[#allocation8 + $0x230] sm:$0xf]
    %v1599 = vld [vmem:[#allocation8 + $0x234] sm:$0xff]
    %v1600 = vld [vmem:[#allocation8 + $0x23c] sm:$0xf]
    %v1601 = vld [vmem:[#allocation9] sm:$0x7]
    %v1603 = vperm.slane %v1601, 0
    %v1604 = vperm.slane %v1601, 1
    %v1605 = vperm.slane %v1601, 2
    %v1705 = vunpack.c.l.b16 %v1505
    %v1706 = vunpack.c.h.b16 %v1505
    %v1707 = vunpack.c.l.b16 %v1506
    %v1708 = vunpack.c.l.b16 %v1507
    %v1709 = vunpack.c.h.b16 %v1507
    %v1710 = vunpack.c.l.b16 %v1508
    %v1711 = vunpack.c.l.b16 %v1509
    %v1712 = vunpack.c.h.b16 %v1509
    %v1713 = vunpack.c.l.b16 %v1510
    %v1714 = vunpack.c.l.b16 %v1511
    %v1715 = vunpack.c.h.b16 %v1511
    %v1716 = vunpack.c.l.b16 %v1512
    %v1717 = vunpack.c.l.b16 %v1513
    %v1718 = vunpack.c.h.b16 %v1513
    %v1719 = vunpack.c.l.b16 %v1514
    %v1720 = vunpack.c.l.b16 %v1515
    %v1721 = vunpack.c.h.b16 %v1515
    %v1722 = vunpack.c.l.b16 %v1516
    %v1723 = vunpack.c.l.b16 %v1517
    %v1724 = vunpack.c.h.b16 %v1517
    %v1725 = vunpack.c.l.b16 %v1518
    %v1726 = vunpack.c.l.b16 %v1519
    %v1727 = vunpack.c.h.b16 %v1519
    %v1728 = vunpack.c.l.b16 %v1520
    %v1729 = vunpack.c.l.b16 %v1521
    %v1730 = vunpack.c.h.b16 %v1521
    %v1731 = vunpack.c.l.b16 %v1522
    %v1732 = vunpack.c.l.b16 %v1523
    %v1733 = vunpack.c.h.b16 %v1523
    %v1734 = vunpack.c.l.b16 %v1524
    %v1735 = vunpack.c.l.b16 %v1525
    %v1736 = vunpack.c.h.b16 %v1525
    %v1737 = vunpack.c.l.b16 %v1526
    %v1738 = vunpack.c.l.b16 %v1527
    %v1739 = vunpack.c.h.b16 %v1527
    %v1740 = vunpack.c.l.b16 %v1528
    %v1741 = vunpack.c.l.b16 %v1529
    %v1742 = vunpack.c.h.b16 %v1529
    %v1743 = vunpack.c.l.b16 %v1530
    %v1744 = vunpack.c.l.b16 %v1531
    %v1745 = vunpack.c.h.b16 %v1531
    %v1746 = vunpack.c.l.b16 %v1532
    %v1747 = vunpack.c.l.b16 %v1533
    %v1748 = vunpack.c.h.b16 %v1533
    %v1749 = vunpack.c.l.b16 %v1534
    %v1750 = vunpack.c.l.b16 %v1535
    %v1751 = vunpack.c.h.b16 %v1535
    %v1752 = vunpack.c.l.b16 %v1536
    %v1753 = vunpack.c.l.b16 %v1537
    %v1754 = vunpack.c.h.b16 %v1537
    %v1755 = vunpack.c.l.b16 %v1538
    %v1756 = vunpack.c.l.b16 %v1539
    %v1757 = vunpack.c.h.b16 %v1539
    %v1758 = vunpack.c.l.b16 %v1540
    %v1759 = vunpack.c.l.b16 %v1541
    %v1760 = vunpack.c.h.b16 %v1541
    %v1761 = vunpack.c.l.b16 %v1542
    %v1762 = vunpack.c.l.b16 %v1543
    %v1763 = vunpack.c.h.b16 %v1543
    %v1764 = vunpack.c.l.b16 %v1544
    %v1765 = vunpack.c.l.b16 %v1545
    %v1766 = vunpack.c.h.b16 %v1545
    %v1767 = vunpack.c.l.b16 %v1546
    %v1768 = vunpack.c.l.b16 %v1547
    %v1769 = vunpack.c.h.b16 %v1547
    %v1770 = vunpack.c.l.b16 %v1548
    %v1771 = vunpack.c.l.b16 %v1549
    %v1772 = vunpack.c.h.b16 %v1549
    %v1773 = vunpack.c.l.b16 %v1550
    %v1774 = vunpack.c.l.b16 %v1551
    %v1775 = vunpack.c.h.b16 %v1551
    %v1776 = vunpack.c.l.b16 %v1552
    %v1777 = vunpack.c.l.b16 %v1553
    %v1778 = vunpack.c.h.b16 %v1553
    %v1779 = vunpack.c.l.b16 %v1554
    %v1780 = vunpack.c.l.b16 %v1555
    %v1781 = vunpack.c.h.b16 %v1555
    %v1782 = vunpack.c.l.b16 %v1556
    %v1783 = vunpack.c.l.b16 %v1557
    %v1784 = vunpack.c.h.b16 %v1557
    %v1785 = vunpack.c.l.b16 %v1558
    %v1786 = vunpack.c.l.b16 %v1559
    %v1787 = vunpack.c.h.b16 %v1559
    %v1788 = vunpack.c.l.b16 %v1560
    %v1789 = vunpack.c.l.b16 %v1561
    %v1790 = vunpack.c.h.b16 %v1561
    %v1791 = vunpack.c.l.b16 %v1562
    %v1792 = vunpack.c.l.b16 %v1563
    %v1793 = vunpack.c.h.b16 %v1563
    %v1794 = vunpack.c.l.b16 %v1564
    %v1795 = vunpack.c.l.b16 %v1565
    %v1796 = vunpack.c.h.b16 %v1565
    %v1797 = vunpack.c.l.b16 %v1566
    %v1798 = vunpack.c.l.b16 %v1567
    %v1799 = vunpack.c.h.b16 %v1567
    %v1800 = vunpack.c.l.b16 %v1568
    %v1801 = vunpack.c.l.b16 %v1569
    %v1802 = vunpack.c.h.b16 %v1569
    %v1803 = vunpack.c.l.b16 %v1570
    %v1804 = vunpack.c.l.b16 %v1571
    %v1805 = vunpack.c.h.b16 %v1571
    %v1806 = vunpack.c.l.b16 %v1572
    %v1807 = vunpack.c.l.b16 %v1573
    %v1808 = vunpack.c.h.b16 %v1573
    %v1809 = vunpack.c.l.b16 %v1574
    %v1810 = vunpack.c.l.b16 %v1575
    %v1811 = vunpack.c.h.b16 %v1575
    %v1812 = vunpack.c.l.b16 %v1576
    %v1813 = vunpack.c.l.b16 %v1577
    %v1814 = vunpack.c.h.b16 %v1577
    %v1815 = vunpack.c.l.b16 %v1578
    %v1816 = vunpack.c.l.b16 %v1579
    %v1817 = vunpack.c.h.b16 %v1579
    %v1818 = vunpack.c.l.b16 %v1580
    %v1819 = vunpack.c.l.b16 %v1581
    %v1820 = vunpack.c.h.b16 %v1581
    %v1821 = vunpack.c.l.b16 %v1582
    %v1822 = vunpack.c.l.b16 %v1583
    %v1823 = vunpack.c.h.b16 %v1583
    %v1824 = vunpack.c.l.b16 %v1584
    %v1825 = vunpack.c.l.b16 %v1585
    %v1826 = vunpack.c.h.b16 %v1585
    %v1827 = vunpack.c.l.b16 %v1586
    %v1828 = vunpack.c.l.b16 %v1587
    %v1829 = vunpack.c.h.b16 %v1587
    %v1830 = vunpack.c.l.b16 %v1588
    %v1831 = vunpack.c.l.b16 %v1589
    %v1832 = vunpack.c.h.b16 %v1589
    %v1833 = vunpack.c.l.b16 %v1590
    %v1834 = vunpack.c.l.b16 %v1591
    %v1835 = vunpack.c.h.b16 %v1591
    %v1836 = vunpack.c.l.b16 %v1592
    %v1837 = vunpack.c.l.b16 %v1593
    %v1838 = vunpack.c.h.b16 %v1593
    %v1839 = vunpack.c.l.b16 %v1594
    %v1840 = vunpack.c.l.b16 %v1595
    %v1841 = vunpack.c.h.b16 %v1595
    %v1842 = vunpack.c.l.b16 %v1596
    %v1843 = vunpack.c.l.b16 %v1597
    %v1844 = vunpack.c.h.b16 %v1597
    %v1845 = vunpack.c.l.b16 %v1598
    %v1846 = vunpack.c.l.b16 %v1599
    %v1847 = vunpack.c.h.b16 %v1599
    %v1848 = vunpack.c.l.b16 %v1600
    %v1849 = vpack.c.b16 %v1708, %v1705
    %v1850 = vpack.c.b16 %v1709, %v1706
    %v1851 = vpack.c.b16 %v1710, %v1707
    %v1852 = vpack.c.b16 %v1714, %v1711
    %v1853 = vpack.c.b16 %v1715, %v1712
    %v1854 = vpack.c.b16 %v1716, %v1713
    %v1855 = vpack.c.b16 %v1720, %v1717
    %v1856 = vpack.c.b16 %v1721, %v1718
    %v1857 = vpack.c.b16 %v1722, %v1719
    %v1858 = vpack.c.b16 %v1726, %v1723
    %v1859 = vpack.c.b16 %v1727, %v1724
    %v1860 = vpack.c.b16 %v1728, %v1725
    %v1861 = vpack.c.b16 %v1732, %v1729
    %v1862 = vpack.c.b16 %v1733, %v1730
    %v1863 = vpack.c.b16 %v1734, %v1731
    %v1864 = vpack.c.b16 %v1738, %v1735
    %v1865 = vpack.c.b16 %v1739, %v1736
    %v1866 = vpack.c.b16 %v1740, %v1737
    %v1867 = vpack.c.b16 %v1744, %v1741
    %v1868 = vpack.c.b16 %v1745, %v1742
    %v1869 = vpack.c.b16 %v1746, %v1743
    %v1870 = vpack.c.b16 %v1750, %v1747
    %v1871 = vpack.c.b16 %v1751, %v1748
    %v1872 = vpack.c.b16 %v1752, %v1749
    %v1873 = vpack.c.b16 %v1756, %v1753
    %v1874 = vpack.c.b16 %v1757, %v1754
    %v1875 = vpack.c.b16 %v1758, %v1755
    %v1876 = vpack.c.b16 %v1762, %v1759
    %v1877 = vpack.c.b16 %v1763, %v1760
    %v1878 = vpack.c.b16 %v1764, %v1761
    %v1879 = vpack.c.b16 %v1768, %v1765
    %v1880 = vpack.c.b16 %v1769, %v1766
    %v1881 = vpack.c.b16 %v1770, %v1767
    %v1882 = vpack.c.b16 %v1774, %v1771
    %v1883 = vpack.c.b16 %v1775, %v1772
    %v1884 = vpack.c.b16 %v1776, %v1773
    %v1885 = vpack.c.b16 %v1780, %v1777
    %v1886 = vpack.c.b16 %v1781, %v1778
    %v1887 = vpack.c.b16 %v1782, %v1779
    %v1888 = vpack.c.b16 %v1786, %v1783
    %v1889 = vpack.c.b16 %v1787, %v1784
    %v1890 = vpack.c.b16 %v1788, %v1785
    %v1891 = vpack.c.b16 %v1792, %v1789
    %v1892 = vpack.c.b16 %v1793, %v1790
    %v1893 = vpack.c.b16 %v1794, %v1791
    %v1894 = vpack.c.b16 %v1798, %v1795
    %v1895 = vpack.c.b16 %v1799, %v1796
    %v1896 = vpack.c.b16 %v1800, %v1797
    %v1897 = vpack.c.b16 %v1804, %v1801
    %v1898 = vpack.c.b16 %v1805, %v1802
    %v1899 = vpack.c.b16 %v1806, %v1803
    %v1900 = vpack.c.b16 %v1810, %v1807
    %v1901 = vpack.c.b16 %v1811, %v1808
    %v1902 = vpack.c.b16 %v1812, %v1809
    %v1903 = vpack.c.b16 %v1816, %v1813
    %v1904 = vpack.c.b16 %v1817, %v1814
    %v1905 = vpack.c.b16 %v1818, %v1815
    %v1906 = vpack.c.b16 %v1822, %v1819
    %v1907 = vpack.c.b16 %v1823, %v1820
    %v1908 = vpack.c.b16 %v1824, %v1821
    %v1909 = vpack.c.b16 %v1828, %v1825
    %v1910 = vpack.c.b16 %v1829, %v1826
    %v1911 = vpack.c.b16 %v1830, %v1827
    %v1912 = vpack.c.b16 %v1834, %v1831
    %v1913 = vpack.c.b16 %v1835, %v1832
    %v1914 = vpack.c.b16 %v1836, %v1833
    %v1915 = vpack.c.b16 %v1840, %v1837
    %v1916 = vpack.c.b16 %v1841, %v1838
    %v1917 = vpack.c.b16 %v1842, %v1839
    %v1918 = vpack.c.b16 %v1846, %v1843
    %v1919 = vpack.c.b16 %v1847, %v1844
    %v1920 = vpack.c.b16 %v1848, %v1845
    %1993 = vmatpush.bf16.msra.mxu0 %v1870
    %1994 = vmatpush.bf16.msra.mxu0 %v1867
    %1995 = vmatpush.bf16.msra.mxu0 %v1864
    %1996 = vmatpush.bf16.msra.mxu0 %v1861
    %1997 = vmatpush.bf16.msra.mxu0 %v1858
    %1998 = vmatpush.bf16.msra.mxu0 %v1855
    %1999 = vmatpush.bf16.msra.mxu0 %v1852
    %2000 = vmatpush.bf16.msra.mxu0 %v1849
    %2001 = vmatmul.bf16.gmra.mxu0 %v1502
    %v2002 = vpop.f32.mrf.mxu0
    %v2003 = vadd.f32 %v1603, %v2002
    %v2004 = vpop.f32.mrf.mxu0
    %2005 = vdwg.mxu0
    %2006 = vmatpush.bf16.msra.mxu0 %v1894
    %2007 = vmatpush.bf16.msra.mxu0 %v1891
    %2008 = vmatpush.bf16.msra.mxu0 %v1888
    %2009 = vmatpush.bf16.msra.mxu0 %v1885
    %2010 = vmatpush.bf16.msra.mxu0 %v1882
    %2011 = vmatpush.bf16.msra.mxu0 %v1879
    %2012 = vmatpush.bf16.msra.mxu0 %v1876
    %2013 = vmatpush.bf16.msra.mxu0 %v1873
    %2014 = vmatmul.bf16.gmra.mxu0 %v1503
    %v2015 = vpop.f32.mrf.mxu0
    %v2016 = vadd.f32 %v2003, %v2015
    %v2017 = vpop.f32.mrf.mxu0
    %2018 = vdwg.mxu0
    %2019 = vmatpush.bf16.msra.mxu0 %v1918
    %2020 = vmatpush.bf16.msra.mxu0 %v1915
    %2021 = vmatpush.bf16.msra.mxu0 %v1912
    %2022 = vmatpush.bf16.msra.mxu0 %v1909
    %2023 = vmatpush.bf16.msra.mxu0 %v1906
    %2024 = vmatpush.bf16.msra.mxu0 %v1903
    %2025 = vmatpush.bf16.msra.mxu0 %v1900
    %2026 = vmatpush.bf16.msra.mxu0 %v1897
    %2027 = vmatmul.bf16.gmra.mxu0 %v1504
    %v2028 = vpop.f32.mrf.mxu0
    %v2029 = vadd.f32 %v2016, %v2028
    %v2030 = vpop.f32.mrf.mxu0
    %2031 = vdwg.mxu0
    %2032 = vmatpush.bf16.msra.mxu0 %v1871
    %2033 = vmatpush.bf16.msra.mxu0 %v1868
    %2034 = vmatpush.bf16.msra.mxu0 %v1865
    %2035 = vmatpush.bf16.msra.mxu0 %v1862
    %2036 = vmatpush.bf16.msra.mxu0 %v1859
    %2037 = vmatpush.bf16.msra.mxu0 %v1856
    %2038 = vmatpush.bf16.msra.mxu0 %v1853
    %2039 = vmatpush.bf16.msra.mxu0 %v1850
    %2040 = vmatmul.bf16.gmra.mxu0 %v1502
    %v2041 = vpop.f32.mrf.mxu0
    %v2042 = vadd.f32 %v1604, %v2041
    %v2043 = vpop.f32.mrf.mxu0
    %2044 = vdwg.mxu0
    %2045 = vmatpush.bf16.msra.mxu0 %v1895
    %2046 = vmatpush.bf16.msra.mxu0 %v1892
    %2047 = vmatpush.bf16.msra.mxu0 %v1889
    %2048 = vmatpush.bf16.msra.mxu0 %v1886
    %2049 = vmatpush.bf16.msra.mxu0 %v1883
    %2050 = vmatpush.bf16.msra.mxu0 %v1880
    %2051 = vmatpush.bf16.msra.mxu0 %v1877
    %2052 = vmatpush.bf16.msra.mxu0 %v1874
    %2053 = vmatmul.bf16.gmra.mxu0 %v1503
    %v2054 = vpop.f32.mrf.mxu0
    %v2055 = vadd.f32 %v2042, %v2054
    %v2056 = vpop.f32.mrf.mxu0
    %2057 = vdwg.mxu0
    %2058 = vmatpush.bf16.msra.mxu0 %v1919
    %2059 = vmatpush.bf16.msra.mxu0 %v1916
    %2060 = vmatpush.bf16.msra.mxu0 %v1913
    %2061 = vmatpush.bf16.msra.mxu0 %v1910
    %2062 = vmatpush.bf16.msra.mxu0 %v1907
    %2063 = vmatpush.bf16.msra.mxu0 %v1904
    %2064 = vmatpush.bf16.msra.mxu0 %v1901
    %2065 = vmatpush.bf16.msra.mxu0 %v1898
    %2066 = vmatmul.bf16.gmra.mxu0 %v1504
    %v2067 = vpop.f32.mrf.mxu0
    %v2068 = vadd.f32 %v2055, %v2067
    %v2069 = vpop.f32.mrf.mxu0
    %2070 = vdwg.mxu0
    %2071 = vmatpush.bf16.msra.mxu0 %v1872
    %2072 = vmatpush.bf16.msra.mxu0 %v1869
    %2073 = vmatpush.bf16.msra.mxu0 %v1866
    %2074 = vmatpush.bf16.msra.mxu0 %v1863
    %2075 = vmatpush.bf16.msra.mxu0 %v1860
    %2076 = vmatpush.bf16.msra.mxu0 %v1857
    %2077 = vmatpush.bf16.msra.mxu0 %v1854
    %2078 = vmatpush.bf16.msra.mxu0 %v1851
    %2079 = vmatmul.bf16.gmra.mxu0 %v1502
    %v2080 = vpop.f32.mrf.mxu0
    %v2081 = vadd.f32 %v1605, %v2080
    %v2082 = vpop.f32.mrf.mxu0
    %2083 = vdwg.mxu0
    %2084 = vmatpush.bf16.msra.mxu0 %v1896
    %2085 = vmatpush.bf16.msra.mxu0 %v1893
    %2086 = vmatpush.bf16.msra.mxu0 %v1890
    %2087 = vmatpush.bf16.msra.mxu0 %v1887
    %2088 = vmatpush.bf16.msra.mxu0 %v1884
    %2089 = vmatpush.bf16.msra.mxu0 %v1881
    %2090 = vmatpush.bf16.msra.mxu0 %v1878
    %2091 = vmatpush.bf16.msra.mxu0 %v1875
    %2092 = vmatmul.bf16.gmra.mxu0 %v1503
    %v2093 = vpop.f32.mrf.mxu0
    %v2094 = vadd.f32 %v2081, %v2093
    %v2095 = vpop.f32.mrf.mxu0
    %2096 = vdwg.mxu0
    %2097 = vmatpush.bf16.msra.mxu0 %v1920
    %2098 = vmatpush.bf16.msra.mxu0 %v1917
    %2099 = vmatpush.bf16.msra.mxu0 %v1914
    %2100 = vmatpush.bf16.msra.mxu0 %v1911
    %2101 = vmatpush.bf16.msra.mxu0 %v1908
    %2102 = vmatpush.bf16.msra.mxu0 %v1905
    %2103 = vmatpush.bf16.msra.mxu0 %v1902
    %2104 = vmatpush.bf16.msra.mxu0 %v1899
    %2105 = vmatmul.bf16.gmra.mxu0 %v1504
    %v2106 = vpop.f32.mrf.mxu0
    %v2107 = vadd.f32 %v2094, %v2106
    %v2108 = vpop.f32.mrf.mxu0
    %2109 = vdwg.mxu0
    %v2110 = vtanh.pop %v2029
    %v2111 = vtanh.pop %v2068
    %v2112 = vtanh.pop %v2107
    %v2113 = vand.u32 %v191, 2
    %v2114 = vand.u32 %v192, 2
    %v2115 = vand.u32 %v193, 2
    %vm2116 = vcmp.eq.s32.totalorder %v2113, 0
    %vm2117 = vcmp.eq.s32.totalorder %v2114, 0
    %vm2118 = vcmp.eq.s32.totalorder %v2115, 0
    %v2119 = vmul.f32 %v2110, 2.0
    %v2120 = vmul.f32 %v2111, 2.0
    %v2121 = vmul.f32 %v2112, 2.0
    %v2122 = vsel %vm2116, %v2119, 0.0
    %v2123 = vsel %vm2117, %v2120, 0.0
    %v2124 = vsel %vm2118, %v2121, 0.0
    %v2125 = vpack.c.bf16 %v2122, %v2122
    %v2126 = vpack.c.bf16 %v2123, %v2123
    %v2127 = vpack.c.bf16 %v2124, %v2124
    %v2128 = vld [vmem:[#allocation11] sm:$0xff]
    %v2129 = vld [vmem:[#allocation11 + $0x8] sm:$0xf]
    %v2130 = vld [vmem:[#allocation11 + $0xc] sm:$0xff]
    %v2131 = vld [vmem:[#allocation11 + $0x14] sm:$0xf]
    %v2132 = vld [vmem:[#allocation11 + $0x18] sm:$0xff]
    %v2133 = vld [vmem:[#allocation11 + $0x20] sm:$0xf]
    %v2134 = vld [vmem:[#allocation11 + $0x24] sm:$0xff]
    %v2135 = vld [vmem:[#allocation11 + $0x2c] sm:$0xf]
    %v2136 = vld [vmem:[#allocation11 + $0x30] sm:$0xff]
    %v2137 = vld [vmem:[#allocation11 + $0x38] sm:$0xf]
    %v2138 = vld [vmem:[#allocation11 + $0x3c] sm:$0xff]
    %v2139 = vld [vmem:[#allocation11 + $0x44] sm:$0xf]
    %v2140 = vld [vmem:[#allocation11 + $0x48] sm:$0xff]
    %v2141 = vld [vmem:[#allocation11 + $0x50] sm:$0xf]
    %v2142 = vld [vmem:[#allocation11 + $0x54] sm:$0xff]
    %v2143 = vld [vmem:[#allocation11 + $0x5c] sm:$0xf]
    %v2144 = vld [vmem:[#allocation11 + $0x60] sm:$0xff]
    %v2145 = vld [vmem:[#allocation11 + $0x68] sm:$0xf]
    %v2146 = vld [vmem:[#allocation11 + $0x6c] sm:$0xff]
    %v2147 = vld [vmem:[#allocation11 + $0x74] sm:$0xf]
    %v2148 = vld [vmem:[#allocation11 + $0x78] sm:$0xff]
    %v2149 = vld [vmem:[#allocation11 + $0x80] sm:$0xf]
    %v2150 = vld [vmem:[#allocation11 + $0x84] sm:$0xff]
    %v2151 = vld [vmem:[#allocation11 + $0x8c] sm:$0xf]
    %v2152 = vld [vmem:[#allocation11 + $0x90] sm:$0xff]
    %v2153 = vld [vmem:[#allocation11 + $0x98] sm:$0xf]
    %v2154 = vld [vmem:[#allocation11 + $0x9c] sm:$0xff]
    %v2155 = vld [vmem:[#allocation11 + $0xa4] sm:$0xf]
    %v2156 = vld [vmem:[#allocation11 + $0xa8] sm:$0xff]
    %v2157 = vld [vmem:[#allocation11 + $0xb0] sm:$0xf]
    %v2158 = vld [vmem:[#allocation11 + $0xb4] sm:$0xff]
    %v2159 = vld [vmem:[#allocation11 + $0xbc] sm:$0xf]
    %v2160 = vld [vmem:[#allocation11 + $0xc0] sm:$0xff]
    %v2161 = vld [vmem:[#allocation11 + $0xc8] sm:$0xf]
    %v2162 = vld [vmem:[#allocation11 + $0xcc] sm:$0xff]
    %v2163 = vld [vmem:[#allocation11 + $0xd4] sm:$0xf]
    %v2164 = vld [vmem:[#allocation11 + $0xd8] sm:$0xff]
    %v2165 = vld [vmem:[#allocation11 + $0xe0] sm:$0xf]
    %v2166 = vld [vmem:[#allocation11 + $0xe4] sm:$0xff]
    %v2167 = vld [vmem:[#allocation11 + $0xec] sm:$0xf]
    %v2168 = vld [vmem:[#allocation11 + $0xf0] sm:$0xff]
    %v2169 = vld [vmem:[#allocation11 + $0xf8] sm:$0xf]
    %v2170 = vld [vmem:[#allocation11 + $0xfc] sm:$0xff]
    %v2171 = vld [vmem:[#allocation11 + $0x104] sm:$0xf]
    %v2172 = vld [vmem:[#allocation11 + $0x108] sm:$0xff]
    %v2173 = vld [vmem:[#allocation11 + $0x110] sm:$0xf]
    %v2174 = vld [vmem:[#allocation11 + $0x114] sm:$0xff]
    %v2175 = vld [vmem:[#allocation11 + $0x11c] sm:$0xf]
    %v2176 = vld [vmem:[#allocation11 + $0x120] sm:$0xff]
    %v2177 = vld [vmem:[#allocation11 + $0x128] sm:$0xf]
    %v2178 = vld [vmem:[#allocation11 + $0x12c] sm:$0xff]
    %v2179 = vld [vmem:[#allocation11 + $0x134] sm:$0xf]
    %v2180 = vld [vmem:[#allocation11 + $0x138] sm:$0xff]
    %v2181 = vld [vmem:[#allocation11 + $0x140] sm:$0xf]
    %v2182 = vld [vmem:[#allocation11 + $0x144] sm:$0xff]
    %v2183 = vld [vmem:[#allocation11 + $0x14c] sm:$0xf]
    %v2184 = vld [vmem:[#allocation11 + $0x150] sm:$0xff]
    %v2185 = vld [vmem:[#allocation11 + $0x158] sm:$0xf]
    %v2186 = vld [vmem:[#allocation11 + $0x15c] sm:$0xff]
    %v2187 = vld [vmem:[#allocation11 + $0x164] sm:$0xf]
    %v2188 = vld [vmem:[#allocation11 + $0x168] sm:$0xff]
    %v2189 = vld [vmem:[#allocation11 + $0x170] sm:$0xf]
    %v2190 = vld [vmem:[#allocation11 + $0x174] sm:$0xff]
    %v2191 = vld [vmem:[#allocation11 + $0x17c] sm:$0xf]
    %v2192 = vld [vmem:[#allocation11 + $0x180] sm:$0xff]
    %v2193 = vld [vmem:[#allocation11 + $0x188] sm:$0xf]
    %v2194 = vld [vmem:[#allocation11 + $0x18c] sm:$0xff]
    %v2195 = vld [vmem:[#allocation11 + $0x194] sm:$0xf]
    %v2196 = vld [vmem:[#allocation11 + $0x198] sm:$0xff]
    %v2197 = vld [vmem:[#allocation11 + $0x1a0] sm:$0xf]
    %v2198 = vld [vmem:[#allocation11 + $0x1a4] sm:$0xff]
    %v2199 = vld [vmem:[#allocation11 + $0x1ac] sm:$0xf]
    %v2200 = vld [vmem:[#allocation11 + $0x1b0] sm:$0xff]
    %v2201 = vld [vmem:[#allocation11 + $0x1b8] sm:$0xf]
    %v2202 = vld [vmem:[#allocation11 + $0x1bc] sm:$0xff]
    %v2203 = vld [vmem:[#allocation11 + $0x1c4] sm:$0xf]
    %v2204 = vld [vmem:[#allocation11 + $0x1c8] sm:$0xff]
    %v2205 = vld [vmem:[#allocation11 + $0x1d0] sm:$0xf]
    %v2206 = vld [vmem:[#allocation11 + $0x1d4] sm:$0xff]
    %v2207 = vld [vmem:[#allocation11 + $0x1dc] sm:$0xf]
    %v2208 = vld [vmem:[#allocation11 + $0x1e0] sm:$0xff]
    %v2209 = vld [vmem:[#allocation11 + $0x1e8] sm:$0xf]
    %v2210 = vld [vmem:[#allocation11 + $0x1ec] sm:$0xff]
    %v2211 = vld [vmem:[#allocation11 + $0x1f4] sm:$0xf]
    %v2212 = vld [vmem:[#allocation11 + $0x1f8] sm:$0xff]
    %v2213 = vld [vmem:[#allocation11 + $0x200] sm:$0xf]
    %v2214 = vld [vmem:[#allocation11 + $0x204] sm:$0xff]
    %v2215 = vld [vmem:[#allocation11 + $0x20c] sm:$0xf]
    %v2216 = vld [vmem:[#allocation11 + $0x210] sm:$0xff]
    %v2217 = vld [vmem:[#allocation11 + $0x218] sm:$0xf]
    %v2218 = vld [vmem:[#allocation11 + $0x21c] sm:$0xff]
    %v2219 = vld [vmem:[#allocation11 + $0x224] sm:$0xf]
    %v2220 = vld [vmem:[#allocation11 + $0x228] sm:$0xff]
    %v2221 = vld [vmem:[#allocation11 + $0x230] sm:$0xf]
    %v2222 = vld [vmem:[#allocation11 + $0x234] sm:$0xff]
    %v2223 = vld [vmem:[#allocation11 + $0x23c] sm:$0xf]
    %v2224 = vld [vmem:[%s7] sm:$0x7]
    %v2226 = vperm.slane %v2224, 0
    %v2227 = vperm.slane %v2224, 1
    %v2228 = vperm.slane %v2224, 2
    %v2328 = vunpack.c.l.b16 %v2128
    %v2329 = vunpack.c.h.b16 %v2128
    %v2330 = vunpack.c.l.b16 %v2129
    %v2331 = vunpack.c.l.b16 %v2130
    %v2332 = vunpack.c.h.b16 %v2130
    %v2333 = vunpack.c.l.b16 %v2131
    %v2334 = vunpack.c.l.b16 %v2132
    %v2335 = vunpack.c.h.b16 %v2132
    %v2336 = vunpack.c.l.b16 %v2133
    %v2337 = vunpack.c.l.b16 %v2134
    %v2338 = vunpack.c.h.b16 %v2134
    %v2339 = vunpack.c.l.b16 %v2135
    %v2340 = vunpack.c.l.b16 %v2136
    %v2341 = vunpack.c.h.b16 %v2136
    %v2342 = vunpack.c.l.b16 %v2137
    %v2343 = vunpack.c.l.b16 %v2138
    %v2344 = vunpack.c.h.b16 %v2138
    %v2345 = vunpack.c.l.b16 %v2139
    %v2346 = vunpack.c.l.b16 %v2140
    %v2347 = vunpack.c.h.b16 %v2140
    %v2348 = vunpack.c.l.b16 %v2141
    %v2349 = vunpack.c.l.b16 %v2142
    %v2350 = vunpack.c.h.b16 %v2142
    %v2351 = vunpack.c.l.b16 %v2143
    %v2352 = vunpack.c.l.b16 %v2144
    %v2353 = vunpack.c.h.b16 %v2144
    %v2354 = vunpack.c.l.b16 %v2145
    %v2355 = vunpack.c.l.b16 %v2146
    %v2356 = vunpack.c.h.b16 %v2146
    %v2357 = vunpack.c.l.b16 %v2147
    %v2358 = vunpack.c.l.b16 %v2148
    %v2359 = vunpack.c.h.b16 %v2148
    %v2360 = vunpack.c.l.b16 %v2149
    %v2361 = vunpack.c.l.b16 %v2150
    %v2362 = vunpack.c.h.b16 %v2150
    %v2363 = vunpack.c.l.b16 %v2151
    %v2364 = vunpack.c.l.b16 %v2152
    %v2365 = vunpack.c.h.b16 %v2152
    %v2366 = vunpack.c.l.b16 %v2153
    %v2367 = vunpack.c.l.b16 %v2154
    %v2368 = vunpack.c.h.b16 %v2154
    %v2369 = vunpack.c.l.b16 %v2155
    %v2370 = vunpack.c.l.b16 %v2156
    %v2371 = vunpack.c.h.b16 %v2156
    %v2372 = vunpack.c.l.b16 %v2157
    %v2373 = vunpack.c.l.b16 %v2158
    %v2374 = vunpack.c.h.b16 %v2158
    %v2375 = vunpack.c.l.b16 %v2159
    %v2376 = vunpack.c.l.b16 %v2160
    %v2377 = vunpack.c.h.b16 %v2160
    %v2378 = vunpack.c.l.b16 %v2161
    %v2379 = vunpack.c.l.b16 %v2162
    %v2380 = vunpack.c.h.b16 %v2162
    %v2381 = vunpack.c.l.b16 %v2163
    %v2382 = vunpack.c.l.b16 %v2164
    %v2383 = vunpack.c.h.b16 %v2164
    %v2384 = vunpack.c.l.b16 %v2165
    %v2385 = vunpack.c.l.b16 %v2166
    %v2386 = vunpack.c.h.b16 %v2166
    %v2387 = vunpack.c.l.b16 %v2167
    %v2388 = vunpack.c.l.b16 %v2168
    %v2389 = vunpack.c.h.b16 %v2168
    %v2390 = vunpack.c.l.b16 %v2169
    %v2391 = vunpack.c.l.b16 %v2170
    %v2392 = vunpack.c.h.b16 %v2170
    %v2393 = vunpack.c.l.b16 %v2171
    %v2394 = vunpack.c.l.b16 %v2172
    %v2395 = vunpack.c.h.b16 %v2172
    %v2396 = vunpack.c.l.b16 %v2173
    %v2397 = vunpack.c.l.b16 %v2174
    %v2398 = vunpack.c.h.b16 %v2174
    %v2399 = vunpack.c.l.b16 %v2175
    %v2400 = vunpack.c.l.b16 %v2176
    %v2401 = vunpack.c.h.b16 %v2176
    %v2402 = vunpack.c.l.b16 %v2177
    %v2403 = vunpack.c.l.b16 %v2178
    %v2404 = vunpack.c.h.b16 %v2178
    %v2405 = vunpack.c.l.b16 %v2179
    %v2406 = vunpack.c.l.b16 %v2180
    %v2407 = vunpack.c.h.b16 %v2180
    %v2408 = vunpack.c.l.b16 %v2181
    %v2409 = vunpack.c.l.b16 %v2182
    %v2410 = vunpack.c.h.b16 %v2182
    %v2411 = vunpack.c.l.b16 %v2183
    %v2412 = vunpack.c.l.b16 %v2184
    %v2413 = vunpack.c.h.b16 %v2184
    %v2414 = vunpack.c.l.b16 %v2185
    %v2415 = vunpack.c.l.b16 %v2186
    %v2416 = vunpack.c.h.b16 %v2186
    %v2417 = vunpack.c.l.b16 %v2187
    %v2418 = vunpack.c.l.b16 %v2188
    %v2419 = vunpack.c.h.b16 %v2188
    %v2420 = vunpack.c.l.b16 %v2189
    %v2421 = vunpack.c.l.b16 %v2190
    %v2422 = vunpack.c.h.b16 %v2190
    %v2423 = vunpack.c.l.b16 %v2191
    %v2424 = vunpack.c.l.b16 %v2192
    %v2425 = vunpack.c.h.b16 %v2192
    %v2426 = vunpack.c.l.b16 %v2193
    %v2427 = vunpack.c.l.b16 %v2194
    %v2428 = vunpack.c.h.b16 %v2194
    %v2429 = vunpack.c.l.b16 %v2195
    %v2430 = vunpack.c.l.b16 %v2196
    %v2431 = vunpack.c.h.b16 %v2196
    %v2432 = vunpack.c.l.b16 %v2197
    %v2433 = vunpack.c.l.b16 %v2198
    %v2434 = vunpack.c.h.b16 %v2198
    %v2435 = vunpack.c.l.b16 %v2199
    %v2436 = vunpack.c.l.b16 %v2200
    %v2437 = vunpack.c.h.b16 %v2200
    %v2438 = vunpack.c.l.b16 %v2201
    %v2439 = vunpack.c.l.b16 %v2202
    %v2440 = vunpack.c.h.b16 %v2202
    %v2441 = vunpack.c.l.b16 %v2203
    %v2442 = vunpack.c.l.b16 %v2204
    %v2443 = vunpack.c.h.b16 %v2204
    %v2444 = vunpack.c.l.b16 %v2205
    %v2445 = vunpack.c.l.b16 %v2206
    %v2446 = vunpack.c.h.b16 %v2206
    %v2447 = vunpack.c.l.b16 %v2207
    %v2448 = vunpack.c.l.b16 %v2208
    %v2449 = vunpack.c.h.b16 %v2208
    %v2450 = vunpack.c.l.b16 %v2209
    %v2451 = vunpack.c.l.b16 %v2210
    %v2452 = vunpack.c.h.b16 %v2210
    %v2453 = vunpack.c.l.b16 %v2211
    %v2454 = vunpack.c.l.b16 %v2212
    %v2455 = vunpack.c.h.b16 %v2212
    %v2456 = vunpack.c.l.b16 %v2213
    %v2457 = vunpack.c.l.b16 %v2214
    %v2458 = vunpack.c.h.b16 %v2214
    %v2459 = vunpack.c.l.b16 %v2215
    %v2460 = vunpack.c.l.b16 %v2216
    %v2461 = vunpack.c.h.b16 %v2216
    %v2462 = vunpack.c.l.b16 %v2217
    %v2463 = vunpack.c.l.b16 %v2218
    %v2464 = vunpack.c.h.b16 %v2218
    %v2465 = vunpack.c.l.b16 %v2219
    %v2466 = vunpack.c.l.b16 %v2220
    %v2467 = vunpack.c.h.b16 %v2220
    %v2468 = vunpack.c.l.b16 %v2221
    %v2469 = vunpack.c.l.b16 %v2222
    %v2470 = vunpack.c.h.b16 %v2222
    %v2471 = vunpack.c.l.b16 %v2223
    %v2472 = vpack.c.b16 %v2331, %v2328
    %v2473 = vpack.c.b16 %v2332, %v2329
    %v2474 = vpack.c.b16 %v2333, %v2330
    %v2475 = vpack.c.b16 %v2337, %v2334
    %v2476 = vpack.c.b16 %v2338, %v2335
    %v2477 = vpack.c.b16 %v2339, %v2336
    %v2478 = vpack.c.b16 %v2343, %v2340
    %v2479 = vpack.c.b16 %v2344, %v2341
    %v2480 = vpack.c.b16 %v2345, %v2342
    %v2481 = vpack.c.b16 %v2349, %v2346
    %v2482 = vpack.c.b16 %v2350, %v2347
    %v2483 = vpack.c.b16 %v2351, %v2348
    %v2484 = vpack.c.b16 %v2355, %v2352
    %v2485 = vpack.c.b16 %v2356, %v2353
    %v2486 = vpack.c.b16 %v2357, %v2354
    %v2487 = vpack.c.b16 %v2361, %v2358
    %v2488 = vpack.c.b16 %v2362, %v2359
    %v2489 = vpack.c.b16 %v2363, %v2360
    %v2490 = vpack.c.b16 %v2367, %v2364
    %v2491 = vpack.c.b16 %v2368, %v2365
    %v2492 = vpack.c.b16 %v2369, %v2366
    %v2493 = vpack.c.b16 %v2373, %v2370
    %v2494 = vpack.c.b16 %v2374, %v2371
    %v2495 = vpack.c.b16 %v2375, %v2372
    %v2496 = vpack.c.b16 %v2379, %v2376
    %v2497 = vpack.c.b16 %v2380, %v2377
    %v2498 = vpack.c.b16 %v2381, %v2378
    %v2499 = vpack.c.b16 %v2385, %v2382
    %v2500 = vpack.c.b16 %v2386, %v2383
    %v2501 = vpack.c.b16 %v2387, %v2384
    %v2502 = vpack.c.b16 %v2391, %v2388
    %v2503 = vpack.c.b16 %v2392, %v2389
    %v2504 = vpack.c.b16 %v2393, %v2390
    %v2505 = vpack.c.b16 %v2397, %v2394
    %v2506 = vpack.c.b16 %v2398, %v2395
    %v2507 = vpack.c.b16 %v2399, %v2396
    %v2508 = vpack.c.b16 %v2403, %v2400
    %v2509 = vpack.c.b16 %v2404, %v2401
    %v2510 = vpack.c.b16 %v2405, %v2402
    %v2511 = vpack.c.b16 %v2409, %v2406
    %v2512 = vpack.c.b16 %v2410, %v2407
    %v2513 = vpack.c.b16 %v2411, %v2408
    %v2514 = vpack.c.b16 %v2415, %v2412
    %v2515 = vpack.c.b16 %v2416, %v2413
    %v2516 = vpack.c.b16 %v2417, %v2414
    %v2517 = vpack.c.b16 %v2421, %v2418
    %v2518 = vpack.c.b16 %v2422, %v2419
    %v2519 = vpack.c.b16 %v2423, %v2420
    %v2520 = vpack.c.b16 %v2427, %v2424
    %v2521 = vpack.c.b16 %v2428, %v2425
    %v2522 = vpack.c.b16 %v2429, %v2426
    %v2523 = vpack.c.b16 %v2433, %v2430
    %v2524 = vpack.c.b16 %v2434, %v2431
    %v2525 = vpack.c.b16 %v2435, %v2432
    %v2526 = vpack.c.b16 %v2439, %v2436
    %v2527 = vpack.c.b16 %v2440, %v2437
    %v2528 = vpack.c.b16 %v2441, %v2438
    %v2529 = vpack.c.b16 %v2445, %v2442
    %v2530 = vpack.c.b16 %v2446, %v2443
    %v2531 = vpack.c.b16 %v2447, %v2444
    %v2532 = vpack.c.b16 %v2451, %v2448
    %v2533 = vpack.c.b16 %v2452, %v2449
    %v2534 = vpack.c.b16 %v2453, %v2450
    %v2535 = vpack.c.b16 %v2457, %v2454
    %v2536 = vpack.c.b16 %v2458, %v2455
    %v2537 = vpack.c.b16 %v2459, %v2456
    %v2538 = vpack.c.b16 %v2463, %v2460
    %v2539 = vpack.c.b16 %v2464, %v2461
    %v2540 = vpack.c.b16 %v2465, %v2462
    %v2541 = vpack.c.b16 %v2469, %v2466
    %v2542 = vpack.c.b16 %v2470, %v2467
    %v2543 = vpack.c.b16 %v2471, %v2468
    %2616 = vmatpush.bf16.msra.mxu0 %v2493
    %2617 = vmatpush.bf16.msra.mxu0 %v2490
    %2618 = vmatpush.bf16.msra.mxu0 %v2487
    %2619 = vmatpush.bf16.msra.mxu0 %v2484
    %2620 = vmatpush.bf16.msra.mxu0 %v2481
    %2621 = vmatpush.bf16.msra.mxu0 %v2478
    %2622 = vmatpush.bf16.msra.mxu0 %v2475
    %2623 = vmatpush.bf16.msra.mxu0 %v2472
    %2624 = vmatmul.bf16.gmra.mxu0 %v2125
    %v2625 = vpop.f32.mrf.mxu0
    %v2626 = vadd.f32 %v2226, %v2625
    %v2627 = vpop.f32.mrf.mxu0
    %2628 = vdwg.mxu0
    %2629 = vmatpush.bf16.msra.mxu0 %v2517
    %2630 = vmatpush.bf16.msra.mxu0 %v2514
    %2631 = vmatpush.bf16.msra.mxu0 %v2511
    %2632 = vmatpush.bf16.msra.mxu0 %v2508
    %2633 = vmatpush.bf16.msra.mxu0 %v2505
    %2634 = vmatpush.bf16.msra.mxu0 %v2502
    %2635 = vmatpush.bf16.msra.mxu0 %v2499
    %2636 = vmatpush.bf16.msra.mxu0 %v2496
    %2637 = vmatmul.bf16.gmra.mxu0 %v2126
    %v2638 = vpop.f32.mrf.mxu0
    %v2639 = vadd.f32 %v2626, %v2638
    %v2640 = vpop.f32.mrf.mxu0
    %2641 = vdwg.mxu0
    %2642 = vmatpush.bf16.msra.mxu0 %v2541
    %2643 = vmatpush.bf16.msra.mxu0 %v2538
    %2644 = vmatpush.bf16.msra.mxu0 %v2535
    %2645 = vmatpush.bf16.msra.mxu0 %v2532
    %2646 = vmatpush.bf16.msra.mxu0 %v2529
    %2647 = vmatpush.bf16.msra.mxu0 %v2526
    %2648 = vmatpush.bf16.msra.mxu0 %v2523
    %2649 = vmatpush.bf16.msra.mxu0 %v2520
    %2650 = vmatmul.bf16.gmra.mxu0 %v2127
    %v2651 = vpop.f32.mrf.mxu0
    %v2652 = vadd.f32 %v2639, %v2651
    %v2653 = vpop.f32.mrf.mxu0
    %2654 = vdwg.mxu0
    %2655 = vmatpush.bf16.msra.mxu0 %v2494
    %2656 = vmatpush.bf16.msra.mxu0 %v2491
    %2657 = vmatpush.bf16.msra.mxu0 %v2488
    %2658 = vmatpush.bf16.msra.mxu0 %v2485
    %2659 = vmatpush.bf16.msra.mxu0 %v2482
    %2660 = vmatpush.bf16.msra.mxu0 %v2479
    %2661 = vmatpush.bf16.msra.mxu0 %v2476
    %2662 = vmatpush.bf16.msra.mxu0 %v2473
    %2663 = vmatmul.bf16.gmra.mxu0 %v2125
    %v2664 = vpop.f32.mrf.mxu0
    %v2665 = vadd.f32 %v2227, %v2664
    %v2666 = vpop.f32.mrf.mxu0
    %2667 = vdwg.mxu0
    %2668 = vmatpush.bf16.msra.mxu0 %v2518
    %2669 = vmatpush.bf16.msra.mxu0 %v2515
    %2670 = vmatpush.bf16.msra.mxu0 %v2512
    %2671 = vmatpush.bf16.msra.mxu0 %v2509
    %2672 = vmatpush.bf16.msra.mxu0 %v2506
    %2673 = vmatpush.bf16.msra.mxu0 %v2503
    %2674 = vmatpush.bf16.msra.mxu0 %v2500
    %2675 = vmatpush.bf16.msra.mxu0 %v2497
    %2676 = vmatmul.bf16.gmra.mxu0 %v2126
    %v2677 = vpop.f32.mrf.mxu0
    %v2678 = vadd.f32 %v2665, %v2677
    %v2679 = vpop.f32.mrf.mxu0
    %2680 = vdwg.mxu0
    %2681 = vmatpush.bf16.msra.mxu0 %v2542
    %2682 = vmatpush.bf16.msra.mxu0 %v2539
    %2683 = vmatpush.bf16.msra.mxu0 %v2536
    %2684 = vmatpush.bf16.msra.mxu0 %v2533
    %2685 = vmatpush.bf16.msra.mxu0 %v2530
    %2686 = vmatpush.bf16.msra.mxu0 %v2527
    %2687 = vmatpush.bf16.msra.mxu0 %v2524
    %2688 = vmatpush.bf16.msra.mxu0 %v2521
    %2689 = vmatmul.bf16.gmra.mxu0 %v2127
    %v2690 = vpop.f32.mrf.mxu0
    %v2691 = vadd.f32 %v2678, %v2690
    %v2692 = vpop.f32.mrf.mxu0
    %2693 = vdwg.mxu0
    %2694 = vmatpush.bf16.msra.mxu0 %v2495
    %2695 = vmatpush.bf16.msra.mxu0 %v2492
    %2696 = vmatpush.bf16.msra.mxu0 %v2489
    %2697 = vmatpush.bf16.msra.mxu0 %v2486
    %2698 = vmatpush.bf16.msra.mxu0 %v2483
    %2699 = vmatpush.bf16.msra.mxu0 %v2480
    %2700 = vmatpush.bf16.msra.mxu0 %v2477
    %2701 = vmatpush.bf16.msra.mxu0 %v2474
    %2702 = vmatmul.bf16.gmra.mxu0 %v2125
    %v2703 = vpop.f32.mrf.mxu0
    %v2704 = vadd.f32 %v2228, %v2703
    %v2705 = vpop.f32.mrf.mxu0
    %2706 = vdwg.mxu0
    %2707 = vmatpush.bf16.msra.mxu0 %v2519
    %2708 = vmatpush.bf16.msra.mxu0 %v2516
    %2709 = vmatpush.bf16.msra.mxu0 %v2513
    %2710 = vmatpush.bf16.msra.mxu0 %v2510
    %2711 = vmatpush.bf16.msra.mxu0 %v2507
    %2712 = vmatpush.bf16.msra.mxu0 %v2504
    %2713 = vmatpush.bf16.msra.mxu0 %v2501
    %2714 = vmatpush.bf16.msra.mxu0 %v2498
    %2715 = vmatmul.bf16.gmra.mxu0 %v2126
    %v2716 = vpop.f32.mrf.mxu0
    %v2717 = vadd.f32 %v2704, %v2716
    %v2718 = vpop.f32.mrf.mxu0
    %2719 = vdwg.mxu0
    %2720 = vmatpush.bf16.msra.mxu0 %v2543
    %2721 = vmatpush.bf16.msra.mxu0 %v2540
    %2722 = vmatpush.bf16.msra.mxu0 %v2537
    %2723 = vmatpush.bf16.msra.mxu0 %v2534
    %2724 = vmatpush.bf16.msra.mxu0 %v2531
    %2725 = vmatpush.bf16.msra.mxu0 %v2528
    %2726 = vmatpush.bf16.msra.mxu0 %v2525
    %2727 = vmatpush.bf16.msra.mxu0 %v2522
    %2728 = vmatmul.bf16.gmra.mxu0 %v2127
    %v2729 = vpop.f32.mrf.mxu0
    %v2730 = vadd.f32 %v2717, %v2729
    %v2731 = vpop.f32.mrf.mxu0
    %2732 = vdwg.mxu0
    %v2733 = vmax.f32 %v2652, 0.0
    %v2734 = vmax.f32 %v2691, 0.0
    %v2735 = vmax.f32 %v2730, 0.0
    %v2736 = vand.u32 %v191, 4
    %v2737 = vand.u32 %v192, 4
    %v2738 = vand.u32 %v193, 4
    %vm2739 = vcmp.eq.s32.totalorder %v2736, 0
    %vm2740 = vcmp.eq.s32.totalorder %v2737, 0
    %vm2741 = vcmp.eq.s32.totalorder %v2738, 0
    %v2742 = vmul.f32 %v2733, 2.0
    %v2743 = vmul.f32 %v2734, 2.0
    %v2744 = vmul.f32 %v2735, 2.0
    %v2745 = vsel %vm2739, %v2742, 0.0
    %v2746 = vsel %vm2740, %v2743, 0.0
    %v2747 = vsel %vm2741, %v2744, 0.0
    %v2748 = vpack.c.bf16 %v2745, %v2745
    %v2749 = vpack.c.bf16 %v2746, %v2746
    %v2750 = vpack.c.bf16 %v2747, %v2747
    %v2751 = vld [vmem:[#allocation12] sm:$0xff]
    %v2752 = vld [vmem:[#allocation12 + $0x8] sm:$0xf]
    %v2753 = vld [vmem:[#allocation12 + $0xc] sm:$0xff]
    %v2754 = vld [vmem:[#allocation12 + $0x14] sm:$0xf]
    %v2755 = vld [vmem:[#allocation12 + $0x18] sm:$0xff]
    %v2756 = vld [vmem:[#allocation12 + $0x20] sm:$0xf]
    %v2757 = vld [vmem:[#allocation12 + $0x24] sm:$0xff]
    %v2758 = vld [vmem:[#allocation12 + $0x2c] sm:$0xf]
    %v2759 = vld [vmem:[#allocation12 + $0x30] sm:$0xff]
    %v2760 = vld [vmem:[#allocation12 + $0x38] sm:$0xf]
    %v2761 = vld [vmem:[#allocation12 + $0x3c] sm:$0xff]
    %v2762 = vld [vmem:[#allocation12 + $0x44] sm:$0xf]
    %v2763 = vld [vmem:[#allocation12 + $0x48] sm:$0xff]
    %v2764 = vld [vmem:[#allocation12 + $0x50] sm:$0xf]
    %v2765 = vld [vmem:[#allocation12 + $0x54] sm:$0xff]
    %v2766 = vld [vmem:[#allocation12 + $0x5c] sm:$0xf]
    %v2767 = vld [vmem:[#allocation12 + $0x60] sm:$0xff]
    %v2768 = vld [vmem:[#allocation12 + $0x68] sm:$0xf]
    %v2769 = vld [vmem:[#allocation12 + $0x6c] sm:$0xff]
    %v2770 = vld [vmem:[#allocation12 + $0x74] sm:$0xf]
    %v2771 = vld [vmem:[#allocation12 + $0x78] sm:$0xff]
    %v2772 = vld [vmem:[#allocation12 + $0x80] sm:$0xf]
    %v2773 = vld [vmem:[#allocation12 + $0x84] sm:$0xff]
    %v2774 = vld [vmem:[#allocation12 + $0x8c] sm:$0xf]
    %v2775 = vld [vmem:[#allocation12 + $0x90] sm:$0xff]
    %v2776 = vld [vmem:[#allocation12 + $0x98] sm:$0xf]
    %v2777 = vld [vmem:[#allocation12 + $0x9c] sm:$0xff]
    %v2778 = vld [vmem:[#allocation12 + $0xa4] sm:$0xf]
    %v2779 = vld [vmem:[#allocation12 + $0xa8] sm:$0xff]
    %v2780 = vld [vmem:[#allocation12 + $0xb0] sm:$0xf]
    %v2781 = vld [vmem:[#allocation12 + $0xb4] sm:$0xff]
    %v2782 = vld [vmem:[#allocation12 + $0xbc] sm:$0xf]
    %v2783 = vld [vmem:[#allocation12 + $0xc0] sm:$0xff]
    %v2784 = vld [vmem:[#allocation12 + $0xc8] sm:$0xf]
    %v2785 = vld [vmem:[#allocation12 + $0xcc] sm:$0xff]
    %v2786 = vld [vmem:[#allocation12 + $0xd4] sm:$0xf]
    %v2787 = vld [vmem:[#allocation12 + $0xd8] sm:$0xff]
    %v2788 = vld [vmem:[#allocation12 + $0xe0] sm:$0xf]
    %v2789 = vld [vmem:[#allocation12 + $0xe4] sm:$0xff]
    %v2790 = vld [vmem:[#allocation12 + $0xec] sm:$0xf]
    %v2791 = vld [vmem:[#allocation12 + $0xf0] sm:$0xff]
    %v2792 = vld [vmem:[#allocation12 + $0xf8] sm:$0xf]
    %v2793 = vld [vmem:[#allocation12 + $0xfc] sm:$0xff]
    %v2794 = vld [vmem:[#allocation12 + $0x104] sm:$0xf]
    %v2795 = vld [vmem:[#allocation12 + $0x108] sm:$0xff]
    %v2796 = vld [vmem:[#allocation12 + $0x110] sm:$0xf]
    %v2797 = vld [vmem:[#allocation12 + $0x114] sm:$0xff]
    %v2798 = vld [vmem:[#allocation12 + $0x11c] sm:$0xf]
    %v2799 = vld [vmem:[#allocation12 + $0x120] sm:$0xff]
    %v2800 = vld [vmem:[#allocation12 + $0x128] sm:$0xf]
    %v2801 = vld [vmem:[#allocation12 + $0x12c] sm:$0xff]
    %v2802 = vld [vmem:[#allocation12 + $0x134] sm:$0xf]
    %v2803 = vld [vmem:[#allocation12 + $0x138] sm:$0xff]
    %v2804 = vld [vmem:[#allocation12 + $0x140] sm:$0xf]
    %v2805 = vld [vmem:[#allocation12 + $0x144] sm:$0xff]
    %v2806 = vld [vmem:[#allocation12 + $0x14c] sm:$0xf]
    %v2807 = vld [vmem:[#allocation12 + $0x150] sm:$0xff]
    %v2808 = vld [vmem:[#allocation12 + $0x158] sm:$0xf]
    %v2809 = vld [vmem:[#allocation12 + $0x15c] sm:$0xff]
    %v2810 = vld [vmem:[#allocation12 + $0x164] sm:$0xf]
    %v2811 = vld [vmem:[#allocation12 + $0x168] sm:$0xff]
    %v2812 = vld [vmem:[#allocation12 + $0x170] sm:$0xf]
    %v2813 = vld [vmem:[#allocation12 + $0x174] sm:$0xff]
    %v2814 = vld [vmem:[#allocation12 + $0x17c] sm:$0xf]
    %v2815 = vld [vmem:[#allocation12 + $0x180] sm:$0xff]
    %v2816 = vld [vmem:[#allocation12 + $0x188] sm:$0xf]
    %v2817 = vld [vmem:[#allocation12 + $0x18c] sm:$0xff]
    %v2818 = vld [vmem:[#allocation12 + $0x194] sm:$0xf]
    %v2819 = vld [vmem:[#allocation12 + $0x198] sm:$0xff]
    %v2820 = vld [vmem:[#allocation12 + $0x1a0] sm:$0xf]
    %v2821 = vld [vmem:[#allocation12 + $0x1a4] sm:$0xff]
    %v2822 = vld [vmem:[#allocation12 + $0x1ac] sm:$0xf]
    %v2823 = vld [vmem:[#allocation12 + $0x1b0] sm:$0xff]
    %v2824 = vld [vmem:[#allocation12 + $0x1b8] sm:$0xf]
    %v2825 = vld [vmem:[#allocation12 + $0x1bc] sm:$0xff]
    %v2826 = vld [vmem:[#allocation12 + $0x1c4] sm:$0xf]
    %v2827 = vld [vmem:[#allocation12 + $0x1c8] sm:$0xff]
    %v2828 = vld [vmem:[#allocation12 + $0x1d0] sm:$0xf]
    %v2829 = vld [vmem:[#allocation12 + $0x1d4] sm:$0xff]
    %v2830 = vld [vmem:[#allocation12 + $0x1dc] sm:$0xf]
    %v2831 = vld [vmem:[#allocation12 + $0x1e0] sm:$0xff]
    %v2832 = vld [vmem:[#allocation12 + $0x1e8] sm:$0xf]
    %v2833 = vld [vmem:[#allocation12 + $0x1ec] sm:$0xff]
    %v2834 = vld [vmem:[#allocation12 + $0x1f4] sm:$0xf]
    %v2835 = vld [vmem:[#allocation12 + $0x1f8] sm:$0xff]
    %v2836 = vld [vmem:[#allocation12 + $0x200] sm:$0xf]
    %v2837 = vld [vmem:[#allocation12 + $0x204] sm:$0xff]
    %v2838 = vld [vmem:[#allocation12 + $0x20c] sm:$0xf]
    %v2839 = vld [vmem:[#allocation12 + $0x210] sm:$0xff]
    %v2840 = vld [vmem:[#allocation12 + $0x218] sm:$0xf]
    %v2841 = vld [vmem:[#allocation12 + $0x21c] sm:$0xff]
    %v2842 = vld [vmem:[#allocation12 + $0x224] sm:$0xf]
    %v2843 = vld [vmem:[#allocation12 + $0x228] sm:$0xff]
    %v2844 = vld [vmem:[#allocation12 + $0x230] sm:$0xf]
    %v2845 = vld [vmem:[#allocation12 + $0x234] sm:$0xff]
    %v2846 = vld [vmem:[#allocation12 + $0x23c] sm:$0xf]
    %v2847 = vld [vmem:[%s9] sm:$0x7]
    %v2849 = vperm.slane %v2847, 0
    %v2850 = vperm.slane %v2847, 1
    %v2851 = vperm.slane %v2847, 2
    %v2951 = vunpack.c.l.b16 %v2751
    %v2952 = vunpack.c.h.b16 %v2751
    %v2953 = vunpack.c.l.b16 %v2752
    %v2954 = vunpack.c.l.b16 %v2753
    %v2955 = vunpack.c.h.b16 %v2753
    %v2956 = vunpack.c.l.b16 %v2754
    %v2957 = vunpack.c.l.b16 %v2755
    %v2958 = vunpack.c.h.b16 %v2755
    %v2959 = vunpack.c.l.b16 %v2756
    %v2960 = vunpack.c.l.b16 %v2757
    %v2961 = vunpack.c.h.b16 %v2757
    %v2962 = vunpack.c.l.b16 %v2758
    %v2963 = vunpack.c.l.b16 %v2759
    %v2964 = vunpack.c.h.b16 %v2759
    %v2965 = vunpack.c.l.b16 %v2760
    %v2966 = vunpack.c.l.b16 %v2761
    %v2967 = vunpack.c.h.b16 %v2761
    %v2968 = vunpack.c.l.b16 %v2762
    %v2969 = vunpack.c.l.b16 %v2763
    %v2970 = vunpack.c.h.b16 %v2763
    %v2971 = vunpack.c.l.b16 %v2764
    %v2972 = vunpack.c.l.b16 %v2765
    %v2973 = vunpack.c.h.b16 %v2765
    %v2974 = vunpack.c.l.b16 %v2766
    %v2975 = vunpack.c.l.b16 %v2767
    %v2976 = vunpack.c.h.b16 %v2767
    %v2977 = vunpack.c.l.b16 %v2768
    %v2978 = vunpack.c.l.b16 %v2769
    %v2979 = vunpack.c.h.b16 %v2769
    %v2980 = vunpack.c.l.b16 %v2770
    %v2981 = vunpack.c.l.b16 %v2771
    %v2982 = vunpack.c.h.b16 %v2771
    %v2983 = vunpack.c.l.b16 %v2772
    %v2984 = vunpack.c.l.b16 %v2773
    %v2985 = vunpack.c.h.b16 %v2773
    %v2986 = vunpack.c.l.b16 %v2774
    %v2987 = vunpack.c.l.b16 %v2775
    %v2988 = vunpack.c.h.b16 %v2775
    %v2989 = vunpack.c.l.b16 %v2776
    %v2990 = vunpack.c.l.b16 %v2777
    %v2991 = vunpack.c.h.b16 %v2777
    %v2992 = vunpack.c.l.b16 %v2778
    %v2993 = vunpack.c.l.b16 %v2779
    %v2994 = vunpack.c.h.b16 %v2779
    %v2995 = vunpack.c.l.b16 %v2780
    %v2996 = vunpack.c.l.b16 %v2781
    %v2997 = vunpack.c.h.b16 %v2781
    %v2998 = vunpack.c.l.b16 %v2782
    %v2999 = vunpack.c.l.b16 %v2783
    %v3000 = vunpack.c.h.b16 %v2783
    %v3001 = vunpack.c.l.b16 %v2784
    %v3002 = vunpack.c.l.b16 %v2785
    %v3003 = vunpack.c.h.b16 %v2785
    %v3004 = vunpack.c.l.b16 %v2786
    %v3005 = vunpack.c.l.b16 %v2787
    %v3006 = vunpack.c.h.b16 %v2787
    %v3007 = vunpack.c.l.b16 %v2788
    %v3008 = vunpack.c.l.b16 %v2789
    %v3009 = vunpack.c.h.b16 %v2789
    %v3010 = vunpack.c.l.b16 %v2790
    %v3011 = vunpack.c.l.b16 %v2791
    %v3012 = vunpack.c.h.b16 %v2791
    %v3013 = vunpack.c.l.b16 %v2792
    %v3014 = vunpack.c.l.b16 %v2793
    %v3015 = vunpack.c.h.b16 %v2793
    %v3016 = vunpack.c.l.b16 %v2794
    %v3017 = vunpack.c.l.b16 %v2795
    %v3018 = vunpack.c.h.b16 %v2795
    %v3019 = vunpack.c.l.b16 %v2796
    %v3020 = vunpack.c.l.b16 %v2797
    %v3021 = vunpack.c.h.b16 %v2797
    %v3022 = vunpack.c.l.b16 %v2798
    %v3023 = vunpack.c.l.b16 %v2799
    %v3024 = vunpack.c.h.b16 %v2799
    %v3025 = vunpack.c.l.b16 %v2800
    %v3026 = vunpack.c.l.b16 %v2801
    %v3027 = vunpack.c.h.b16 %v2801
    %v3028 = vunpack.c.l.b16 %v2802
    %v3029 = vunpack.c.l.b16 %v2803
    %v3030 = vunpack.c.h.b16 %v2803
    %v3031 = vunpack.c.l.b16 %v2804
    %v3032 = vunpack.c.l.b16 %v2805
    %v3033 = vunpack.c.h.b16 %v2805
    %v3034 = vunpack.c.l.b16 %v2806
    %v3035 = vunpack.c.l.b16 %v2807
    %v3036 = vunpack.c.h.b16 %v2807
    %v3037 = vunpack.c.l.b16 %v2808
    %v3038 = vunpack.c.l.b16 %v2809
    %v3039 = vunpack.c.h.b16 %v2809
    %v3040 = vunpack.c.l.b16 %v2810
    %v3041 = vunpack.c.l.b16 %v2811
    %v3042 = vunpack.c.h.b16 %v2811
    %v3043 = vunpack.c.l.b16 %v2812
    %v3044 = vunpack.c.l.b16 %v2813
    %v3045 = vunpack.c.h.b16 %v2813
    %v3046 = vunpack.c.l.b16 %v2814
    %v3047 = vunpack.c.l.b16 %v2815
    %v3048 = vunpack.c.h.b16 %v2815
    %v3049 = vunpack.c.l.b16 %v2816
    %v3050 = vunpack.c.l.b16 %v2817
    %v3051 = vunpack.c.h.b16 %v2817
    %v3052 = vunpack.c.l.b16 %v2818
    %v3053 = vunpack.c.l.b16 %v2819
    %v3054 = vunpack.c.h.b16 %v2819
    %v3055 = vunpack.c.l.b16 %v2820
    %v3056 = vunpack.c.l.b16 %v2821
    %v3057 = vunpack.c.h.b16 %v2821
    %v3058 = vunpack.c.l.b16 %v2822
    %v3059 = vunpack.c.l.b16 %v2823
    %v3060 = vunpack.c.h.b16 %v2823
    %v3061 = vunpack.c.l.b16 %v2824
    %v3062 = vunpack.c.l.b16 %v2825
    %v3063 = vunpack.c.h.b16 %v2825
    %v3064 = vunpack.c.l.b16 %v2826
    %v3065 = vunpack.c.l.b16 %v2827
    %v3066 = vunpack.c.h.b16 %v2827
    %v3067 = vunpack.c.l.b16 %v2828
    %v3068 = vunpack.c.l.b16 %v2829
    %v3069 = vunpack.c.h.b16 %v2829
    %v3070 = vunpack.c.l.b16 %v2830
    %v3071 = vunpack.c.l.b16 %v2831
    %v3072 = vunpack.c.h.b16 %v2831
    %v3073 = vunpack.c.l.b16 %v2832
    %v3074 = vunpack.c.l.b16 %v2833
    %v3075 = vunpack.c.h.b16 %v2833
    %v3076 = vunpack.c.l.b16 %v2834
    %v3077 = vunpack.c.l.b16 %v2835
    %v3078 = vunpack.c.h.b16 %v2835
    %v3079 = vunpack.c.l.b16 %v2836
    %v3080 = vunpack.c.l.b16 %v2837
    %v3081 = vunpack.c.h.b16 %v2837
    %v3082 = vunpack.c.l.b16 %v2838
    %v3083 = vunpack.c.l.b16 %v2839
    %v3084 = vunpack.c.h.b16 %v2839
    %v3085 = vunpack.c.l.b16 %v2840
    %v3086 = vunpack.c.l.b16 %v2841
    %v3087 = vunpack.c.h.b16 %v2841
    %v3088 = vunpack.c.l.b16 %v2842
    %v3089 = vunpack.c.l.b16 %v2843
    %v3090 = vunpack.c.h.b16 %v2843
    %v3091 = vunpack.c.l.b16 %v2844
    %v3092 = vunpack.c.l.b16 %v2845
    %v3093 = vunpack.c.h.b16 %v2845
    %v3094 = vunpack.c.l.b16 %v2846
    %v3095 = vpack.c.b16 %v2954, %v2951
    %v3096 = vpack.c.b16 %v2955, %v2952
    %v3097 = vpack.c.b16 %v2956, %v2953
    %v3098 = vpack.c.b16 %v2960, %v2957
    %v3099 = vpack.c.b16 %v2961, %v2958
    %v3100 = vpack.c.b16 %v2962, %v2959
    %v3101 = vpack.c.b16 %v2966, %v2963
    %v3102 = vpack.c.b16 %v2967, %v2964
    %v3103 = vpack.c.b16 %v2968, %v2965
    %v3104 = vpack.c.b16 %v2972, %v2969
    %v3105 = vpack.c.b16 %v2973, %v2970
    %v3106 = vpack.c.b16 %v2974, %v2971
    %v3107 = vpack.c.b16 %v2978, %v2975
    %v3108 = vpack.c.b16 %v2979, %v2976
    %v3109 = vpack.c.b16 %v2980, %v2977
    %v3110 = vpack.c.b16 %v2984, %v2981
    %v3111 = vpack.c.b16 %v2985, %v2982
    %v3112 = vpack.c.b16 %v2986, %v2983
    %v3113 = vpack.c.b16 %v2990, %v2987
    %v3114 = vpack.c.b16 %v2991, %v2988
    %v3115 = vpack.c.b16 %v2992, %v2989
    %v3116 = vpack.c.b16 %v2996, %v2993
    %v3117 = vpack.c.b16 %v2997, %v2994
    %v3118 = vpack.c.b16 %v2998, %v2995
    %v3119 = vpack.c.b16 %v3002, %v2999
    %v3120 = vpack.c.b16 %v3003, %v3000
    %v3121 = vpack.c.b16 %v3004, %v3001
    %v3122 = vpack.c.b16 %v3008, %v3005
    %v3123 = vpack.c.b16 %v3009, %v3006
    %v3124 = vpack.c.b16 %v3010, %v3007
    %v3125 = vpack.c.b16 %v3014, %v3011
    %v3126 = vpack.c.b16 %v3015, %v3012
    %v3127 = vpack.c.b16 %v3016, %v3013
    %v3128 = vpack.c.b16 %v3020, %v3017
    %v3129 = vpack.c.b16 %v3021, %v3018
    %v3130 = vpack.c.b16 %v3022, %v3019
    %v3131 = vpack.c.b16 %v3026, %v3023
    %v3132 = vpack.c.b16 %v3027, %v3024
    %v3133 = vpack.c.b16 %v3028, %v3025
    %v3134 = vpack.c.b16 %v3032, %v3029
    %v3135 = vpack.c.b16 %v3033, %v3030
    %v3136 = vpack.c.b16 %v3034, %v3031
    %v3137 = vpack.c.b16 %v3038, %v3035
    %v3138 = vpack.c.b16 %v3039, %v3036
    %v3139 = vpack.c.b16 %v3040, %v3037
    %v3140 = vpack.c.b16 %v3044, %v3041
    %v3141 = vpack.c.b16 %v3045, %v3042
    %v3142 = vpack.c.b16 %v3046, %v3043
    %v3143 = vpack.c.b16 %v3050, %v3047
    %v3144 = vpack.c.b16 %v3051, %v3048
    %v3145 = vpack.c.b16 %v3052, %v3049
    %v3146 = vpack.c.b16 %v3056, %v3053
    %v3147 = vpack.c.b16 %v3057, %v3054
    %v3148 = vpack.c.b16 %v3058, %v3055
    %v3149 = vpack.c.b16 %v3062, %v3059
    %v3150 = vpack.c.b16 %v3063, %v3060
    %v3151 = vpack.c.b16 %v3064, %v3061
    %v3152 = vpack.c.b16 %v3068, %v3065
    %v3153 = vpack.c.b16 %v3069, %v3066
    %v3154 = vpack.c.b16 %v3070, %v3067
    %v3155 = vpack.c.b16 %v3074, %v3071
    %v3156 = vpack.c.b16 %v3075, %v3072
    %v3157 = vpack.c.b16 %v3076, %v3073
    %v3158 = vpack.c.b16 %v3080, %v3077
    %v3159 = vpack.c.b16 %v3081, %v3078
    %v3160 = vpack.c.b16 %v3082, %v3079
    %v3161 = vpack.c.b16 %v3086, %v3083
    %v3162 = vpack.c.b16 %v3087, %v3084
    %v3163 = vpack.c.b16 %v3088, %v3085
    %v3164 = vpack.c.b16 %v3092, %v3089
    %v3165 = vpack.c.b16 %v3093, %v3090
    %v3166 = vpack.c.b16 %v3094, %v3091
    %3239 = vmatpush.bf16.msra.mxu0 %v3116
    %3240 = vmatpush.bf16.msra.mxu0 %v3113
    %3241 = vmatpush.bf16.msra.mxu0 %v3110
    %3242 = vmatpush.bf16.msra.mxu0 %v3107
    %3243 = vmatpush.bf16.msra.mxu0 %v3104
    %3244 = vmatpush.bf16.msra.mxu0 %v3101
    %3245 = vmatpush.bf16.msra.mxu0 %v3098
    %3246 = vmatpush.bf16.msra.mxu0 %v3095
    %3247 = vmatmul.bf16.gmra.mxu0 %v2748
    %v3248 = vpop.f32.mrf.mxu0
    %v3249 = vadd.f32 %v2849, %v3248
    %v3250 = vpop.f32.mrf.mxu0
    %3251 = vdwg.mxu0
    %3252 = vmatpush.bf16.msra.mxu0 %v3140
    %3253 = vmatpush.bf16.msra.mxu0 %v3137
    %3254 = vmatpush.bf16.msra.mxu0 %v3134
    %3255 = vmatpush.bf16.msra.mxu0 %v3131
    %3256 = vmatpush.bf16.msra.mxu0 %v3128
    %3257 = vmatpush.bf16.msra.mxu0 %v3125
    %3258 = vmatpush.bf16.msra.mxu0 %v3122
    %3259 = vmatpush.bf16.msra.mxu0 %v3119
    %3260 = vmatmul.bf16.gmra.mxu0 %v2749
    %v3261 = vpop.f32.mrf.mxu0
    %v3262 = vadd.f32 %v3249, %v3261
    %v3263 = vpop.f32.mrf.mxu0
    %3264 = vdwg.mxu0
    %3265 = vmatpush.bf16.msra.mxu0 %v3164
    %3266 = vmatpush.bf16.msra.mxu0 %v3161
    %3267 = vmatpush.bf16.msra.mxu0 %v3158
    %3268 = vmatpush.bf16.msra.mxu0 %v3155
    %3269 = vmatpush.bf16.msra.mxu0 %v3152
    %3270 = vmatpush.bf16.msra.mxu0 %v3149
    %3271 = vmatpush.bf16.msra.mxu0 %v3146
    %3272 = vmatpush.bf16.msra.mxu0 %v3143
    %3273 = vmatmul.bf16.gmra.mxu0 %v2750
    %v3274 = vpop.f32.mrf.mxu0
    %v3275 = vadd.f32 %v3262, %v3274
    %v3276 = vpop.f32.mrf.mxu0
    %3277 = vdwg.mxu0
    %3278 = vmatpush.bf16.msra.mxu0 %v3117
    %3279 = vmatpush.bf16.msra.mxu0 %v3114
    %3280 = vmatpush.bf16.msra.mxu0 %v3111
    %3281 = vmatpush.bf16.msra.mxu0 %v3108
    %3282 = vmatpush.bf16.msra.mxu0 %v3105
    %3283 = vmatpush.bf16.msra.mxu0 %v3102
    %3284 = vmatpush.bf16.msra.mxu0 %v3099
    %3285 = vmatpush.bf16.msra.mxu0 %v3096
    %3286 = vmatmul.bf16.gmra.mxu0 %v2748
    %v3287 = vpop.f32.mrf.mxu0
    %v3288 = vadd.f32 %v2850, %v3287
    %v3289 = vpop.f32.mrf.mxu0
    %3290 = vdwg.mxu0
    %3291 = vmatpush.bf16.msra.mxu0 %v3141
    %3292 = vmatpush.bf16.msra.mxu0 %v3138
    %3293 = vmatpush.bf16.msra.mxu0 %v3135
    %3294 = vmatpush.bf16.msra.mxu0 %v3132
    %3295 = vmatpush.bf16.msra.mxu0 %v3129
    %3296 = vmatpush.bf16.msra.mxu0 %v3126
    %3297 = vmatpush.bf16.msra.mxu0 %v3123
    %3298 = vmatpush.bf16.msra.mxu0 %v3120
    %3299 = vmatmul.bf16.gmra.mxu0 %v2749
    %v3300 = vpop.f32.mrf.mxu0
    %v3301 = vadd.f32 %v3288, %v3300
    %v3302 = vpop.f32.mrf.mxu0
    %3303 = vdwg.mxu0
    %3304 = vmatpush.bf16.msra.mxu0 %v3165
    %3305 = vmatpush.bf16.msra.mxu0 %v3162
    %3306 = vmatpush.bf16.msra.mxu0 %v3159
    %3307 = vmatpush.bf16.msra.mxu0 %v3156
    %3308 = vmatpush.bf16.msra.mxu0 %v3153
    %3309 = vmatpush.bf16.msra.mxu0 %v3150
    %3310 = vmatpush.bf16.msra.mxu0 %v3147
    %3311 = vmatpush.bf16.msra.mxu0 %v3144
    %3312 = vmatmul.bf16.gmra.mxu0 %v2750
    %v3313 = vpop.f32.mrf.mxu0
    %v3314 = vadd.f32 %v3301, %v3313
    %v3315 = vpop.f32.mrf.mxu0
    %3316 = vdwg.mxu0
    %3317 = vmatpush.bf16.msra.mxu0 %v3118
    %3318 = vmatpush.bf16.msra.mxu0 %v3115
    %3319 = vmatpush.bf16.msra.mxu0 %v3112
    %3320 = vmatpush.bf16.msra.mxu0 %v3109
    %3321 = vmatpush.bf16.msra.mxu0 %v3106
    %3322 = vmatpush.bf16.msra.mxu0 %v3103
    %3323 = vmatpush.bf16.msra.mxu0 %v3100
    %3324 = vmatpush.bf16.msra.mxu0 %v3097
    %3325 = vmatmul.bf16.gmra.mxu0 %v2748
    %v3326 = vpop.f32.mrf.mxu0
    %v3327 = vadd.f32 %v2851, %v3326
    %v3328 = vpop.f32.mrf.mxu0
    %3329 = vdwg.mxu0
    %3330 = vmatpush.bf16.msra.mxu0 %v3142
    %3331 = vmatpush.bf16.msra.mxu0 %v3139
    %3332 = vmatpush.bf16.msra.mxu0 %v3136
    %3333 = vmatpush.bf16.msra.mxu0 %v3133
    %3334 = vmatpush.bf16.msra.mxu0 %v3130
    %3335 = vmatpush.bf16.msra.mxu0 %v3127
    %3336 = vmatpush.bf16.msra.mxu0 %v3124
    %3337 = vmatpush.bf16.msra.mxu0 %v3121
    %3338 = vmatmul.bf16.gmra.mxu0 %v2749
    %v3339 = vpop.f32.mrf.mxu0
    %v3340 = vadd.f32 %v3327, %v3339
    %v3341 = vpop.f32.mrf.mxu0
    %3342 = vdwg.mxu0
    %3343 = vmatpush.bf16.msra.mxu0 %v3166
    %3344 = vmatpush.bf16.msra.mxu0 %v3163
    %3345 = vmatpush.bf16.msra.mxu0 %v3160
    %3346 = vmatpush.bf16.msra.mxu0 %v3157
    %3347 = vmatpush.bf16.msra.mxu0 %v3154
    %3348 = vmatpush.bf16.msra.mxu0 %v3151
    %3349 = vmatpush.bf16.msra.mxu0 %v3148
    %3350 = vmatpush.bf16.msra.mxu0 %v3145
    %3351 = vmatmul.bf16.gmra.mxu0 %v2750
    %v3352 = vpop.f32.mrf.mxu0
    %v3353 = vadd.f32 %v3340, %v3352
    %v3354 = vpop.f32.mrf.mxu0
    %3355 = vdwg.mxu0
    %v3356 = vmax.f32 %v3275, 0.0
    %v3357 = vmax.f32 %v3314, 0.0
    %v3358 = vmax.f32 %v3353, 0.0
    %v3359 = vand.u32 %v191, 8
    %v3360 = vand.u32 %v192, 8
    %v3361 = vand.u32 %v193, 8
    %vm3362 = vcmp.eq.s32.totalorder %v3359, 0
    %vm3363 = vcmp.eq.s32.totalorder %v3360, 0
    %vm3364 = vcmp.eq.s32.totalorder %v3361, 0
    %v3365 = vmul.f32 %v3356, 2.0
    %v3366 = vmul.f32 %v3357, 2.0
    %v3367 = vmul.f32 %v3358, 2.0
    %v3368 = vsel %vm3362, %v3365, 0.0
    %v3369 = vsel %vm3363, %v3366, 0.0
    %v3370 = vsel %vm3364, %v3367, 0.0
    %v3371 = vpack.c.bf16 %v3368, %v3368
    %v3372 = vpack.c.bf16 %v3369, %v3369
    %v3373 = vpack.c.bf16 %v3370, %v3370
    %v3374 = vld [vmem:[#allocation14] sm:$0xf]
    %v3375 = vld [vmem:[#allocation14 + $0x4] sm:$0xf]
    %v3376 = vld [vmem:[#allocation14 + $0x8] sm:$0xf]
    %v3377 = vld [vmem:[#allocation14 + $0xc] sm:$0xf]
    %v3378 = vld [vmem:[#allocation14 + $0x10] sm:$0xf]
    %v3379 = vld [vmem:[#allocation14 + $0x14] sm:$0xf]
    %v3380 = vld [vmem:[#allocation14 + $0x18] sm:$0xf]
    %v3381 = vld [vmem:[#allocation14 + $0x1c] sm:$0xf]
    %v3382 = vld [vmem:[#allocation14 + $0x20] sm:$0xf]
    %v3383 = vld [vmem:[#allocation14 + $0x24] sm:$0xf]
    %v3384 = vld [vmem:[#allocation14 + $0x28] sm:$0xf]
    %v3385 = vld [vmem:[#allocation14 + $0x2c] sm:$0xf]
    %v3386 = vld [vmem:[#allocation14 + $0x30] sm:$0xf]
    %v3387 = vld [vmem:[#allocation14 + $0x34] sm:$0xf]
    %v3388 = vld [vmem:[#allocation14 + $0x38] sm:$0xf]
    %v3389 = vld [vmem:[#allocation14 + $0x3c] sm:$0xf]
    %v3390 = vld [vmem:[#allocation14 + $0x40] sm:$0xf]
    %v3391 = vld [vmem:[#allocation14 + $0x44] sm:$0xf]
    %v3392 = vld [vmem:[#allocation14 + $0x48] sm:$0xf]
    %v3393 = vld [vmem:[#allocation14 + $0x4c] sm:$0xf]
    %v3394 = vld [vmem:[#allocation14 + $0x50] sm:$0xf]
    %v3395 = vld [vmem:[#allocation14 + $0x54] sm:$0xf]
    %v3396 = vld [vmem:[#allocation14 + $0x58] sm:$0xf]
    %v3397 = vld [vmem:[#allocation14 + $0x5c] sm:$0xf]
    %v3398 = vld [vmem:[#allocation14 + $0x60] sm:$0xf]
    %v3399 = vld [vmem:[#allocation14 + $0x64] sm:$0xf]
    %v3400 = vld [vmem:[#allocation14 + $0x68] sm:$0xf]
    %v3401 = vld [vmem:[#allocation14 + $0x6c] sm:$0xf]
    %v3402 = vld [vmem:[#allocation14 + $0x70] sm:$0xf]
    %v3403 = vld [vmem:[#allocation14 + $0x74] sm:$0xf]
    %v3404 = vld [vmem:[#allocation14 + $0x78] sm:$0xf]
    %v3405 = vld [vmem:[#allocation14 + $0x7c] sm:$0xf]
    %v3406 = vld [vmem:[#allocation14 + $0x80] sm:$0xf]
    %v3407 = vld [vmem:[#allocation14 + $0x84] sm:$0xf]
    %v3408 = vld [vmem:[#allocation14 + $0x88] sm:$0xf]
    %v3409 = vld [vmem:[#allocation14 + $0x8c] sm:$0xf]
    %v3410 = vld [vmem:[#allocation14 + $0x90] sm:$0xf]
    %v3411 = vld [vmem:[#allocation14 + $0x94] sm:$0xf]
    %v3412 = vld [vmem:[#allocation14 + $0x98] sm:$0xf]
    %v3413 = vld [vmem:[#allocation14 + $0x9c] sm:$0xf]
    %v3414 = vld [vmem:[#allocation14 + $0xa0] sm:$0xf]
    %v3415 = vld [vmem:[#allocation14 + $0xa4] sm:$0xf]
    %v3416 = vld [vmem:[#allocation14 + $0xa8] sm:$0xf]
    %v3417 = vld [vmem:[#allocation14 + $0xac] sm:$0xf]
    %v3418 = vld [vmem:[#allocation14 + $0xb0] sm:$0xf]
    %v3419 = vld [vmem:[#allocation14 + $0xb4] sm:$0xf]
    %v3420 = vld [vmem:[#allocation14 + $0xb8] sm:$0xf]
    %v3421 = vld [vmem:[#allocation14 + $0xbc] sm:$0xf]
    %v3422 = vld [vmem:[%s11] sm:$0x1]
    %v3424 = vperm.slane %v3422, 0
    %v3474 = vunpack.c.l.b16 %v3374
    %v3475 = vunpack.c.l.b16 %v3375
    %v3476 = vunpack.c.l.b16 %v3376
    %v3477 = vunpack.c.l.b16 %v3377
    %v3478 = vunpack.c.l.b16 %v3378
    %v3479 = vunpack.c.l.b16 %v3379
    %v3480 = vunpack.c.l.b16 %v3380
    %v3481 = vunpack.c.l.b16 %v3381
    %v3482 = vunpack.c.l.b16 %v3382
    %v3483 = vunpack.c.l.b16 %v3383
    %v3484 = vunpack.c.l.b16 %v3384
    %v3485 = vunpack.c.l.b16 %v3385
    %v3486 = vunpack.c.l.b16 %v3386
    %v3487 = vunpack.c.l.b16 %v3387
    %v3488 = vunpack.c.l.b16 %v3388
    %v3489 = vunpack.c.l.b16 %v3389
    %v3490 = vunpack.c.l.b16 %v3390
    %v3491 = vunpack.c.l.b16 %v3391
    %v3492 = vunpack.c.l.b16 %v3392
    %v3493 = vunpack.c.l.b16 %v3393
    %v3494 = vunpack.c.l.b16 %v3394
    %v3495 = vunpack.c.l.b16 %v3395
    %v3496 = vunpack.c.l.b16 %v3396
    %v3497 = vunpack.c.l.b16 %v3397
    %v3498 = vunpack.c.l.b16 %v3398
    %v3499 = vunpack.c.l.b16 %v3399
    %v3500 = vunpack.c.l.b16 %v3400
    %v3501 = vunpack.c.l.b16 %v3401
    %v3502 = vunpack.c.l.b16 %v3402
    %v3503 = vunpack.c.l.b16 %v3403
    %v3504 = vunpack.c.l.b16 %v3404
    %v3505 = vunpack.c.l.b16 %v3405
    %v3506 = vunpack.c.l.b16 %v3406
    %v3507 = vunpack.c.l.b16 %v3407
    %v3508 = vunpack.c.l.b16 %v3408
    %v3509 = vunpack.c.l.b16 %v3409
    %v3510 = vunpack.c.l.b16 %v3410
    %v3511 = vunpack.c.l.b16 %v3411
    %v3512 = vunpack.c.l.b16 %v3412
    %v3513 = vunpack.c.l.b16 %v3413
    %v3514 = vunpack.c.l.b16 %v3414
    %v3515 = vunpack.c.l.b16 %v3415
    %v3516 = vunpack.c.l.b16 %v3416
    %v3517 = vunpack.c.l.b16 %v3417
    %v3518 = vunpack.c.l.b16 %v3418
    %v3519 = vunpack.c.l.b16 %v3419
    %v3520 = vunpack.c.l.b16 %v3420
    %v3521 = vunpack.c.l.b16 %v3421
    %v3522 = vpack.c.b16 %v3475, %v3474
    %v3523 = vpack.c.b16 %v3477, %v3476
    %v3524 = vpack.c.b16 %v3479, %v3478
    %v3525 = vpack.c.b16 %v3481, %v3480
    %v3526 = vpack.c.b16 %v3483, %v3482
    %v3527 = vpack.c.b16 %v3485, %v3484
    %v3528 = vpack.c.b16 %v3487, %v3486
    %v3529 = vpack.c.b16 %v3489, %v3488
    %v3530 = vpack.c.b16 %v3491, %v3490
    %v3531 = vpack.c.b16 %v3493, %v3492
    %v3532 = vpack.c.b16 %v3495, %v3494
    %v3533 = vpack.c.b16 %v3497, %v3496
    %v3534 = vpack.c.b16 %v3499, %v3498
    %v3535 = vpack.c.b16 %v3501, %v3500
    %v3536 = vpack.c.b16 %v3503, %v3502
    %v3537 = vpack.c.b16 %v3505, %v3504
    %v3538 = vpack.c.b16 %v3507, %v3506
    %v3539 = vpack.c.b16 %v3509, %v3508
    %v3540 = vpack.c.b16 %v3511, %v3510
    %v3541 = vpack.c.b16 %v3513, %v3512
    %v3542 = vpack.c.b16 %v3515, %v3514
    %v3543 = vpack.c.b16 %v3517, %v3516
    %v3544 = vpack.c.b16 %v3519, %v3518
    %v3545 = vpack.c.b16 %v3521, %v3520
    %3570 = vmatpush.bf16.msra.mxu0 %v3529
    %3571 = vmatpush.bf16.msra.mxu0 %v3528
    %3572 = vmatpush.bf16.msra.mxu0 %v3527
    %3573 = vmatpush.bf16.msra.mxu0 %v3526
    %3574 = vmatpush.bf16.msra.mxu0 %v3525
    %3575 = vmatpush.bf16.msra.mxu0 %v3524
    %3576 = vmatpush.bf16.msra.mxu0 %v3523
    %3577 = vmatpush.bf16.msra.mxu0 %v3522
    %3578 = vmatmul.bf16.gmra.mxu0 %v3371
    %v3579 = vpop.f32.mrf.mxu0
    %v3580 = vadd.f32 %v3424, %v3579
    %v3581 = vpop.f32.mrf.mxu0
    %3582 = vdwg.mxu0
    %3583 = vmatpush.bf16.msra.mxu0 %v3537
    %3584 = vmatpush.bf16.msra.mxu0 %v3536
    %3585 = vmatpush.bf16.msra.mxu0 %v3535
    %3586 = vmatpush.bf16.msra.mxu0 %v3534
    %3587 = vmatpush.bf16.msra.mxu0 %v3533
    %3588 = vmatpush.bf16.msra.mxu0 %v3532
    %3589 = vmatpush.bf16.msra.mxu0 %v3531
    %3590 = vmatpush.bf16.msra.mxu0 %v3530
    %3591 = vmatmul.bf16.gmra.mxu0 %v3372
    %v3592 = vpop.f32.mrf.mxu0
    %v3593 = vadd.f32 %v3580, %v3592
    %v3594 = vpop.f32.mrf.mxu0
    %3595 = vdwg.mxu0
    %3596 = vmatpush.bf16.msra.mxu0 %v3545
    %3597 = vmatpush.bf16.msra.mxu0 %v3544
    %3598 = vmatpush.bf16.msra.mxu0 %v3543
    %3599 = vmatpush.bf16.msra.mxu0 %v3542
    %3600 = vmatpush.bf16.msra.mxu0 %v3541
    %3601 = vmatpush.bf16.msra.mxu0 %v3540
    %3602 = vmatpush.bf16.msra.mxu0 %v3539
    %3603 = vmatpush.bf16.msra.mxu0 %v3538
    %3604 = vmatmul.bf16.gmra.mxu0 %v3373
    %v3605 = vpop.f32.mrf.mxu0
    %v3606 = vadd.f32 %v3593, %v3605
    %v3607 = vpop.f32.mrf.mxu0
    %3608 = vdwg.mxu0
    %3609 = vst [vmem:[#allocation15] sm:$0xff] %v3606
    // Predicated region
    $region78: #{tpu_custom_call.1} parent=1 // pred_check
      _
    $region79: #{tpu_custom_call.1} parent=1 // pred_check_branch
      %3611 = sbr.rel (0) target = $region81
    $region80: #{tpu_custom_call.1} parent=1 // pred_region
      %3613 = vsyncadd [#allocation5], 0
      %s3615 = sshll.u32 [#allocation15], 4
      %s3616 = int_to_ptr.vmem [resolvable:$true] %s3615
      %s3617 = sshll.u32 %s12, 4
      %s3618 = int_to_ptr.hbm [resolvable:$true] %s3617
      %3620 = dma.vmem_to_hbm [thread:$0]  %s3616, 128, %s3618, [#allocation5]
    $region81: #{tpu_custom_call.1} parent=1 // pred_fallthru
      _
    // Predicated region
    $region82: #{tpu_custom_call.1} parent=1 // pred_check
      _
    $region83: #{tpu_custom_call.1} parent=1 // pred_check_branch
      %3622 = sbr.rel (0) target = $region85
    $region84: #{tpu_custom_call.1} parent=1 // pred_region
      %3624 = dma.done [#allocation5], 128
    $region85: #{tpu_custom_call.1} parent=1 // pred_fallthru
      _
    %3625 = vsyncpa [#allocation4], 1
    %3626 = vsyncpa [#allocation7], 1
    %3627 = vsyncpa [#allocation10], 1
    %3628 = vsyncpa [#allocation13], 1
    %3629 = vsyncpa [#allocation5], 1

</llo_original>
